<compile_context>
chip_gen: v7x
topology: tpu7x:2x2x1
jax: 0.10.0
libtpu: 0.0.40
codegen_flags: <defaults>
</compile_context>

<pallas_src>
import functools

import jax
import jax.numpy as jnp
from jax.experimental import pallas as pl
from jax.experimental.pallas import tpu as pltpu


def _layernorm(x, gamma, beta, eps=1e-5):
    mean = jnp.mean(x, axis=-1, keepdims=True)
    xc = x - mean
    var = jnp.mean(xc * xc, axis=-1, keepdims=True)
    inv = jax.lax.rsqrt(var + eps)
    return xc * inv * gamma + beta


def encoder_layer_kernel(x_ref,
                         wqkv_ref, bqkv_ref, wo_ref, bo_ref,
                         w1_ref, b1_ref, w2_ref, b2_ref,
                         g1_ref, be1_ref, g2_ref, be2_ref,
                         o_ref,
                         *, nhead, head_dim, head_pad):
    """One batch element per grid step; all weights are resident VMEM blocks."""
    H, dh, P = nhead, head_dim, head_pad
    scale = 1.0 / (dh ** 0.5)

    x = x_ref[...]                                            # (L, E) f32
    xb = x.astype(jnp.bfloat16)

    # Fused QKV projection into the head-padded layout:
    # columns = [q_0..q_{H-1} | k_0..k_{H-1} | v_0..v_{H-1}], each head P(=128k) wide.
    qkv = jnp.dot(xb, wqkv_ref[...],
                  preferred_element_type=jnp.float32) + bqkv_ref[...]   # (L, 3*H*P)

    ctx_parts = []
    for h in range(H):                                        # static unrolled loop
        q = qkv[:, h * P:(h + 1) * P] * scale                 # lane-aligned 128-blocks
        k = qkv[:, (H + h) * P:(H + h + 1) * P]
        v = qkv[:, (2 * H + h) * P:(2 * H + h + 1) * P]
        s = jax.lax.dot_general(                              # (L, L) scores, f32
            q.astype(jnp.bfloat16), k.astype(jnp.bfloat16),
            (((1,), (1,)), ((), ())),
            preferred_element_type=jnp.float32)
        m = jnp.max(s, axis=-1, keepdims=True)
        p = jnp.exp(s - m)
        denom = jnp.sum(p, axis=-1, keepdims=True)            # (L, 1)
        ctx_h = jnp.dot(p.astype(jnp.bfloat16), v.astype(jnp.bfloat16),
                        preferred_element_type=jnp.float32)   # (L, P)
        # fold softmax normalization in after attn@V; reciprocal goes to EUP
        ctx_parts.append(ctx_h * pl.reciprocal(denom, approx=True))

    ctx = jnp.concatenate(ctx_parts, axis=-1) if H > 1 else ctx_parts[0]  # (L, H*P)
    attn_out = jnp.dot(ctx.astype(jnp.bfloat16), wo_ref[...],
                       preferred_element_type=jnp.float32) + bo_ref[...]

    # residual + norm1 (dropout = identity)
    src1 = _layernorm(x + attn_out, g1_ref[...], be1_ref[...])

    # FFN with fully-resident (weight-stationary) w1/w2: two fat MXU matmuls.
    h1 = jnp.maximum(
        jnp.dot(src1.astype(jnp.bfloat16), w1_ref[...],
                preferred_element_type=jnp.float32) + b1_ref[...], 0.0)   # (L, dff)
    ff = jnp.dot(h1.astype(jnp.bfloat16), w2_ref[...],
                 preferred_element_type=jnp.float32) + b2_ref[...]        # (L, E)

    # residual + norm2 -> output
    o_ref[...] = _layernorm(src1 + ff, g2_ref[...], be2_ref[...]).astype(o_ref.dtype)


def pack_params(p, nhead):
    """Pack logical params into the kernel layout (head_dim padded to 128 lanes).

    Done once outside the kernel call path; padding columns/rows are zero so the
    math is unchanged.
    """
    E = p["wo"].shape[0]
    assert E % nhead == 0
    dh = E // nhead
    P = -(-dh // 128) * 128                      # round head width up to 128 lanes

    wqkv_pad = jnp.zeros((E, 3 * nhead * P), p["wqkv"].dtype)
    bqkv_pad = jnp.zeros((1, 3 * nhead * P), p["bqkv"].dtype)
    wo_pad = jnp.zeros((nhead * P, E), p["wo"].dtype)
    for part in range(3):                         # q / k / v
        for h in range(nhead):
            src = part * E + h * dh
            dst = part * nhead * P + h * P
            wqkv_pad = wqkv_pad.at[:, dst:dst + dh].set(p["wqkv"][:, src:src + dh])
            bqkv_pad = bqkv_pad.at[:, dst:dst + dh].set(p["bqkv"][:, src:src + dh])
    for h in range(nhead):
        wo_pad = wo_pad.at[h * P:h * P + dh, :].set(p["wo"][h * dh:(h + 1) * dh, :])

    packed = dict(p)
    packed.update(wqkv=wqkv_pad, bqkv=bqkv_pad, wo=wo_pad)
    return packed


def transformer_encoder_layer(src, kparams, nhead, *, single_buffer_weights=True):
    """src: (L, N, E) seq-first, like PyTorch nn.MultiheadAttention default.

    kparams: output of pack_params(...) (head-padded wqkv/bqkv/wo + plain FFN/LN params).
    """
    L, B, E = src.shape
    assert E % nhead == 0
    assert B == 1 or E % 128 == 0, "batch-as-lane-block layout needs d_model % 128 == 0"
    dh = E // nhead
    P = kparams["wqkv"].shape[1] // (3 * nhead)
    dff = kparams["w1"].shape[1]

    # Free view: (L, N, E) row-major == (L, N*E); batch b occupies columns [b*E,(b+1)*E).
    x2d = src.astype(jnp.float32).reshape(L, B * E)

    weight_names = ("wqkv", "bqkv", "wo", "bo", "w1", "b1", "w2", "b2",
                    "g1", "be1", "g2", "be2")
    weight_bytes = sum(int(kparams[k].size) * kparams[k].dtype.itemsize
                       for k in weight_names)
    io_bytes = 2 * 2 * L * E * 4                                # double-buffered x / out
    tmp_bytes = 4 * L * (4 * nhead * P + L + dff + 8 * E)       # qkv/ctx/scores/h1/... f32
    footprint = 2 * weight_bytes + io_bytes + tmp_bytes
    # TODO(synk): on v7x (64 MiB physical VMEM) keep this well under ~half of physical.
    vmem_limit = int(min(max(2 * footprint, 32 * 1024 * 1024), 64 * 1024 * 1024))

    def build(single_buffer):
        def rep(name):
            arr = kparams[name]
            kwargs = dict(pipeline_mode=pl.Buffered(1)) if single_buffer else {}
            return pl.BlockSpec(arr.shape, lambda b: (0, 0), **kwargs)

        return pl.pallas_call(
            functools.partial(encoder_layer_kernel,
                              nhead=nhead, head_dim=dh, head_pad=P),
            out_shape=jax.ShapeDtypeStruct((L, B * E), jnp.float32),
            grid=(B,),
            in_specs=[
                pl.BlockSpec((L, E), lambda b: (0, b)),   # x: batch = lane block
                rep("wqkv"), rep("bqkv"), rep("wo"), rep("bo"),
                rep("w1"), rep("b1"), rep("w2"), rep("b2"),
                rep("g1"), rep("be1"), rep("g2"), rep("be2"),
            ],
            out_specs=pl.BlockSpec((L, E), lambda b: (0, b)),
            compiler_params=pltpu.CompilerParams(
                dimension_semantics=("parallel",),        # batch shards across TCs (v7x)
                vmem_limit_bytes=vmem_limit),
        )

    args = (x2d,
            kparams["wqkv"], kparams["bqkv"], kparams["wo"], kparams["bo"],
            kparams["w1"], kparams["b1"], kparams["w2"], kparams["b2"],
            kparams["g1"], kparams["be1"], kparams["g2"], kparams["be2"])

    if single_buffer_weights:
        try:
            return build(True)(*args).reshape(L, B, E)
        except Exception:
            # Fallback if this JAX/Mosaic build rejects pipeline_mode=pl.Buffered(1).
            pass
    return build(False)(*args).reshape(L, B, E)


def init_params(key, d_model, nhead, dff):
    ks = jax.random.split(key, 8)
    s = 0.1
    f32, bf16 = jnp.float32, jnp.bfloat16
    # logical (un-padded) layouts; matmul weights stored in bf16
    wqkv = (jax.random.normal(ks[0], (d_model, 3 * d_model), f32) * s).astype(bf16)
    bqkv = jax.random.normal(ks[1], (1, 3 * d_model), f32) * s
    wo = (jax.random.normal(ks[2], (d_model, d_model), f32) * s).astype(bf16)
    bo = jax.random.normal(ks[3], (1, d_model), f32) * s
    w1 = (jax.random.normal(ks[4], (d_model, dff), f32) * s).astype(bf16)
    b1 = jax.random.normal(ks[5], (1, dff), f32) * s
    w2 = (jax.random.normal(ks[6], (dff, d_model), f32) * s).astype(bf16)
    b2 = jax.random.normal(ks[7], (1, d_model), f32) * s
    return dict(wqkv=wqkv, bqkv=bqkv, wo=wo, bo=bo,
                w1=w1, b1=b1, w2=w2, b2=b2,
                g1=jnp.ones((1, d_model), f32), be1=jnp.zeros((1, d_model), f32),
                g2=jnp.ones((1, d_model), f32), be2=jnp.zeros((1, d_model), f32))


def reference(src, p, nhead):
    """Pure-JAX f32 reference of the same forward pass (eval-mode dropout)."""
    L, B, E = src.shape
    x = jnp.transpose(src, (1, 0, 2)).astype(jnp.float32)     # (B, L, E)
    dh = E // nhead
    scale = 1.0 / (dh ** 0.5)
    qkv = jnp.einsum("ble,ef->blf", x, p["wqkv"].astype(jnp.float32)) + p["bqkv"]
    q, k, v = qkv[..., :E], qkv[..., E:2 * E], qkv[..., 2 * E:]

    def split_heads(t):  # (B, L, E) -> (B, H, L, dh)
        return t.reshape(B, L, nhead, dh).transpose(0, 2, 1, 3)

    q, k, v = split_heads(q) * scale, split_heads(k), split_heads(v)
    s = jnp.einsum("bhqd,bhkd->bhqk", q, k)
    a = jax.nn.softmax(s, axis=-1)
    ctx = jnp.einsum("bhqk,bhkd->bhqd", a, v)
    ctx = ctx.transpose(0, 2, 1, 3).reshape(B, L, E)
    attn_out = ctx @ p["wo"].astype(jnp.float32) + p["bo"]
    src1 = _layernorm(x + attn_out, p["g1"], p["be1"])
    ff = (jnp.maximum(src1 @ p["w1"].astype(jnp.float32) + p["b1"], 0.0)
          @ p["w2"].astype(jnp.float32) + p["b2"])
    out = _layernorm(src1 + ff, p["g2"], p["be2"])
    return jnp.transpose(out, (1, 0, 2))


if __name__ == "__main__":
    # d_model=128 keeps the lane dim dense (the layout the kernel is built for),
    # while the overall problem stays tiny.
    L, B, d_model, nhead, dff = 16, 2, 128, 4, 256
    key = jax.random.PRNGKey(0)
    k_x, k_p = jax.random.split(key)
    src = jax.random.normal(k_x, (L, B, d_model), jnp.float32)   # (L, N, E) like PyTorch
    params = init_params(k_p, d_model, nhead, dff)
    kparams = pack_params(params, nhead)                         # head-padded kernel layout

    out = transformer_encoder_layer(src, kparams, nhead)
    out = jax.block_until_ready(out)

    ref = reference(src, params, nhead)
    assert out.shape == (L, B, d_model)
    max_err = float(jnp.max(jnp.abs(out - ref)))
    # bf16 matmul inputs + approx reciprocal vs. pure-f32 reference
    assert jnp.allclose(out, ref, atol=5e-2, rtol=5e-2), f"max abs err {max_err}"
    print("KERNEL_OK")
</pallas_src>

<mosaic_0001>
module attributes {stable_mosaic.version = 11 : i64} {
  func.func @encoder_layer_kernel(%arg0: i32, %arg1: memref<16x128xf32, #tpu.memory_space<vmem>>, %arg2: memref<128x1536xbf16, #tpu.memory_space<vmem>>, %arg3: memref<1x1536xf32, #tpu.memory_space<vmem>>, %arg4: memref<512x128xbf16, #tpu.memory_space<vmem>>, %arg5: memref<1x128xf32, #tpu.memory_space<vmem>>, %arg6: memref<128x256xbf16, #tpu.memory_space<vmem>>, %arg7: memref<1x256xf32, #tpu.memory_space<vmem>>, %arg8: memref<256x128xbf16, #tpu.memory_space<vmem>>, %arg9: memref<1x128xf32, #tpu.memory_space<vmem>>, %arg10: memref<1x128xf32, #tpu.memory_space<vmem>>, %arg11: memref<1x128xf32, #tpu.memory_space<vmem>>, %arg12: memref<1x128xf32, #tpu.memory_space<vmem>>, %arg13: memref<1x128xf32, #tpu.memory_space<vmem>>, %arg14: memref<16x128xf32, #tpu.memory_space<vmem>>) attributes {dimension_semantics = [#tpu.dimension_semantics<parallel>], iteration_bounds = array<i64: 2>, scalar_prefetch = 0 : i64, scratch_operands = 0 : i64, tpu.core_type = #tpu.core_type<tc>, window_params = [{transform_indices = @transform_0, window_bounds = array<i64: 16, 128>}, {pipeline_mode = #tpu.pipeline_mode<synchronous>, transform_indices = @transform_1, window_bounds = array<i64: 128, 1536>}, {pipeline_mode = #tpu.pipeline_mode<synchronous>, transform_indices = @transform_2, window_bounds = array<i64: 1, 1536>}, {pipeline_mode = #tpu.pipeline_mode<synchronous>, transform_indices = @transform_3, window_bounds = array<i64: 512, 128>}, {pipeline_mode = #tpu.pipeline_mode<synchronous>, transform_indices = @transform_4, window_bounds = array<i64: 1, 128>}, {pipeline_mode = #tpu.pipeline_mode<synchronous>, transform_indices = @transform_5, window_bounds = array<i64: 128, 256>}, {pipeline_mode = #tpu.pipeline_mode<synchronous>, transform_indices = @transform_6, window_bounds = array<i64: 1, 256>}, {pipeline_mode = #tpu.pipeline_mode<synchronous>, transform_indices = @transform_7, window_bounds = array<i64: 256, 128>}, {pipeline_mode = #tpu.pipeline_mode<synchronous>, transform_indices = @transform_8, window_bounds = array<i64: 1, 128>}, {pipeline_mode = #tpu.pipeline_mode<synchronous>, transform_indices = @transform_9, window_bounds = array<i64: 1, 128>}, {pipeline_mode = #tpu.pipeline_mode<synchronous>, transform_indices = @transform_10, window_bounds = array<i64: 1, 128>}, {pipeline_mode = #tpu.pipeline_mode<synchronous>, transform_indices = @transform_11, window_bounds = array<i64: 1, 128>}, {pipeline_mode = #tpu.pipeline_mode<synchronous>, transform_indices = @transform_12, window_bounds = array<i64: 1, 128>}, {transform_indices = @transform_13, window_bounds = array<i64: 16, 128>}]} {
    %c0 = arith.constant 0 : index
    %c0_0 = arith.constant 0 : index
    %0 = vector.load %arg1[%c0, %c0_0] : memref<16x128xf32, #tpu.memory_space<vmem>>, vector<16x128xf32>
    %1 = arith.truncf %0 : vector<16x128xf32> to vector<16x128xbf16>
    %c0_1 = arith.constant 0 : index
    %c0_2 = arith.constant 0 : index
    %2 = vector.load %arg2[%c0_1, %c0_2] : memref<128x1536xbf16, #tpu.memory_space<vmem>>, vector<128x1536xbf16>
    %cst = arith.constant dense<0.000000e+00> : vector<16x1536xf32>
    %3 = tpu.matmul %1, %2, %cst {dimension_numbers = #tpu.dot_dimension_numbers<[1], [0], [0], [1], [0, 0, 1, 1], [], []>} : vector<16x128xbf16>, vector<128x1536xbf16>, vector<16x1536xf32> -> vector<16x1536xf32>
    %c0_3 = arith.constant 0 : index
    %c0_4 = arith.constant 0 : index
    %4 = vector.load %arg3[%c0_3, %c0_4] : memref<1x1536xf32, #tpu.memory_space<vmem>>, vector<1x1536xf32>
    %5 = vector.broadcast %4 : vector<1x1536xf32> to vector<16x1536xf32>
    %6 = arith.addf %3, %5 : vector<16x1536xf32>
    %7 = vector.extract_strided_slice %6 {offsets = [0, 0], sizes = [16, 128], strides = [1, 1]} : vector<16x1536xf32> to vector<16x128xf32>
    %cst_5 = arith.constant 0.176776692 : f32
    %8 = vector.broadcast %cst_5 : f32 to vector<16x128xf32>
    %9 = arith.mulf %7, %8 : vector<16x128xf32>
    %10 = vector.extract_strided_slice %6 {offsets = [0, 512], sizes = [16, 128], strides = [1, 1]} : vector<16x1536xf32> to vector<16x128xf32>
    %11 = vector.extract_strided_slice %6 {offsets = [0, 1024], sizes = [16, 128], strides = [1, 1]} : vector<16x1536xf32> to vector<16x128xf32>
    %12 = arith.truncf %9 : vector<16x128xf32> to vector<16x128xbf16>
    %13 = arith.truncf %10 : vector<16x128xf32> to vector<16x128xbf16>
    %cst_6 = arith.constant dense<0.000000e+00> : vector<16x16xf32>
    %14 = tpu.matmul %12, %13, %cst_6 {dimension_numbers = #tpu.dot_dimension_numbers<[1], [1], [0], [0], [0, 0, 1, 0], [], []>} : vector<16x128xbf16>, vector<16x128xbf16>, vector<16x16xf32> -> vector<16x16xf32>
    %cst_7 = arith.constant dense<0xFF800000> : vector<16xf32>
    %15 = vector.multi_reduction <maximumf>, %14, %cst_7 [1] : vector<16x16xf32> to vector<16xf32>
    %16 = vector.shape_cast %15 : vector<16xf32> to vector<16x1xf32>
    %17 = vector.broadcast %16 : vector<16x1xf32> to vector<16x16xf32>
    %18 = arith.subf %14, %17 : vector<16x16xf32>
    %19 = math.exp %18 : vector<16x16xf32>
    %cst_8 = arith.constant dense<0.000000e+00> : vector<16xf32>
    %20 = vector.multi_reduction <add>, %19, %cst_8 [1] : vector<16x16xf32> to vector<16xf32>
    %21 = vector.shape_cast %20 : vector<16xf32> to vector<16x1xf32>
    %22 = arith.truncf %19 : vector<16x16xf32> to vector<16x16xbf16>
    %23 = arith.truncf %11 : vector<16x128xf32> to vector<16x128xbf16>
    %cst_9 = arith.constant dense<0.000000e+00> : vector<16x128xf32>
    %24 = tpu.matmul %22, %23, %cst_9 {dimension_numbers = #tpu.dot_dimension_numbers<[1], [0], [0], [1], [0, 0, 1, 1], [], []>} : vector<16x16xbf16>, vector<16x128xbf16>, vector<16x128xf32> -> vector<16x128xf32>
    %25 = tpu.reciprocal %21 {approx = true} : vector<16x1xf32> -> vector<16x1xf32>
    %26 = vector.broadcast %25 : vector<16x1xf32> to vector<16x128xf32>
    %27 = arith.mulf %24, %26 : vector<16x128xf32>
    %28 = vector.extract_strided_slice %6 {offsets = [0, 128], sizes = [16, 128], strides = [1, 1]} : vector<16x1536xf32> to vector<16x128xf32>
    %cst_10 = arith.constant 0.176776692 : f32
    %29 = vector.broadcast %cst_10 : f32 to vector<16x128xf32>
    %30 = arith.mulf %28, %29 : vector<16x128xf32>
    %31 = vector.extract_strided_slice %6 {offsets = [0, 640], sizes = [16, 128], strides = [1, 1]} : vector<16x1536xf32> to vector<16x128xf32>
    %32 = vector.extract_strided_slice %6 {offsets = [0, 1152], sizes = [16, 128], strides = [1, 1]} : vector<16x1536xf32> to vector<16x128xf32>
    %33 = arith.truncf %30 : vector<16x128xf32> to vector<16x128xbf16>
    %34 = arith.truncf %31 : vector<16x128xf32> to vector<16x128xbf16>
    %cst_11 = arith.constant dense<0.000000e+00> : vector<16x16xf32>
    %35 = tpu.matmul %33, %34, %cst_11 {dimension_numbers = #tpu.dot_dimension_numbers<[1], [1], [0], [0], [0, 0, 1, 0], [], []>} : vector<16x128xbf16>, vector<16x128xbf16>, vector<16x16xf32> -> vector<16x16xf32>
    %cst_12 = arith.constant dense<0xFF800000> : vector<16xf32>
    %36 = vector.multi_reduction <maximumf>, %35, %cst_12 [1] : vector<16x16xf32> to vector<16xf32>
    %37 = vector.shape_cast %36 : vector<16xf32> to vector<16x1xf32>
    %38 = vector.broadcast %37 : vector<16x1xf32> to vector<16x16xf32>
    %39 = arith.subf %35, %38 : vector<16x16xf32>
    %40 = math.exp %39 : vector<16x16xf32>
    %cst_13 = arith.constant dense<0.000000e+00> : vector<16xf32>
    %41 = vector.multi_reduction <add>, %40, %cst_13 [1] : vector<16x16xf32> to vector<16xf32>
    %42 = vector.shape_cast %41 : vector<16xf32> to vector<16x1xf32>
    %43 = arith.truncf %40 : vector<16x16xf32> to vector<16x16xbf16>
    %44 = arith.truncf %32 : vector<16x128xf32> to vector<16x128xbf16>
    %cst_14 = arith.constant dense<0.000000e+00> : vector<16x128xf32>
    %45 = tpu.matmul %43, %44, %cst_14 {dimension_numbers = #tpu.dot_dimension_numbers<[1], [0], [0], [1], [0, 0, 1, 1], [], []>} : vector<16x16xbf16>, vector<16x128xbf16>, vector<16x128xf32> -> vector<16x128xf32>
    %46 = tpu.reciprocal %42 {approx = true} : vector<16x1xf32> -> vector<16x1xf32>
    %47 = vector.broadcast %46 : vector<16x1xf32> to vector<16x128xf32>
    %48 = arith.mulf %45, %47 : vector<16x128xf32>
    %49 = vector.extract_strided_slice %6 {offsets = [0, 256], sizes = [16, 128], strides = [1, 1]} : vector<16x1536xf32> to vector<16x128xf32>
    %cst_15 = arith.constant 0.176776692 : f32
    %50 = vector.broadcast %cst_15 : f32 to vector<16x128xf32>
    %51 = arith.mulf %49, %50 : vector<16x128xf32>
    %52 = vector.extract_strided_slice %6 {offsets = [0, 768], sizes = [16, 128], strides = [1, 1]} : vector<16x1536xf32> to vector<16x128xf32>
    %53 = vector.extract_strided_slice %6 {offsets = [0, 1280], sizes = [16, 128], strides = [1, 1]} : vector<16x1536xf32> to vector<16x128xf32>
    %54 = arith.truncf %51 : vector<16x128xf32> to vector<16x128xbf16>
    %55 = arith.truncf %52 : vector<16x128xf32> to vector<16x128xbf16>
    %cst_16 = arith.constant dense<0.000000e+00> : vector<16x16xf32>
    %56 = tpu.matmul %54, %55, %cst_16 {dimension_numbers = #tpu.dot_dimension_numbers<[1], [1], [0], [0], [0, 0, 1, 0], [], []>} : vector<16x128xbf16>, vector<16x128xbf16>, vector<16x16xf32> -> vector<16x16xf32>
    %cst_17 = arith.constant dense<0xFF800000> : vector<16xf32>
    %57 = vector.multi_reduction <maximumf>, %56, %cst_17 [1] : vector<16x16xf32> to vector<16xf32>
    %58 = vector.shape_cast %57 : vector<16xf32> to vector<16x1xf32>
    %59 = vector.broadcast %58 : vector<16x1xf32> to vector<16x16xf32>
    %60 = arith.subf %56, %59 : vector<16x16xf32>
    %61 = math.exp %60 : vector<16x16xf32>
    %cst_18 = arith.constant dense<0.000000e+00> : vector<16xf32>
    %62 = vector.multi_reduction <add>, %61, %cst_18 [1] : vector<16x16xf32> to vector<16xf32>
    %63 = vector.shape_cast %62 : vector<16xf32> to vector<16x1xf32>
    %64 = arith.truncf %61 : vector<16x16xf32> to vector<16x16xbf16>
    %65 = arith.truncf %53 : vector<16x128xf32> to vector<16x128xbf16>
    %cst_19 = arith.constant dense<0.000000e+00> : vector<16x128xf32>
    %66 = tpu.matmul %64, %65, %cst_19 {dimension_numbers = #tpu.dot_dimension_numbers<[1], [0], [0], [1], [0, 0, 1, 1], [], []>} : vector<16x16xbf16>, vector<16x128xbf16>, vector<16x128xf32> -> vector<16x128xf32>
    %67 = tpu.reciprocal %63 {approx = true} : vector<16x1xf32> -> vector<16x1xf32>
    %68 = vector.broadcast %67 : vector<16x1xf32> to vector<16x128xf32>
    %69 = arith.mulf %66, %68 : vector<16x128xf32>
    %70 = vector.extract_strided_slice %6 {offsets = [0, 384], sizes = [16, 128], strides = [1, 1]} : vector<16x1536xf32> to vector<16x128xf32>
    %cst_20 = arith.constant 0.176776692 : f32
    %71 = vector.broadcast %cst_20 : f32 to vector<16x128xf32>
    %72 = arith.mulf %70, %71 : vector<16x128xf32>
    %73 = vector.extract_strided_slice %6 {offsets = [0, 896], sizes = [16, 128], strides = [1, 1]} : vector<16x1536xf32> to vector<16x128xf32>
    %74 = vector.extract_strided_slice %6 {offsets = [0, 1408], sizes = [16, 128], strides = [1, 1]} : vector<16x1536xf32> to vector<16x128xf32>
    %75 = arith.truncf %72 : vector<16x128xf32> to vector<16x128xbf16>
    %76 = arith.truncf %73 : vector<16x128xf32> to vector<16x128xbf16>
    %cst_21 = arith.constant dense<0.000000e+00> : vector<16x16xf32>
    %77 = tpu.matmul %75, %76, %cst_21 {dimension_numbers = #tpu.dot_dimension_numbers<[1], [1], [0], [0], [0, 0, 1, 0], [], []>} : vector<16x128xbf16>, vector<16x128xbf16>, vector<16x16xf32> -> vector<16x16xf32>
    %cst_22 = arith.constant dense<0xFF800000> : vector<16xf32>
    %78 = vector.multi_reduction <maximumf>, %77, %cst_22 [1] : vector<16x16xf32> to vector<16xf32>
    %79 = vector.shape_cast %78 : vector<16xf32> to vector<16x1xf32>
    %80 = vector.broadcast %79 : vector<16x1xf32> to vector<16x16xf32>
    %81 = arith.subf %77, %80 : vector<16x16xf32>
    %82 = math.exp %81 : vector<16x16xf32>
    %cst_23 = arith.constant dense<0.000000e+00> : vector<16xf32>
    %83 = vector.multi_reduction <add>, %82, %cst_23 [1] : vector<16x16xf32> to vector<16xf32>
    %84 = vector.shape_cast %83 : vector<16xf32> to vector<16x1xf32>
    %85 = arith.truncf %82 : vector<16x16xf32> to vector<16x16xbf16>
    %86 = arith.truncf %74 : vector<16x128xf32> to vector<16x128xbf16>
    %cst_24 = arith.constant dense<0.000000e+00> : vector<16x128xf32>
    %87 = tpu.matmul %85, %86, %cst_24 {dimension_numbers = #tpu.dot_dimension_numbers<[1], [0], [0], [1], [0, 0, 1, 1], [], []>} : vector<16x16xbf16>, vector<16x128xbf16>, vector<16x128xf32> -> vector<16x128xf32>
    %88 = tpu.reciprocal %84 {approx = true} : vector<16x1xf32> -> vector<16x1xf32>
    %89 = vector.broadcast %88 : vector<16x1xf32> to vector<16x128xf32>
    %90 = arith.mulf %87, %89 : vector<16x128xf32>
    %91 = tpu.concatenate %27, %48, %69, %90 in 1 : vector<16x128xf32>, vector<16x128xf32>, vector<16x128xf32>, vector<16x128xf32> -> vector<16x512xf32>
    %92 = arith.truncf %91 : vector<16x512xf32> to vector<16x512xbf16>
    %c0_25 = arith.constant 0 : index
    %c0_26 = arith.constant 0 : index
    %93 = vector.load %arg4[%c0_25, %c0_26] : memref<512x128xbf16, #tpu.memory_space<vmem>>, vector<512x128xbf16>
    %cst_27 = arith.constant dense<0.000000e+00> : vector<16x128xf32>
    %94 = tpu.matmul %92, %93, %cst_27 {dimension_numbers = #tpu.dot_dimension_numbers<[1], [0], [0], [1], [0, 0, 1, 1], [], []>} : vector<16x512xbf16>, vector<512x128xbf16>, vector<16x128xf32> -> vector<16x128xf32>
    %c0_28 = arith.constant 0 : index
    %c0_29 = arith.constant 0 : index
    %95 = vector.load %arg5[%c0_28, %c0_29] : memref<1x128xf32, #tpu.memory_space<vmem>>, vector<1x128xf32>
    %96 = vector.broadcast %95 : vector<1x128xf32> to vector<16x128xf32>
    %97 = arith.addf %94, %96 : vector<16x128xf32>
    %98 = arith.addf %0, %97 : vector<16x128xf32>
    %c0_30 = arith.constant 0 : index
    %c0_31 = arith.constant 0 : index
    %99 = vector.load %arg10[%c0_30, %c0_31] : memref<1x128xf32, #tpu.memory_space<vmem>>, vector<1x128xf32>
    %c0_32 = arith.constant 0 : index
    %c0_33 = arith.constant 0 : index
    %100 = vector.load %arg11[%c0_32, %c0_33] : memref<1x128xf32, #tpu.memory_space<vmem>>, vector<1x128xf32>
    %cst_34 = arith.constant dense<0.000000e+00> : vector<16xf32>
    %101 = vector.multi_reduction <add>, %98, %cst_34 [1] : vector<16x128xf32> to vector<16xf32>
    %102 = vector.shape_cast %101 : vector<16xf32> to vector<16x1xf32>
    %cst_35 = arith.constant 1.280000e+02 : f32
    %103 = vector.broadcast %cst_35 : f32 to vector<16x1xf32>
    %104 = arith.divf %102, %103 : vector<16x1xf32>
    %105 = vector.broadcast %104 : vector<16x1xf32> to vector<16x128xf32>
    %106 = arith.subf %98, %105 : vector<16x128xf32>
    %107 = arith.mulf %106, %106 : vector<16x128xf32>
    %cst_36 = arith.constant dense<0.000000e+00> : vector<16xf32>
    %108 = vector.multi_reduction <add>, %107, %cst_36 [1] : vector<16x128xf32> to vector<16xf32>
    %109 = vector.shape_cast %108 : vector<16xf32> to vector<16x1xf32>
    %cst_37 = arith.constant 1.280000e+02 : f32
    %110 = vector.broadcast %cst_37 : f32 to vector<16x1xf32>
    %111 = arith.divf %109, %110 : vector<16x1xf32>
    %cst_38 = arith.constant 9.99999974E-6 : f32
    %112 = vector.broadcast %cst_38 : f32 to vector<16x1xf32>
    %113 = arith.addf %111, %112 : vector<16x1xf32>
    %114 = math.rsqrt %113 : vector<16x1xf32>
    %115 = vector.broadcast %114 : vector<16x1xf32> to vector<16x128xf32>
    %116 = arith.mulf %106, %115 : vector<16x128xf32>
    %117 = vector.broadcast %99 : vector<1x128xf32> to vector<16x128xf32>
    %118 = arith.mulf %116, %117 : vector<16x128xf32>
    %119 = vector.broadcast %100 : vector<1x128xf32> to vector<16x128xf32>
    %120 = arith.addf %118, %119 : vector<16x128xf32>
    %121 = arith.truncf %120 : vector<16x128xf32> to vector<16x128xbf16>
    %c0_39 = arith.constant 0 : index
    %c0_40 = arith.constant 0 : index
    %122 = vector.load %arg6[%c0_39, %c0_40] : memref<128x256xbf16, #tpu.memory_space<vmem>>, vector<128x256xbf16>
    %cst_41 = arith.constant dense<0.000000e+00> : vector<16x256xf32>
    %123 = tpu.matmul %121, %122, %cst_41 {dimension_numbers = #tpu.dot_dimension_numbers<[1], [0], [0], [1], [0, 0, 1, 1], [], []>} : vector<16x128xbf16>, vector<128x256xbf16>, vector<16x256xf32> -> vector<16x256xf32>
    %c0_42 = arith.constant 0 : index
    %c0_43 = arith.constant 0 : index
    %124 = vector.load %arg7[%c0_42, %c0_43] : memref<1x256xf32, #tpu.memory_space<vmem>>, vector<1x256xf32>
    %125 = vector.broadcast %124 : vector<1x256xf32> to vector<16x256xf32>
    %126 = arith.addf %123, %125 : vector<16x256xf32>
    %cst_44 = arith.constant 0.000000e+00 : f32
    %127 = vector.broadcast %cst_44 : f32 to vector<16x256xf32>
    %128 = arith.maximumf %126, %127 : vector<16x256xf32>
    %129 = arith.truncf %128 : vector<16x256xf32> to vector<16x256xbf16>
    %c0_45 = arith.constant 0 : index
    %c0_46 = arith.constant 0 : index
    %130 = vector.load %arg8[%c0_45, %c0_46] : memref<256x128xbf16, #tpu.memory_space<vmem>>, vector<256x128xbf16>
    %cst_47 = arith.constant dense<0.000000e+00> : vector<16x128xf32>
    %131 = tpu.matmul %129, %130, %cst_47 {dimension_numbers = #tpu.dot_dimension_numbers<[1], [0], [0], [1], [0, 0, 1, 1], [], []>} : vector<16x256xbf16>, vector<256x128xbf16>, vector<16x128xf32> -> vector<16x128xf32>
    %c0_48 = arith.constant 0 : index
    %c0_49 = arith.constant 0 : index
    %132 = vector.load %arg9[%c0_48, %c0_49] : memref<1x128xf32, #tpu.memory_space<vmem>>, vector<1x128xf32>
    %133 = vector.broadcast %132 : vector<1x128xf32> to vector<16x128xf32>
    %134 = arith.addf %131, %133 : vector<16x128xf32>
    %135 = arith.addf %120, %134 : vector<16x128xf32>
    %c0_50 = arith.constant 0 : index
    %c0_51 = arith.constant 0 : index
    %136 = vector.load %arg12[%c0_50, %c0_51] : memref<1x128xf32, #tpu.memory_space<vmem>>, vector<1x128xf32>
    %c0_52 = arith.constant 0 : index
    %c0_53 = arith.constant 0 : index
    %137 = vector.load %arg13[%c0_52, %c0_53] : memref<1x128xf32, #tpu.memory_space<vmem>>, vector<1x128xf32>
    %cst_54 = arith.constant dense<0.000000e+00> : vector<16xf32>
    %138 = vector.multi_reduction <add>, %135, %cst_54 [1] : vector<16x128xf32> to vector<16xf32>
    %139 = vector.shape_cast %138 : vector<16xf32> to vector<16x1xf32>
    %cst_55 = arith.constant 1.280000e+02 : f32
    %140 = vector.broadcast %cst_55 : f32 to vector<16x1xf32>
    %141 = arith.divf %139, %140 : vector<16x1xf32>
    %142 = vector.broadcast %141 : vector<16x1xf32> to vector<16x128xf32>
    %143 = arith.subf %135, %142 : vector<16x128xf32>
    %144 = arith.mulf %143, %143 : vector<16x128xf32>
    %cst_56 = arith.constant dense<0.000000e+00> : vector<16xf32>
    %145 = vector.multi_reduction <add>, %144, %cst_56 [1] : vector<16x128xf32> to vector<16xf32>
    %146 = vector.shape_cast %145 : vector<16xf32> to vector<16x1xf32>
    %cst_57 = arith.constant 1.280000e+02 : f32
    %147 = vector.broadcast %cst_57 : f32 to vector<16x1xf32>
    %148 = arith.divf %146, %147 : vector<16x1xf32>
    %cst_58 = arith.constant 9.99999974E-6 : f32
    %149 = vector.broadcast %cst_58 : f32 to vector<16x1xf32>
    %150 = arith.addf %148, %149 : vector<16x1xf32>
    %151 = math.rsqrt %150 : vector<16x1xf32>
    %152 = vector.broadcast %151 : vector<16x1xf32> to vector<16x128xf32>
    %153 = arith.mulf %143, %152 : vector<16x128xf32>
    %154 = vector.broadcast %136 : vector<1x128xf32> to vector<16x128xf32>
    %155 = arith.mulf %153, %154 : vector<16x128xf32>
    %156 = vector.broadcast %137 : vector<1x128xf32> to vector<16x128xf32>
    %157 = arith.addf %155, %156 : vector<16x128xf32>
    %c0_59 = arith.constant 0 : index
    %c0_60 = arith.constant 0 : index
    %158 = vector.load %arg14[%c0_59, %c0_60] : memref<16x128xf32, #tpu.memory_space<vmem>>, vector<16x128xf32>
    tpu.vector_store %arg14[%c0_59, %c0_60], %157 {strides = array<i32>} : memref<16x128xf32, #tpu.memory_space<vmem>>, vector<16x128xf32>,
    return
  }
  func.func @transform_0(%arg0: i32) -> (i32, i32) {
    %c0_i32 = arith.constant 0 : i32
    %c0_i32_0 = arith.constant 0 : i32
    return %c0_i32, %arg0 : i32, i32
  }
  func.func @transform_1(%arg0: i32) -> (i32, i32) {
    %c0_i32 = arith.constant 0 : i32
    %c0_i32_0 = arith.constant 0 : i32
    %c0_i32_1 = arith.constant 0 : i32
    return %c0_i32, %c0_i32_0 : i32, i32
  }
  func.func @transform_2(%arg0: i32) -> (i32, i32) {
    %c0_i32 = arith.constant 0 : i32
    %c0_i32_0 = arith.constant 0 : i32
    %c0_i32_1 = arith.constant 0 : i32
    return %c0_i32, %c0_i32_0 : i32, i32
  }
  func.func @transform_3(%arg0: i32) -> (i32, i32) {
    %c0_i32 = arith.constant 0 : i32
    %c0_i32_0 = arith.constant 0 : i32
    %c0_i32_1 = arith.constant 0 : i32
    return %c0_i32, %c0_i32_0 : i32, i32
  }
  func.func @transform_4(%arg0: i32) -> (i32, i32) {
    %c0_i32 = arith.constant 0 : i32
    %c0_i32_0 = arith.constant 0 : i32
    %c0_i32_1 = arith.constant 0 : i32
    return %c0_i32, %c0_i32_0 : i32, i32
  }
  func.func @transform_5(%arg0: i32) -> (i32, i32) {
    %c0_i32 = arith.constant 0 : i32
    %c0_i32_0 = arith.constant 0 : i32
    %c0_i32_1 = arith.constant 0 : i32
    return %c0_i32, %c0_i32_0 : i32, i32
  }
  func.func @transform_6(%arg0: i32) -> (i32, i32) {
    %c0_i32 = arith.constant 0 : i32
    %c0_i32_0 = arith.constant 0 : i32
    %c0_i32_1 = arith.constant 0 : i32
    return %c0_i32, %c0_i32_0 : i32, i32
  }
  func.func @transform_7(%arg0: i32) -> (i32, i32) {
    %c0_i32 = arith.constant 0 : i32
    %c0_i32_0 = arith.constant 0 : i32
    %c0_i32_1 = arith.constant 0 : i32
    return %c0_i32, %c0_i32_0 : i32, i32
  }
  func.func @transform_8(%arg0: i32) -> (i32, i32) {
    %c0_i32 = arith.constant 0 : i32
    %c0_i32_0 = arith.constant 0 : i32
    %c0_i32_1 = arith.constant 0 : i32
    return %c0_i32, %c0_i32_0 : i32, i32
  }
  func.func @transform_9(%arg0: i32) -> (i32, i32) {
    %c0_i32 = arith.constant 0 : i32
    %c0_i32_0 = arith.constant 0 : i32
    %c0_i32_1 = arith.constant 0 : i32
    return %c0_i32, %c0_i32_0 : i32, i32
  }
  func.func @transform_10(%arg0: i32) -> (i32, i32) {
    %c0_i32 = arith.constant 0 : i32
    %c0_i32_0 = arith.constant 0 : i32
    %c0_i32_1 = arith.constant 0 : i32
    return %c0_i32, %c0_i32_0 : i32, i32
  }
  func.func @transform_11(%arg0: i32) -> (i32, i32) {
    %c0_i32 = arith.constant 0 : i32
    %c0_i32_0 = arith.constant 0 : i32
    %c0_i32_1 = arith.constant 0 : i32
    return %c0_i32, %c0_i32_0 : i32, i32
  }
  func.func @transform_12(%arg0: i32) -> (i32, i32) {
    %c0_i32 = arith.constant 0 : i32
    %c0_i32_0 = arith.constant 0 : i32
    %c0_i32_1 = arith.constant 0 : i32
    return %c0_i32, %c0_i32_0 : i32, i32
  }
  func.func @transform_13(%arg0: i32) -> (i32, i32) {
    %c0_i32 = arith.constant 0 : i32
    %c0_i32_0 = arith.constant 0 : i32
    return %c0_i32, %arg0 : i32, i32
  }
}

module attributes {stable_mosaic.version = 11 : i64} {
  func.func @encoder_layer_kernel(%arg0: i32, %arg1: memref<16x128xf32, #tpu.memory_space<vmem>>, %arg2: memref<128x1536xbf16, #tpu.memory_space<vmem>>, %arg3: memref<1x1536xf32, #tpu.memory_space<vmem>>, %arg4: memref<512x128xbf16, #tpu.memory_space<vmem>>, %arg5: memref<1x128xf32, #tpu.memory_space<vmem>>, %arg6: memref<128x256xbf16, #tpu.memory_space<vmem>>, %arg7: memref<1x256xf32, #tpu.memory_space<vmem>>, %arg8: memref<256x128xbf16, #tpu.memory_space<vmem>>, %arg9: memref<1x128xf32, #tpu.memory_space<vmem>>, %arg10: memref<1x128xf32, #tpu.memory_space<vmem>>, %arg11: memref<1x128xf32, #tpu.memory_space<vmem>>, %arg12: memref<1x128xf32, #tpu.memory_space<vmem>>, %arg13: memref<1x128xf32, #tpu.memory_space<vmem>>, %arg14: memref<16x128xf32, #tpu.memory_space<vmem>>) attributes {dimension_semantics = [#tpu.dimension_semantics<parallel>], iteration_bounds = array<i64: 2>, scalar_prefetch = 0 : i64, scratch_operands = 0 : i64, tpu.core_type = #tpu.core_type<tc>, window_params = [{transform_indices = @transform_0, window_bounds = array<i64: 16, 128>}, {pipeline_mode = #tpu.pipeline_mode<synchronous>, transform_indices = @transform_1, window_bounds = array<i64: 128, 1536>}, {pipeline_mode = #tpu.pipeline_mode<synchronous>, transform_indices = @transform_2, window_bounds = array<i64: 1, 1536>}, {pipeline_mode = #tpu.pipeline_mode<synchronous>, transform_indices = @transform_3, window_bounds = array<i64: 512, 128>}, {pipeline_mode = #tpu.pipeline_mode<synchronous>, transform_indices = @transform_4, window_bounds = array<i64: 1, 128>}, {pipeline_mode = #tpu.pipeline_mode<synchronous>, transform_indices = @transform_5, window_bounds = array<i64: 128, 256>}, {pipeline_mode = #tpu.pipeline_mode<synchronous>, transform_indices = @transform_6, window_bounds = array<i64: 1, 256>}, {pipeline_mode = #tpu.pipeline_mode<synchronous>, transform_indices = @transform_7, window_bounds = array<i64: 256, 128>}, {pipeline_mode = #tpu.pipeline_mode<synchronous>, transform_indices = @transform_8, window_bounds = array<i64: 1, 128>}, {pipeline_mode = #tpu.pipeline_mode<synchronous>, transform_indices = @transform_9, window_bounds = array<i64: 1, 128>}, {pipeline_mode = #tpu.pipeline_mode<synchronous>, transform_indices = @transform_10, window_bounds = array<i64: 1, 128>}, {pipeline_mode = #tpu.pipeline_mode<synchronous>, transform_indices = @transform_11, window_bounds = array<i64: 1, 128>}, {pipeline_mode = #tpu.pipeline_mode<synchronous>, transform_indices = @transform_12, window_bounds = array<i64: 1, 128>}, {transform_indices = @transform_13, window_bounds = array<i64: 16, 128>}]} {
    %c0 = arith.constant 0 : index
    %c0_0 = arith.constant 0 : index
    %0 = vector.load %arg1[%c0, %c0_0] : memref<16x128xf32, #tpu.memory_space<vmem>>, vector<16x128xf32>
    %1 = arith.truncf %0 : vector<16x128xf32> to vector<16x128xbf16>
    %c0_1 = arith.constant 0 : index
    %c0_2 = arith.constant 0 : index
    %2 = vector.load %arg2[%c0_1, %c0_2] : memref<128x1536xbf16, #tpu.memory_space<vmem>>, vector<128x1536xbf16>
    %cst = arith.constant dense<0.000000e+00> : vector<16x1536xf32>
    %3 = tpu.matmul %1, %2, %cst {dimension_numbers = #tpu.dot_dimension_numbers<[1], [0], [0], [1], [0, 0, 1, 1], [], []>} : vector<16x128xbf16>, vector<128x1536xbf16>, vector<16x1536xf32> -> vector<16x1536xf32>
    %c0_3 = arith.constant 0 : index
    %c0_4 = arith.constant 0 : index
    %4 = vector.load %arg3[%c0_3, %c0_4] : memref<1x1536xf32, #tpu.memory_space<vmem>>, vector<1x1536xf32>
    %5 = vector.broadcast %4 : vector<1x1536xf32> to vector<16x1536xf32>
    %6 = arith.addf %3, %5 : vector<16x1536xf32>
    %7 = vector.extract_strided_slice %6 {offsets = [0, 0], sizes = [16, 128], strides = [1, 1]} : vector<16x1536xf32> to vector<16x128xf32>
    %cst_5 = arith.constant 0.176776692 : f32
    %8 = vector.broadcast %cst_5 : f32 to vector<16x128xf32>
    %9 = arith.mulf %7, %8 : vector<16x128xf32>
    %10 = vector.extract_strided_slice %6 {offsets = [0, 512], sizes = [16, 128], strides = [1, 1]} : vector<16x1536xf32> to vector<16x128xf32>
    %11 = vector.extract_strided_slice %6 {offsets = [0, 1024], sizes = [16, 128], strides = [1, 1]} : vector<16x1536xf32> to vector<16x128xf32>
    %12 = arith.truncf %9 : vector<16x128xf32> to vector<16x128xbf16>
    %13 = arith.truncf %10 : vector<16x128xf32> to vector<16x128xbf16>
    %cst_6 = arith.constant dense<0.000000e+00> : vector<16x16xf32>
    %14 = tpu.matmul %12, %13, %cst_6 {dimension_numbers = #tpu.dot_dimension_numbers<[1], [1], [0], [0], [0, 0, 1, 0], [], []>} : vector<16x128xbf16>, vector<16x128xbf16>, vector<16x16xf32> -> vector<16x16xf32>
    %cst_7 = arith.constant dense<0xFF800000> : vector<16xf32>
    %15 = vector.multi_reduction <maximumf>, %14, %cst_7 [1] : vector<16x16xf32> to vector<16xf32>
    %16 = vector.shape_cast %15 : vector<16xf32> to vector<16x1xf32>
    %17 = vector.broadcast %16 : vector<16x1xf32> to vector<16x16xf32>
    %18 = arith.subf %14, %17 : vector<16x16xf32>
    %19 = math.exp %18 : vector<16x16xf32>
    %cst_8 = arith.constant dense<0.000000e+00> : vector<16xf32>
    %20 = vector.multi_reduction <add>, %19, %cst_8 [1] : vector<16x16xf32> to vector<16xf32>
    %21 = vector.shape_cast %20 : vector<16xf32> to vector<16x1xf32>
    %22 = arith.truncf %19 : vector<16x16xf32> to vector<16x16xbf16>
    %23 = arith.truncf %11 : vector<16x128xf32> to vector<16x128xbf16>
    %cst_9 = arith.constant dense<0.000000e+00> : vector<16x128xf32>
    %24 = tpu.matmul %22, %23, %cst_9 {dimension_numbers = #tpu.dot_dimension_numbers<[1], [0], [0], [1], [0, 0, 1, 1], [], []>} : vector<16x16xbf16>, vector<16x128xbf16>, vector<16x128xf32> -> vector<16x128xf32>
    %25 = tpu.reciprocal %21 {approx = true} : vector<16x1xf32> -> vector<16x1xf32>
    %26 = vector.broadcast %25 : vector<16x1xf32> to vector<16x128xf32>
    %27 = arith.mulf %24, %26 : vector<16x128xf32>
    %28 = vector.extract_strided_slice %6 {offsets = [0, 128], sizes = [16, 128], strides = [1, 1]} : vector<16x1536xf32> to vector<16x128xf32>
    %cst_10 = arith.constant 0.176776692 : f32
    %29 = vector.broadcast %cst_10 : f32 to vector<16x128xf32>
    %30 = arith.mulf %28, %29 : vector<16x128xf32>
    %31 = vector.extract_strided_slice %6 {offsets = [0, 640], sizes = [16, 128], strides = [1, 1]} : vector<16x1536xf32> to vector<16x128xf32>
    %32 = vector.extract_strided_slice %6 {offsets = [0, 1152], sizes = [16, 128], strides = [1, 1]} : vector<16x1536xf32> to vector<16x128xf32>
    %33 = arith.truncf %30 : vector<16x128xf32> to vector<16x128xbf16>
    %34 = arith.truncf %31 : vector<16x128xf32> to vector<16x128xbf16>
    %cst_11 = arith.constant dense<0.000000e+00> : vector<16x16xf32>
    %35 = tpu.matmul %33, %34, %cst_11 {dimension_numbers = #tpu.dot_dimension_numbers<[1], [1], [0], [0], [0, 0, 1, 0], [], []>} : vector<16x128xbf16>, vector<16x128xbf16>, vector<16x16xf32> -> vector<16x16xf32>
    %cst_12 = arith.constant dense<0xFF800000> : vector<16xf32>
    %36 = vector.multi_reduction <maximumf>, %35, %cst_12 [1] : vector<16x16xf32> to vector<16xf32>
    %37 = vector.shape_cast %36 : vector<16xf32> to vector<16x1xf32>
    %38 = vector.broadcast %37 : vector<16x1xf32> to vector<16x16xf32>
    %39 = arith.subf %35, %38 : vector<16x16xf32>
    %40 = math.exp %39 : vector<16x16xf32>
    %cst_13 = arith.constant dense<0.000000e+00> : vector<16xf32>
    %41 = vector.multi_reduction <add>, %40, %cst_13 [1] : vector<16x16xf32> to vector<16xf32>
    %42 = vector.shape_cast %41 : vector<16xf32> to vector<16x1xf32>
    %43 = arith.truncf %40 : vector<16x16xf32> to vector<16x16xbf16>
    %44 = arith.truncf %32 : vector<16x128xf32> to vector<16x128xbf16>
    %cst_14 = arith.constant dense<0.000000e+00> : vector<16x128xf32>
    %45 = tpu.matmul %43, %44, %cst_14 {dimension_numbers = #tpu.dot_dimension_numbers<[1], [0], [0], [1], [0, 0, 1, 1], [], []>} : vector<16x16xbf16>, vector<16x128xbf16>, vector<16x128xf32> -> vector<16x128xf32>
    %46 = tpu.reciprocal %42 {approx = true} : vector<16x1xf32> -> vector<16x1xf32>
    %47 = vector.broadcast %46 : vector<16x1xf32> to vector<16x128xf32>
    %48 = arith.mulf %45, %47 : vector<16x128xf32>
    %49 = vector.extract_strided_slice %6 {offsets = [0, 256], sizes = [16, 128], strides = [1, 1]} : vector<16x1536xf32> to vector<16x128xf32>
    %cst_15 = arith.constant 0.176776692 : f32
    %50 = vector.broadcast %cst_15 : f32 to vector<16x128xf32>
    %51 = arith.mulf %49, %50 : vector<16x128xf32>
    %52 = vector.extract_strided_slice %6 {offsets = [0, 768], sizes = [16, 128], strides = [1, 1]} : vector<16x1536xf32> to vector<16x128xf32>
    %53 = vector.extract_strided_slice %6 {offsets = [0, 1280], sizes = [16, 128], strides = [1, 1]} : vector<16x1536xf32> to vector<16x128xf32>
    %54 = arith.truncf %51 : vector<16x128xf32> to vector<16x128xbf16>
    %55 = arith.truncf %52 : vector<16x128xf32> to vector<16x128xbf16>
    %cst_16 = arith.constant dense<0.000000e+00> : vector<16x16xf32>
    %56 = tpu.matmul %54, %55, %cst_16 {dimension_numbers = #tpu.dot_dimension_numbers<[1], [1], [0], [0], [0, 0, 1, 0], [], []>} : vector<16x128xbf16>, vector<16x128xbf16>, vector<16x16xf32> -> vector<16x16xf32>
    %cst_17 = arith.constant dense<0xFF800000> : vector<16xf32>
    %57 = vector.multi_reduction <maximumf>, %56, %cst_17 [1] : vector<16x16xf32> to vector<16xf32>
    %58 = vector.shape_cast %57 : vector<16xf32> to vector<16x1xf32>
    %59 = vector.broadcast %58 : vector<16x1xf32> to vector<16x16xf32>
    %60 = arith.subf %56, %59 : vector<16x16xf32>
    %61 = math.exp %60 : vector<16x16xf32>
    %cst_18 = arith.constant dense<0.000000e+00> : vector<16xf32>
    %62 = vector.multi_reduction <add>, %61, %cst_18 [1] : vector<16x16xf32> to vector<16xf32>
    %63 = vector.shape_cast %62 : vector<16xf32> to vector<16x1xf32>
    %64 = arith.truncf %61 : vector<16x16xf32> to vector<16x16xbf16>
    %65 = arith.truncf %53 : vector<16x128xf32> to vector<16x128xbf16>
    %cst_19 = arith.constant dense<0.000000e+00> : vector<16x128xf32>
    %66 = tpu.matmul %64, %65, %cst_19 {dimension_numbers = #tpu.dot_dimension_numbers<[1], [0], [0], [1], [0, 0, 1, 1], [], []>} : vector<16x16xbf16>, vector<16x128xbf16>, vector<16x128xf32> -> vector<16x128xf32>
    %67 = tpu.reciprocal %63 {approx = true} : vector<16x1xf32> -> vector<16x1xf32>
    %68 = vector.broadcast %67 : vector<16x1xf32> to vector<16x128xf32>
    %69 = arith.mulf %66, %68 : vector<16x128xf32>
    %70 = vector.extract_strided_slice %6 {offsets = [0, 384], sizes = [16, 128], strides = [1, 1]} : vector<16x1536xf32> to vector<16x128xf32>
    %cst_20 = arith.constant 0.176776692 : f32
    %71 = vector.broadcast %cst_20 : f32 to vector<16x128xf32>
    %72 = arith.mulf %70, %71 : vector<16x128xf32>
    %73 = vector.extract_strided_slice %6 {offsets = [0, 896], sizes = [16, 128], strides = [1, 1]} : vector<16x1536xf32> to vector<16x128xf32>
    %74 = vector.extract_strided_slice %6 {offsets = [0, 1408], sizes = [16, 128], strides = [1, 1]} : vector<16x1536xf32> to vector<16x128xf32>
    %75 = arith.truncf %72 : vector<16x128xf32> to vector<16x128xbf16>
    %76 = arith.truncf %73 : vector<16x128xf32> to vector<16x128xbf16>
    %cst_21 = arith.constant dense<0.000000e+00> : vector<16x16xf32>
    %77 = tpu.matmul %75, %76, %cst_21 {dimension_numbers = #tpu.dot_dimension_numbers<[1], [1], [0], [0], [0, 0, 1, 0], [], []>} : vector<16x128xbf16>, vector<16x128xbf16>, vector<16x16xf32> -> vector<16x16xf32>
    %cst_22 = arith.constant dense<0xFF800000> : vector<16xf32>
    %78 = vector.multi_reduction <maximumf>, %77, %cst_22 [1] : vector<16x16xf32> to vector<16xf32>
    %79 = vector.shape_cast %78 : vector<16xf32> to vector<16x1xf32>
    %80 = vector.broadcast %79 : vector<16x1xf32> to vector<16x16xf32>
    %81 = arith.subf %77, %80 : vector<16x16xf32>
    %82 = math.exp %81 : vector<16x16xf32>
    %cst_23 = arith.constant dense<0.000000e+00> : vector<16xf32>
    %83 = vector.multi_reduction <add>, %82, %cst_23 [1] : vector<16x16xf32> to vector<16xf32>
    %84 = vector.shape_cast %83 : vector<16xf32> to vector<16x1xf32>
    %85 = arith.truncf %82 : vector<16x16xf32> to vector<16x16xbf16>
    %86 = arith.truncf %74 : vector<16x128xf32> to vector<16x128xbf16>
    %cst_24 = arith.constant dense<0.000000e+00> : vector<16x128xf32>
    %87 = tpu.matmul %85, %86, %cst_24 {dimension_numbers = #tpu.dot_dimension_numbers<[1], [0], [0], [1], [0, 0, 1, 1], [], []>} : vector<16x16xbf16>, vector<16x128xbf16>, vector<16x128xf32> -> vector<16x128xf32>
    %88 = tpu.reciprocal %84 {approx = true} : vector<16x1xf32> -> vector<16x1xf32>
    %89 = vector.broadcast %88 : vector<16x1xf32> to vector<16x128xf32>
    %90 = arith.mulf %87, %89 : vector<16x128xf32>
    %91 = tpu.concatenate %27, %48, %69, %90 in 1 : vector<16x128xf32>, vector<16x128xf32>, vector<16x128xf32>, vector<16x128xf32> -> vector<16x512xf32>
    %92 = arith.truncf %91 : vector<16x512xf32> to vector<16x512xbf16>
    %c0_25 = arith.constant 0 : index
    %c0_26 = arith.constant 0 : index
    %93 = vector.load %arg4[%c0_25, %c0_26] : memref<512x128xbf16, #tpu.memory_space<vmem>>, vector<512x128xbf16>
    %cst_27 = arith.constant dense<0.000000e+00> : vector<16x128xf32>
    %94 = tpu.matmul %92, %93, %cst_27 {dimension_numbers = #tpu.dot_dimension_numbers<[1], [0], [0], [1], [0, 0, 1, 1], [], []>} : vector<16x512xbf16>, vector<512x128xbf16>, vector<16x128xf32> -> vector<16x128xf32>
    %c0_28 = arith.constant 0 : index
    %c0_29 = arith.constant 0 : index
    %95 = vector.load %arg5[%c0_28, %c0_29] : memref<1x128xf32, #tpu.memory_space<vmem>>, vector<1x128xf32>
    %96 = vector.broadcast %95 : vector<1x128xf32> to vector<16x128xf32>
    %97 = arith.addf %94, %96 : vector<16x128xf32>
    %98 = arith.addf %0, %97 : vector<16x128xf32>
    %c0_30 = arith.constant 0 : index
    %c0_31 = arith.constant 0 : index
    %99 = vector.load %arg10[%c0_30, %c0_31] : memref<1x128xf32, #tpu.memory_space<vmem>>, vector<1x128xf32>
    %c0_32 = arith.constant 0 : index
    %c0_33 = arith.constant 0 : index
    %100 = vector.load %arg11[%c0_32, %c0_33] : memref<1x128xf32, #tpu.memory_space<vmem>>, vector<1x128xf32>
    %cst_34 = arith.constant dense<0.000000e+00> : vector<16xf32>
    %101 = vector.multi_reduction <add>, %98, %cst_34 [1] : vector<16x128xf32> to vector<16xf32>
    %102 = vector.shape_cast %101 : vector<16xf32> to vector<16x1xf32>
    %cst_35 = arith.constant 1.280000e+02 : f32
    %103 = vector.broadcast %cst_35 : f32 to vector<16x1xf32>
    %104 = arith.divf %102, %103 : vector<16x1xf32>
    %105 = vector.broadcast %104 : vector<16x1xf32> to vector<16x128xf32>
    %106 = arith.subf %98, %105 : vector<16x128xf32>
    %107 = arith.mulf %106, %106 : vector<16x128xf32>
    %cst_36 = arith.constant dense<0.000000e+00> : vector<16xf32>
    %108 = vector.multi_reduction <add>, %107, %cst_36 [1] : vector<16x128xf32> to vector<16xf32>
    %109 = vector.shape_cast %108 : vector<16xf32> to vector<16x1xf32>
    %cst_37 = arith.constant 1.280000e+02 : f32
    %110 = vector.broadcast %cst_37 : f32 to vector<16x1xf32>
    %111 = arith.divf %109, %110 : vector<16x1xf32>
    %cst_38 = arith.constant 9.99999974E-6 : f32
    %112 = vector.broadcast %cst_38 : f32 to vector<16x1xf32>
    %113 = arith.addf %111, %112 : vector<16x1xf32>
    %114 = math.rsqrt %113 : vector<16x1xf32>
    %115 = vector.broadcast %114 : vector<16x1xf32> to vector<16x128xf32>
    %116 = arith.mulf %106, %115 : vector<16x128xf32>
    %117 = vector.broadcast %99 : vector<1x128xf32> to vector<16x128xf32>
    %118 = arith.mulf %116, %117 : vector<16x128xf32>
    %119 = vector.broadcast %100 : vector<1x128xf32> to vector<16x128xf32>
    %120 = arith.addf %118, %119 : vector<16x128xf32>
    %121 = arith.truncf %120 : vector<16x128xf32> to vector<16x128xbf16>
    %c0_39 = arith.constant 0 : index
    %c0_40 = arith.constant 0 : index
    %122 = vector.load %arg6[%c0_39, %c0_40] : memref<128x256xbf16, #tpu.memory_space<vmem>>, vector<128x256xbf16>
    %cst_41 = arith.constant dense<0.000000e+00> : vector<16x256xf32>
    %123 = tpu.matmul %121, %122, %cst_41 {dimension_numbers = #tpu.dot_dimension_numbers<[1], [0], [0], [1], [0, 0, 1, 1], [], []>} : vector<16x128xbf16>, vector<128x256xbf16>, vector<16x256xf32> -> vector<16x256xf32>
    %c0_42 = arith.constant 0 : index
    %c0_43 = arith.constant 0 : index
    %124 = vector.load %arg7[%c0_42, %c0_43] : memref<1x256xf32, #tpu.memory_space<vmem>>, vector<1x256xf32>
    %125 = vector.broadcast %124 : vector<1x256xf32> to vector<16x256xf32>
    %126 = arith.addf %123, %125 : vector<16x256xf32>
    %cst_44 = arith.constant 0.000000e+00 : f32
    %127 = vector.broadcast %cst_44 : f32 to vector<16x256xf32>
    %128 = arith.maximumf %126, %127 : vector<16x256xf32>
    %129 = arith.truncf %128 : vector<16x256xf32> to vector<16x256xbf16>
    %c0_45 = arith.constant 0 : index
    %c0_46 = arith.constant 0 : index
    %130 = vector.load %arg8[%c0_45, %c0_46] : memref<256x128xbf16, #tpu.memory_space<vmem>>, vector<256x128xbf16>
    %cst_47 = arith.constant dense<0.000000e+00> : vector<16x128xf32>
    %131 = tpu.matmul %129, %130, %cst_47 {dimension_numbers = #tpu.dot_dimension_numbers<[1], [0], [0], [1], [0, 0, 1, 1], [], []>} : vector<16x256xbf16>, vector<256x128xbf16>, vector<16x128xf32> -> vector<16x128xf32>
    %c0_48 = arith.constant 0 : index
    %c0_49 = arith.constant 0 : index
    %132 = vector.load %arg9[%c0_48, %c0_49] : memref<1x128xf32, #tpu.memory_space<vmem>>, vector<1x128xf32>
    %133 = vector.broadcast %132 : vector<1x128xf32> to vector<16x128xf32>
    %134 = arith.addf %131, %133 : vector<16x128xf32>
    %135 = arith.addf %120, %134 : vector<16x128xf32>
    %c0_50 = arith.constant 0 : index
    %c0_51 = arith.constant 0 : index
    %136 = vector.load %arg12[%c0_50, %c0_51] : memref<1x128xf32, #tpu.memory_space<vmem>>, vector<1x128xf32>
    %c0_52 = arith.constant 0 : index
    %c0_53 = arith.constant 0 : index
    %137 = vector.load %arg13[%c0_52, %c0_53] : memref<1x128xf32, #tpu.memory_space<vmem>>, vector<1x128xf32>
    %cst_54 = arith.constant dense<0.000000e+00> : vector<16xf32>
    %138 = vector.multi_reduction <add>, %135, %cst_54 [1] : vector<16x128xf32> to vector<16xf32>
    %139 = vector.shape_cast %138 : vector<16xf32> to vector<16x1xf32>
    %cst_55 = arith.constant 1.280000e+02 : f32
    %140 = vector.broadcast %cst_55 : f32 to vector<16x1xf32>
    %141 = arith.divf %139, %140 : vector<16x1xf32>
    %142 = vector.broadcast %141 : vector<16x1xf32> to vector<16x128xf32>
    %143 = arith.subf %135, %142 : vector<16x128xf32>
    %144 = arith.mulf %143, %143 : vector<16x128xf32>
    %cst_56 = arith.constant dense<0.000000e+00> : vector<16xf32>
    %145 = vector.multi_reduction <add>, %144, %cst_56 [1] : vector<16x128xf32> to vector<16xf32>
    %146 = vector.shape_cast %145 : vector<16xf32> to vector<16x1xf32>
    %cst_57 = arith.constant 1.280000e+02 : f32
    %147 = vector.broadcast %cst_57 : f32 to vector<16x1xf32>
    %148 = arith.divf %146, %147 : vector<16x1xf32>
    %cst_58 = arith.constant 9.99999974E-6 : f32
    %149 = vector.broadcast %cst_58 : f32 to vector<16x1xf32>
    %150 = arith.addf %148, %149 : vector<16x1xf32>
    %151 = math.rsqrt %150 : vector<16x1xf32>
    %152 = vector.broadcast %151 : vector<16x1xf32> to vector<16x128xf32>
    %153 = arith.mulf %143, %152 : vector<16x128xf32>
    %154 = vector.broadcast %136 : vector<1x128xf32> to vector<16x128xf32>
    %155 = arith.mulf %153, %154 : vector<16x128xf32>
    %156 = vector.broadcast %137 : vector<1x128xf32> to vector<16x128xf32>
    %157 = arith.addf %155, %156 : vector<16x128xf32>
    %c0_59 = arith.constant 0 : index
    %c0_60 = arith.constant 0 : index
    %158 = vector.load %arg14[%c0_59, %c0_60] : memref<16x128xf32, #tpu.memory_space<vmem>>, vector<16x128xf32>
    tpu.vector_store %arg14[%c0_59, %c0_60], %157 {strides = array<i32>} : memref<16x128xf32, #tpu.memory_space<vmem>>, vector<16x128xf32>,
    return
  }
  func.func @transform_0(%arg0: i32) -> (i32, i32) {
    %c0_i32 = arith.constant 0 : i32
    %c0_i32_0 = arith.constant 0 : i32
    return %c0_i32, %arg0 : i32, i32
  }
  func.func @transform_1(%arg0: i32) -> (i32, i32) {
    %c0_i32 = arith.constant 0 : i32
    %c0_i32_0 = arith.constant 0 : i32
    %c0_i32_1 = arith.constant 0 : i32
    return %c0_i32, %c0_i32_0 : i32, i32
  }
  func.func @transform_2(%arg0: i32) -> (i32, i32) {
    %c0_i32 = arith.constant 0 : i32
    %c0_i32_0 = arith.constant 0 : i32
    %c0_i32_1 = arith.constant 0 : i32
    return %c0_i32, %c0_i32_0 : i32, i32
  }
  func.func @transform_3(%arg0: i32) -> (i32, i32) {
    %c0_i32 = arith.constant 0 : i32
    %c0_i32_0 = arith.constant 0 : i32
    %c0_i32_1 = arith.constant 0 : i32
    return %c0_i32, %c0_i32_0 : i32, i32
  }
  func.func @transform_4(%arg0: i32) -> (i32, i32) {
    %c0_i32 = arith.constant 0 : i32
    %c0_i32_0 = arith.constant 0 : i32
    %c0_i32_1 = arith.constant 0 : i32
    return %c0_i32, %c0_i32_0 : i32, i32
  }
  func.func @transform_5(%arg0: i32) -> (i32, i32) {
    %c0_i32 = arith.constant 0 : i32
    %c0_i32_0 = arith.constant 0 : i32
    %c0_i32_1 = arith.constant 0 : i32
    return %c0_i32, %c0_i32_0 : i32, i32
  }
  func.func @transform_6(%arg0: i32) -> (i32, i32) {
    %c0_i32 = arith.constant 0 : i32
    %c0_i32_0 = arith.constant 0 : i32
    %c0_i32_1 = arith.constant 0 : i32
    return %c0_i32, %c0_i32_0 : i32, i32
  }
  func.func @transform_7(%arg0: i32) -> (i32, i32) {
    %c0_i32 = arith.constant 0 : i32
    %c0_i32_0 = arith.constant 0 : i32
    %c0_i32_1 = arith.constant 0 : i32
    return %c0_i32, %c0_i32_0 : i32, i32
  }
  func.func @transform_8(%arg0: i32) -> (i32, i32) {
    %c0_i32 = arith.constant 0 : i32
    %c0_i32_0 = arith.constant 0 : i32
    %c0_i32_1 = arith.constant 0 : i32
    return %c0_i32, %c0_i32_0 : i32, i32
  }
  func.func @transform_9(%arg0: i32) -> (i32, i32) {
    %c0_i32 = arith.constant 0 : i32
    %c0_i32_0 = arith.constant 0 : i32
    %c0_i32_1 = arith.constant 0 : i32
    return %c0_i32, %c0_i32_0 : i32, i32
  }
  func.func @transform_10(%arg0: i32) -> (i32, i32) {
    %c0_i32 = arith.constant 0 : i32
    %c0_i32_0 = arith.constant 0 : i32
    %c0_i32_1 = arith.constant 0 : i32
    return %c0_i32, %c0_i32_0 : i32, i32
  }
  func.func @transform_11(%arg0: i32) -> (i32, i32) {
    %c0_i32 = arith.constant 0 : i32
    %c0_i32_0 = arith.constant 0 : i32
    %c0_i32_1 = arith.constant 0 : i32
    return %c0_i32, %c0_i32_0 : i32, i32
  }
  func.func @transform_12(%arg0: i32) -> (i32, i32) {
    %c0_i32 = arith.constant 0 : i32
    %c0_i32_0 = arith.constant 0 : i32
    %c0_i32_1 = arith.constant 0 : i32
    return %c0_i32, %c0_i32_0 : i32, i32
  }
  func.func @transform_13(%arg0: i32) -> (i32, i32) {
    %c0_i32 = arith.constant 0 : i32
    %c0_i32_0 = arith.constant 0 : i32
    return %c0_i32, %arg0 : i32, i32
  }
}

</mosaic_0001>

<llo_original>
// kernel: tpu_custom_call.1
$region0: #{tpu_custom_call.1}
  #allocation0 [shape = 'u32[]', space=smem, size = 0x4, offset = 0x4, fixed_abs, tag = 'smem constant byte address 0x4 - core index']
  #allocation1 [shape = 'u32[144,128]{1,0:T(1,128)}', space=vmem, size = 0x12000, scoped, tag = 'internal scratch']
  %s0 = inlined_call_operand.hbm [shape: f32[16,256], index: 0, kind: input, shape index: {}]
  %s1 = inlined_call_operand.hbm [shape: bf16[128,1536], index: 1, kind: input, shape index: {}]
  %s2 = inlined_call_operand.hbm [shape: f32[1,1536], index: 2, kind: input, shape index: {}]
  %s3 = inlined_call_operand.hbm [shape: bf16[512,128], index: 3, kind: input, shape index: {}]
  %s4 = inlined_call_operand.vmem [shape: f32[1,128], index: 4, kind: input, shape index: {}]
  %s5 = inlined_call_operand.hbm [shape: bf16[128,256], index: 5, kind: input, shape index: {}]
  %s6 = inlined_call_operand.vmem [shape: f32[1,256], index: 6, kind: input, shape index: {}]
  %s7 = inlined_call_operand.hbm [shape: bf16[256,128], index: 7, kind: input, shape index: {}]
  %s8 = inlined_call_operand.vmem [shape: f32[1,128], index: 8, kind: input, shape index: {}]
  %s9 = inlined_call_operand.vmem [shape: f32[1,128], index: 9, kind: input, shape index: {}]
  %s10 = inlined_call_operand.vmem [shape: f32[1,128], index: 10, kind: input, shape index: {}]
  %s11 = inlined_call_operand.vmem [shape: f32[1,128], index: 11, kind: input, shape index: {}]
  %s12 = inlined_call_operand.vmem [shape: f32[1,128], index: 12, kind: input, shape index: {}]
  %s13 = inlined_call_operand.hbm [shape: f32[16,256], index: 13, kind: output, shape index: {}]
  %s14 = sld [smem:[#allocation0]]
  $region109: #{tpu_custom_call.1} parent=0
    _
  %s16 = ssub.s32 1, %s14
  %s17 = scalar_select 0, %s16, %s14
  $region1: #{tpu_custom_call.1} parent=0
    #allocation2 [shape = 'u8[16384]{0}', space=vmem, size = 0x4000, scoped, tag = 'input window, operand 0']
    #allocation3 [shape = 's32[2]{0}', space=sflag, size = 0x8, scoped, tag = 'scoped memory for tpu_custom_call.1']
    #allocation4 [shape = 's32[2]{0}', space=sflag, size = 0x8, scoped, tag = 'scoped memory for tpu_custom_call.1']
    #allocation5 [shape = 'u8[393216]{0}', space=vmem, size = 0x60000, scoped, tag = 'input window, operand 1, single buffered']
    #allocation6 [shape = 's32[1]{0}', space=sflag, size = 0x4, scoped, tag = 'scoped memory for tpu_custom_call.1']
    #allocation7 [shape = 'u8[6144]{0}', space=vmem, size = 0x1800, scoped, tag = 'input window, operand 2, single buffered']
    #allocation8 [shape = 'u8[131072]{0}', space=vmem, size = 0x20000, scoped, tag = 'input window, operand 3, single buffered']
    #allocation9 [shape = 's32[1]{0}', space=sflag, size = 0x4, scoped, tag = 'scoped memory for tpu_custom_call.1']
    #allocation10 [shape = 'u8[65536]{0}', space=vmem, size = 0x10000, scoped, tag = 'input window, operand 5, single buffered']
    #allocation11 [shape = 'u8[65536]{0}', space=vmem, size = 0x10000, scoped, tag = 'input window, operand 7, single buffered']
    #allocation12 [shape = 's32[1]{0}', space=sflag, size = 0x4, scoped, tag = 'scoped memory for tpu_custom_call.1']
    #allocation13 [shape = 'u8[16384]{0}', space=vmem, size = 0x4000, scoped, tag = 'output window, operand 0']
    %18 = vsyncpa [#allocation3], 0
    %s19 = scalar_lea.sflag [#allocation3], 1
    %20 = vsyncpa %s19, 0
    %21 = vsyncpa [#allocation6], 0
    %22 = vsyncpa [#allocation9], 0
    %23 = vsyncpa [#allocation12], 0
    %24 = vsyncpa [#allocation4], 0
    %s25 = scalar_lea.sflag [#allocation4], 1
    %26 = vsyncpa %s25, 0
    loop: start=0, step=1, limit=4
    $region2: #{tpu_custom_call.1} parent=1 // loop_pre_header
      _
    $region3: #{tpu_custom_call.1} parent=1 // loop_header
      %s28 = sphi 0, %s32
      %p29 = scmp.ge.s32.totalorder %s28, 4
      %s38 = sphi 0, %s40
      %s41 = sphi 0, %s38
      %s42 = sphi 0, %s41
      %s58 = sphi 0, %s42
      %s62 = sphi 0, %s62
      %s64 = sphi 0, %s62
      %s65 = sphi 0, %s64
      %s79 = sphi 0, %s65
      %s83 = sphi 0, %s83
      %s85 = sphi 0, %s83
      %s86 = sphi 0, %s85
      %s100 = sphi 0, %s86
      %s104 = sphi 0, %s104
      %s106 = sphi 0, %s104
      %s107 = sphi 0, %s106
      %s121 = sphi 0, %s107
      %s125 = sphi 0, %s125
      %s127 = sphi 0, %s125
      %s128 = sphi 0, %s127
      %s142 = sphi 0, %s128
      %s146 = sphi 0, %s146
      %s148 = sphi 0, %s146
      %s149 = sphi 0, %s148
      %s163 = sphi 0, %s149
      %s167 = sphi 0, %s167
      %s169 = sphi 0, %s167
      %s170 = sphi 0, %s169
      %s184 = sphi 0, %s170
      %s188 = sphi 0, %s188
      %s190 = sphi 0, %s188
      %s191 = sphi 0, %s190
      %s205 = sphi 0, %s191
      %s209 = sphi 0, %s209
      %s211 = sphi 0, %s209
      %s212 = sphi 0, %s211
      %s226 = sphi 0, %s212
      %s230 = sphi 0, %s230
      %s232 = sphi 0, %s230
      %s233 = sphi 0, %s232
      %s247 = sphi 0, %s233
      %s251 = sphi 0, %s251
      %s253 = sphi 0, %s251
      %s254 = sphi 0, %s253
      %s268 = sphi 0, %s254
      %s272 = sphi 0, %s272
      %s274 = sphi 0, %s272
      %s275 = sphi 0, %s274
      %s289 = sphi 0, %s275
      %s293 = sphi 0, %s293
      %s295 = sphi 0, %s293
      %s296 = sphi 0, %s295
      %s310 = sphi 0, %s296
      %s316 = sphi 0, %s318
      %s319 = sphi 0, %s316
      %s320 = sphi 0, %s319
      %s336 = sphi 0, %s320
    $region4: #{tpu_custom_call.1} parent=1 // loop_header_branch
      %31 = sbr.rel (%p29) target = $region8
    $region5: #{tpu_custom_call.1} parent=1 // loop_body
      %s33 = ssub.s32 %s28, 1
      %s34 = ssub.s32 %s28, 2
      %s35 = sadd.s32 %s28, 1
      %s36 = ssub.s32 %s28, %s35
      %p37 = scmp.eq.s32.totalorder %s36, 0
      %s39 = sadd.s32 %s38, 1
      %s40 = scalar_select %p37, %s38, %s39
      %p43 = pneg %p37
      %p44 = scmp.eq.s32.totalorder %s28, 1
      %p45 = por %p43, %p44
      %p46 = scmp.ne.s32.totalorder %s38, %s41
      %p47 = scmp.eq.s32.totalorder %s28, 0
      %p48 = por %p46, %p47
      %p49 = scmp.ne.s32.totalorder %s38, %s41
      %p50 = scmp.eq.s32.totalorder %s33, 1
      %p51 = por %p49, %p50
      %p52 = scmp.ne.s32.totalorder %s41, %s42
      %p53 = scmp.eq.s32.totalorder %s33, 0
      %p54 = por %p52, %p53
      %p55 = scmp.ne.s32.totalorder %s41, %s42
      %p56 = scmp.eq.s32.totalorder %s34, 1
      %p57 = por %p55, %p56
      %p59 = scmp.ne.s32.totalorder %s42, %s58
      %p60 = scmp.eq.s32.totalorder %s34, 0
      %p61 = por %p59, %p60
      %s63 = sadd.s32 %s62, 1
      %p66 = scmp.eq.s32.totalorder %s28, 1
      %p67 = scmp.ne.s32.totalorder %s62, %s64
      %p68 = scmp.eq.s32.totalorder %s28, 0
      %p69 = por %p67, %p68
      %p70 = scmp.ne.s32.totalorder %s62, %s64
      %p71 = scmp.eq.s32.totalorder %s33, 1
      %p72 = por %p70, %p71
      %p73 = scmp.ne.s32.totalorder %s64, %s65
      %p74 = scmp.eq.s32.totalorder %s33, 0
      %p75 = por %p73, %p74
      %p76 = scmp.ne.s32.totalorder %s64, %s65
      %p77 = scmp.eq.s32.totalorder %s34, 1
      %p78 = por %p76, %p77
      %p80 = scmp.ne.s32.totalorder %s65, %s79
      %p81 = scmp.eq.s32.totalorder %s34, 0
      %p82 = por %p80, %p81
      %s84 = sadd.s32 %s83, 1
      %p87 = scmp.eq.s32.totalorder %s28, 1
      %p88 = scmp.ne.s32.totalorder %s83, %s85
      %p89 = scmp.eq.s32.totalorder %s28, 0
      %p90 = por %p88, %p89
      %p91 = scmp.ne.s32.totalorder %s83, %s85
      %p92 = scmp.eq.s32.totalorder %s33, 1
      %p93 = por %p91, %p92
      %p94 = scmp.ne.s32.totalorder %s85, %s86
      %p95 = scmp.eq.s32.totalorder %s33, 0
      %p96 = por %p94, %p95
      %p97 = scmp.ne.s32.totalorder %s85, %s86
      %p98 = scmp.eq.s32.totalorder %s34, 1
      %p99 = por %p97, %p98
      %p101 = scmp.ne.s32.totalorder %s86, %s100
      %p102 = scmp.eq.s32.totalorder %s34, 0
      %p103 = por %p101, %p102
      %s105 = sadd.s32 %s104, 1
      %p108 = scmp.eq.s32.totalorder %s28, 1
      %p109 = scmp.ne.s32.totalorder %s104, %s106
      %p110 = scmp.eq.s32.totalorder %s28, 0
      %p111 = por %p109, %p110
      %p112 = scmp.ne.s32.totalorder %s104, %s106
      %p113 = scmp.eq.s32.totalorder %s33, 1
      %p114 = por %p112, %p113
      %p115 = scmp.ne.s32.totalorder %s106, %s107
      %p116 = scmp.eq.s32.totalorder %s33, 0
      %p117 = por %p115, %p116
      %p118 = scmp.ne.s32.totalorder %s106, %s107
      %p119 = scmp.eq.s32.totalorder %s34, 1
      %p120 = por %p118, %p119
      %p122 = scmp.ne.s32.totalorder %s107, %s121
      %p123 = scmp.eq.s32.totalorder %s34, 0
      %p124 = por %p122, %p123
      %s126 = sadd.s32 %s125, 1
      %p129 = scmp.eq.s32.totalorder %s28, 1
      %p130 = scmp.ne.s32.totalorder %s125, %s127
      %p131 = scmp.eq.s32.totalorder %s28, 0
      %p132 = por %p130, %p131
      %p133 = scmp.ne.s32.totalorder %s125, %s127
      %p134 = scmp.eq.s32.totalorder %s33, 1
      %p135 = por %p133, %p134
      %p136 = scmp.ne.s32.totalorder %s127, %s128
      %p137 = scmp.eq.s32.totalorder %s33, 0
      %p138 = por %p136, %p137
      %p139 = scmp.ne.s32.totalorder %s127, %s128
      %p140 = scmp.eq.s32.totalorder %s34, 1
      %p141 = por %p139, %p140
      %p143 = scmp.ne.s32.totalorder %s128, %s142
      %p144 = scmp.eq.s32.totalorder %s34, 0
      %p145 = por %p143, %p144
      %s147 = sadd.s32 %s146, 1
      %p150 = scmp.eq.s32.totalorder %s28, 1
      %p151 = scmp.ne.s32.totalorder %s146, %s148
      %p152 = scmp.eq.s32.totalorder %s28, 0
      %p153 = por %p151, %p152
      %p154 = scmp.ne.s32.totalorder %s146, %s148
      %p155 = scmp.eq.s32.totalorder %s33, 1
      %p156 = por %p154, %p155
      %p157 = scmp.ne.s32.totalorder %s148, %s149
      %p158 = scmp.eq.s32.totalorder %s33, 0
      %p159 = por %p157, %p158
      %p160 = scmp.ne.s32.totalorder %s148, %s149
      %p161 = scmp.eq.s32.totalorder %s34, 1
      %p162 = por %p160, %p161
      %p164 = scmp.ne.s32.totalorder %s149, %s163
      %p165 = scmp.eq.s32.totalorder %s34, 0
      %p166 = por %p164, %p165
      %s168 = sadd.s32 %s167, 1
      %p171 = scmp.eq.s32.totalorder %s28, 1
      %p172 = scmp.ne.s32.totalorder %s167, %s169
      %p173 = scmp.eq.s32.totalorder %s28, 0
      %p174 = por %p172, %p173
      %p175 = scmp.ne.s32.totalorder %s167, %s169
      %p176 = scmp.eq.s32.totalorder %s33, 1
      %p177 = por %p175, %p176
      %p178 = scmp.ne.s32.totalorder %s169, %s170
      %p179 = scmp.eq.s32.totalorder %s33, 0
      %p180 = por %p178, %p179
      %p181 = scmp.ne.s32.totalorder %s169, %s170
      %p182 = scmp.eq.s32.totalorder %s34, 1
      %p183 = por %p181, %p182
      %p185 = scmp.ne.s32.totalorder %s170, %s184
      %p186 = scmp.eq.s32.totalorder %s34, 0
      %p187 = por %p185, %p186
      %s189 = sadd.s32 %s188, 1
      %p192 = scmp.eq.s32.totalorder %s28, 1
      %p193 = scmp.ne.s32.totalorder %s188, %s190
      %p194 = scmp.eq.s32.totalorder %s28, 0
      %p195 = por %p193, %p194
      %p196 = scmp.ne.s32.totalorder %s188, %s190
      %p197 = scmp.eq.s32.totalorder %s33, 1
      %p198 = por %p196, %p197
      %p199 = scmp.ne.s32.totalorder %s190, %s191
      %p200 = scmp.eq.s32.totalorder %s33, 0
      %p201 = por %p199, %p200
      %p202 = scmp.ne.s32.totalorder %s190, %s191
      %p203 = scmp.eq.s32.totalorder %s34, 1
      %p204 = por %p202, %p203
      %p206 = scmp.ne.s32.totalorder %s191, %s205
      %p207 = scmp.eq.s32.totalorder %s34, 0
      %p208 = por %p206, %p207
      %s210 = sadd.s32 %s209, 1
      %p213 = scmp.eq.s32.totalorder %s28, 1
      %p214 = scmp.ne.s32.totalorder %s209, %s211
      %p215 = scmp.eq.s32.totalorder %s28, 0
      %p216 = por %p214, %p215
      %p217 = scmp.ne.s32.totalorder %s209, %s211
      %p218 = scmp.eq.s32.totalorder %s33, 1
      %p219 = por %p217, %p218
      %p220 = scmp.ne.s32.totalorder %s211, %s212
      %p221 = scmp.eq.s32.totalorder %s33, 0
      %p222 = por %p220, %p221
      %p223 = scmp.ne.s32.totalorder %s211, %s212
      %p224 = scmp.eq.s32.totalorder %s34, 1
      %p225 = por %p223, %p224
      %p227 = scmp.ne.s32.totalorder %s212, %s226
      %p228 = scmp.eq.s32.totalorder %s34, 0
      %p229 = por %p227, %p228
      %s231 = sadd.s32 %s230, 1
      %p234 = scmp.eq.s32.totalorder %s28, 1
      %p235 = scmp.ne.s32.totalorder %s230, %s232
      %p236 = scmp.eq.s32.totalorder %s28, 0
      %p237 = por %p235, %p236
      %p238 = scmp.ne.s32.totalorder %s230, %s232
      %p239 = scmp.eq.s32.totalorder %s33, 1
      %p240 = por %p238, %p239
      %p241 = scmp.ne.s32.totalorder %s232, %s233
      %p242 = scmp.eq.s32.totalorder %s33, 0
      %p243 = por %p241, %p242
      %p244 = scmp.ne.s32.totalorder %s232, %s233
      %p245 = scmp.eq.s32.totalorder %s34, 1
      %p246 = por %p244, %p245
      %p248 = scmp.ne.s32.totalorder %s233, %s247
      %p249 = scmp.eq.s32.totalorder %s34, 0
      %p250 = por %p248, %p249
      %s252 = sadd.s32 %s251, 1
      %p255 = scmp.eq.s32.totalorder %s28, 1
      %p256 = scmp.ne.s32.totalorder %s251, %s253
      %p257 = scmp.eq.s32.totalorder %s28, 0
      %p258 = por %p256, %p257
      %p259 = scmp.ne.s32.totalorder %s251, %s253
      %p260 = scmp.eq.s32.totalorder %s33, 1
      %p261 = por %p259, %p260
      %p262 = scmp.ne.s32.totalorder %s253, %s254
      %p263 = scmp.eq.s32.totalorder %s33, 0
      %p264 = por %p262, %p263
      %p265 = scmp.ne.s32.totalorder %s253, %s254
      %p266 = scmp.eq.s32.totalorder %s34, 1
      %p267 = por %p265, %p266
      %p269 = scmp.ne.s32.totalorder %s254, %s268
      %p270 = scmp.eq.s32.totalorder %s34, 0
      %p271 = por %p269, %p270
      %s273 = sadd.s32 %s272, 1
      %p276 = scmp.eq.s32.totalorder %s28, 1
      %p277 = scmp.ne.s32.totalorder %s272, %s274
      %p278 = scmp.eq.s32.totalorder %s28, 0
      %p279 = por %p277, %p278
      %p280 = scmp.ne.s32.totalorder %s272, %s274
      %p281 = scmp.eq.s32.totalorder %s33, 1
      %p282 = por %p280, %p281
      %p283 = scmp.ne.s32.totalorder %s274, %s275
      %p284 = scmp.eq.s32.totalorder %s33, 0
      %p285 = por %p283, %p284
      %p286 = scmp.ne.s32.totalorder %s274, %s275
      %p287 = scmp.eq.s32.totalorder %s34, 1
      %p288 = por %p286, %p287
      %p290 = scmp.ne.s32.totalorder %s275, %s289
      %p291 = scmp.eq.s32.totalorder %s34, 0
      %p292 = por %p290, %p291
      %s294 = sadd.s32 %s293, 1
      %p297 = scmp.eq.s32.totalorder %s28, 1
      %p298 = scmp.ne.s32.totalorder %s293, %s295
      %p299 = scmp.eq.s32.totalorder %s28, 0
      %p300 = por %p298, %p299
      %p301 = scmp.ne.s32.totalorder %s293, %s295
      %p302 = scmp.eq.s32.totalorder %s33, 1
      %p303 = por %p301, %p302
      %p304 = scmp.ne.s32.totalorder %s295, %s296
      %p305 = scmp.eq.s32.totalorder %s33, 0
      %p306 = por %p304, %p305
      %p307 = scmp.ne.s32.totalorder %s295, %s296
      %p308 = scmp.eq.s32.totalorder %s34, 1
      %p309 = por %p307, %p308
      %p311 = scmp.ne.s32.totalorder %s296, %s310
      %p312 = scmp.eq.s32.totalorder %s34, 0
      %p313 = por %p311, %p312
      %s314 = ssub.s32 %s28, %s35
      %p315 = scmp.eq.s32.totalorder %s314, 0
      %s317 = sadd.s32 %s316, 1
      %s318 = scalar_select %p315, %s316, %s317
      %p321 = pneg %p315
      %p322 = scmp.eq.s32.totalorder %s28, 1
      %p323 = por %p321, %p322
      %p324 = scmp.ne.s32.totalorder %s316, %s319
      %p325 = scmp.eq.s32.totalorder %s28, 0
      %p326 = por %p324, %p325
      %p327 = scmp.ne.s32.totalorder %s316, %s319
      %p328 = scmp.eq.s32.totalorder %s33, 1
      %p329 = por %p327, %p328
      %p330 = scmp.ne.s32.totalorder %s319, %s320
      %p331 = scmp.eq.s32.totalorder %s33, 0
      %p332 = por %p330, %p331
      %p333 = scmp.ne.s32.totalorder %s319, %s320
      %p334 = scmp.eq.s32.totalorder %s34, 1
      %p335 = por %p333, %p334
      %p337 = scmp.ne.s32.totalorder %s320, %s336
      %p338 = scmp.eq.s32.totalorder %s34, 0
      %p339 = por %p337, %p338
      %p340 = scmp.le.s32.totalorder 1, %s28
      %p341 = scmp.lt.s32.totalorder %s28, 3
      %p342 = pnand %p340, %p341
      %p343 = pneg %p342
      // Predicated region
      $region9: #{tpu_custom_call.1} parent=5 // pred_check
        _
      $region10: #{tpu_custom_call.1} parent=5 // pred_check_branch
        %345 = sbr.rel (%p342) target = $region12
      $region11: #{tpu_custom_call.1} parent=5 // pred_region
        %s346 = ssub.s32 %s28, 1
        // Predicated region
        $region13: #{tpu_custom_call.1} parent=11 // pred_check
          %p347 = pneg %p75
        $region14: #{tpu_custom_call.1} parent=11 // pred_check_branch
          %349 = sbr.rel (%p347) target = $region16
        $region15: #{tpu_custom_call.1} parent=11 // pred_region
          %s351 = ssub.s32 12288, 12288
          %352 = vsyncadd [#allocation6], %s351
          %s353 = sshll.u32 [#allocation5], 4
          %s354 = int_to_ptr.vmem [resolvable:$true] %s353
          %359 = dma.hbm_to_vmem [thread:$0]  %s1, 12288, %s354, [#allocation6], 768, 768, 48
        $region16: #{tpu_custom_call.1} parent=11 // pred_fallthru
          _
        // Predicated region
        $region17: #{tpu_custom_call.1} parent=11 // pred_check
          %p360 = pneg %p96
        $region18: #{tpu_custom_call.1} parent=11 // pred_check_branch
          %362 = sbr.rel (%p360) target = $region20
        $region19: #{tpu_custom_call.1} parent=11 // pred_region
          %s364 = ssub.s32 192, 192
          %365 = vsyncadd [#allocation6], %s364
          %s367 = sshll.u32 [#allocation7], 4
          %s368 = int_to_ptr.vmem [resolvable:$true] %s367
          %370 = dma.hbm_to_vmem [thread:$0]  %s2, 192, %s368, [#allocation6]
        $region20: #{tpu_custom_call.1} parent=11 // pred_fallthru
          _
        // Predicated region
        $region21: #{tpu_custom_call.1} parent=11 // pred_check
          %p371 = pneg %p117
        $region22: #{tpu_custom_call.1} parent=11 // pred_check_branch
          %373 = sbr.rel (%p371) target = $region24
        $region23: #{tpu_custom_call.1} parent=11 // pred_region
          %s375 = ssub.s32 4096, 4096
          %376 = vsyncadd [#allocation9], %s375
          %s377 = sshll.u32 [#allocation8], 4
          %s378 = int_to_ptr.vmem [resolvable:$true] %s377
          %383 = dma.hbm_to_vmem [thread:$0]  %s3, 4096, %s378, [#allocation9], 64, 64, 4
        $region24: #{tpu_custom_call.1} parent=11 // pred_fallthru
          _
        // Predicated region
        $region25: #{tpu_custom_call.1} parent=11 // pred_check
          %p384 = pneg %p138
        $region26: #{tpu_custom_call.1} parent=11 // pred_check_branch
          %386 = sbr.rel (%p384) target = $region28
        $region27: #{tpu_custom_call.1} parent=11 // pred_region
          _
        $region28: #{tpu_custom_call.1} parent=11 // pred_fallthru
          _
        // Predicated region
        $region29: #{tpu_custom_call.1} parent=11 // pred_check
          %p387 = pneg %p159
        $region30: #{tpu_custom_call.1} parent=11 // pred_check_branch
          %389 = sbr.rel (%p387) target = $region32
        $region31: #{tpu_custom_call.1} parent=11 // pred_region
          %s391 = ssub.s32 2048, 2048
          %392 = vsyncadd [#allocation9], %s391
          %s393 = sshll.u32 [#allocation10], 4
          %s394 = int_to_ptr.vmem [resolvable:$true] %s393
          %399 = dma.hbm_to_vmem [thread:$0]  %s5, 2048, %s394, [#allocation9], 128, 128, 8
        $region32: #{tpu_custom_call.1} parent=11 // pred_fallthru
          _
        // Predicated region
        $region33: #{tpu_custom_call.1} parent=11 // pred_check
          %p400 = pneg %p180
        $region34: #{tpu_custom_call.1} parent=11 // pred_check_branch
          %402 = sbr.rel (%p400) target = $region36
        $region35: #{tpu_custom_call.1} parent=11 // pred_region
          _
        $region36: #{tpu_custom_call.1} parent=11 // pred_fallthru
          _
        // Predicated region
        $region37: #{tpu_custom_call.1} parent=11 // pred_check
          %p403 = pneg %p201
        $region38: #{tpu_custom_call.1} parent=11 // pred_check_branch
          %405 = sbr.rel (%p403) target = $region40
        $region39: #{tpu_custom_call.1} parent=11 // pred_region
          %s407 = ssub.s32 2048, 2048
          %408 = vsyncadd [#allocation12], %s407
          %s409 = sshll.u32 [#allocation11], 4
          %s410 = int_to_ptr.vmem [resolvable:$true] %s409
          %415 = dma.hbm_to_vmem [thread:$0]  %s7, 2048, %s410, [#allocation12], 64, 64, 4
        $region40: #{tpu_custom_call.1} parent=11 // pred_fallthru
          _
        // Predicated region
        $region41: #{tpu_custom_call.1} parent=11 // pred_check
          %p416 = pneg %p222
        $region42: #{tpu_custom_call.1} parent=11 // pred_check_branch
          %418 = sbr.rel (%p416) target = $region44
        $region43: #{tpu_custom_call.1} parent=11 // pred_region
          _
        $region44: #{tpu_custom_call.1} parent=11 // pred_fallthru
          _
        // Predicated region
        $region45: #{tpu_custom_call.1} parent=11 // pred_check
          %p419 = pneg %p243
        $region46: #{tpu_custom_call.1} parent=11 // pred_check_branch
          %421 = sbr.rel (%p419) target = $region48
        $region47: #{tpu_custom_call.1} parent=11 // pred_region
          _
        $region48: #{tpu_custom_call.1} parent=11 // pred_fallthru
          _
        // Predicated region
        $region49: #{tpu_custom_call.1} parent=11 // pred_check
          %p422 = pneg %p264
        $region50: #{tpu_custom_call.1} parent=11 // pred_check_branch
          %424 = sbr.rel (%p422) target = $region52
        $region51: #{tpu_custom_call.1} parent=11 // pred_region
          _
        $region52: #{tpu_custom_call.1} parent=11 // pred_fallthru
          _
        // Predicated region
        $region53: #{tpu_custom_call.1} parent=11 // pred_check
          %p425 = pneg %p285
        $region54: #{tpu_custom_call.1} parent=11 // pred_check_branch
          %427 = sbr.rel (%p425) target = $region56
        $region55: #{tpu_custom_call.1} parent=11 // pred_region
          _
        $region56: #{tpu_custom_call.1} parent=11 // pred_fallthru
          _
        // Predicated region
        $region57: #{tpu_custom_call.1} parent=11 // pred_check
          %p428 = pneg %p306
        $region58: #{tpu_custom_call.1} parent=11 // pred_check_branch
          %430 = sbr.rel (%p428) target = $region60
        $region59: #{tpu_custom_call.1} parent=11 // pred_region
          _
        $region60: #{tpu_custom_call.1} parent=11 // pred_fallthru
          _
      $region12: #{tpu_custom_call.1} parent=5 // pred_fallthru
        _
      %p431 = scmp.lt.s32.totalorder %s28, 2
      // Predicated region
      $region61: #{tpu_custom_call.1} parent=5 // pred_check
        %p432 = pneg %p431
      $region62: #{tpu_custom_call.1} parent=5 // pred_check_branch
        %434 = sbr.rel (%p432) target = $region64
      $region63: #{tpu_custom_call.1} parent=5 // pred_region
        // Predicated region
        $region65: #{tpu_custom_call.1} parent=63 // pred_check
          %p435 = pneg %p48
        $region66: #{tpu_custom_call.1} parent=63 // pred_check_branch
          %437 = sbr.rel (%p435) target = $region68
        $region67: #{tpu_custom_call.1} parent=63 // pred_region
          %s438 = sand.u32 %s38, 1
          %s439 = scalar_lea.sflag [#allocation3], %s438
          %s440 = sand.u32 %s38, 1
          %s441 = smul.addr %s440, 16
          %s442 = scalar_lea.vmem [#allocation2], %s441
          %s444 = ssub.s32 256, 256
          %445 = vsyncadd %s439, %s444
          %s446 = smul.addr %s28, 128
          %s447 = scalar_lea.hbm %s0, %s446
          %s448 = sshll.u32 %s442, 4
          %s449 = int_to_ptr.vmem [resolvable:$true] %s448
          %454 = dma.hbm_to_vmem [thread:$0]  %s447, 256, %s449, %s439, 256, 128, 8
        $region68: #{tpu_custom_call.1} parent=63 // pred_fallthru
          _
      $region64: #{tpu_custom_call.1} parent=5 // pred_fallthru
        _
      %p455 = scmp.le.s32.totalorder 1, %s28
      %p456 = scmp.lt.s32.totalorder %s28, 3
      %p457 = pnand %p455, %p456
      %p458 = pneg %p457
      // Predicated region
      $region69: #{tpu_custom_call.1} parent=5 // pred_check
        _
      $region70: #{tpu_custom_call.1} parent=5 // pred_check_branch
        %460 = sbr.rel (%p457) target = $region72
      $region71: #{tpu_custom_call.1} parent=5 // pred_region
        %s461 = ssub.s32 %s28, 1
        %s462 = sand.u32 %s41, 1
        %s463 = scalar_lea.sflag [#allocation3], %s462
        %s464 = sand.u32 %s41, 1
        %s465 = smul.addr %s464, 16
        %s466 = scalar_lea.vmem [#allocation2], %s465
        // Predicated region
        $region73: #{tpu_custom_call.1} parent=71 // pred_check
          %p467 = pneg %p54
        $region74: #{tpu_custom_call.1} parent=71 // pred_check_branch
          %469 = sbr.rel (%p467) target = $region76
        $region75: #{tpu_custom_call.1} parent=71 // pred_region
          %470 = dma.done %s463, 256
        $region76: #{tpu_custom_call.1} parent=71 // pred_fallthru
          _
        // Predicated region
        $region77: #{tpu_custom_call.1} parent=71 // pred_check
          %p471 = pneg %p75
        $region78: #{tpu_custom_call.1} parent=71 // pred_check_branch
          %473 = sbr.rel (%p471) target = $region80
        $region79: #{tpu_custom_call.1} parent=71 // pred_region
          %474 = dma.done [#allocation6], 12288
        $region80: #{tpu_custom_call.1} parent=71 // pred_fallthru
          _
        // Predicated region
        $region81: #{tpu_custom_call.1} parent=71 // pred_check
          %p475 = pneg %p96
        $region82: #{tpu_custom_call.1} parent=71 // pred_check_branch
          %477 = sbr.rel (%p475) target = $region84
        $region83: #{tpu_custom_call.1} parent=71 // pred_region
          %478 = dma.done [#allocation6], 192
        $region84: #{tpu_custom_call.1} parent=71 // pred_fallthru
          _
        // Predicated region
        $region85: #{tpu_custom_call.1} parent=71 // pred_check
          %p479 = pneg %p117
        $region86: #{tpu_custom_call.1} parent=71 // pred_check_branch
          %481 = sbr.rel (%p479) target = $region88
        $region87: #{tpu_custom_call.1} parent=71 // pred_region
          %482 = dma.done [#allocation9], 4096
        $region88: #{tpu_custom_call.1} parent=71 // pred_fallthru
          _
        // Predicated region
        $region89: #{tpu_custom_call.1} parent=71 // pred_check
          %p483 = pneg %p159
        $region90: #{tpu_custom_call.1} parent=71 // pred_check_branch
          %485 = sbr.rel (%p483) target = $region92
        $region91: #{tpu_custom_call.1} parent=71 // pred_region
          %486 = dma.done [#allocation9], 2048
        $region92: #{tpu_custom_call.1} parent=71 // pred_fallthru
          _
        // Predicated region
        $region93: #{tpu_custom_call.1} parent=71 // pred_check
          %p487 = pneg %p201
        $region94: #{tpu_custom_call.1} parent=71 // pred_check_branch
          %489 = sbr.rel (%p487) target = $region96
        $region95: #{tpu_custom_call.1} parent=71 // pred_region
          %490 = dma.done [#allocation12], 2048
        $region96: #{tpu_custom_call.1} parent=71 // pred_fallthru
          _
        %s491 = sand.u32 %s41, 1
        %s492 = scalar_lea.sflag [#allocation3], %s491
        %s493 = sand.u32 %s41, 1
        %s494 = smul.addr %s493, 16
        %s495 = scalar_lea.vmem [#allocation2], %s494
        %p496 = pneg %p54
        %p497 = pneg %p51
        %p498 = pneg %p75
        %p499 = pneg %p72
        %p500 = pneg %p96
        %p501 = pneg %p93
        %p502 = pneg %p117
        %p503 = pneg %p114
        %p504 = pneg %p138
        %p505 = pneg %p135
        %p506 = pneg %p159
        %p507 = pneg %p156
        %p508 = pneg %p180
        %p509 = pneg %p177
        %p510 = pneg %p201
        %p511 = pneg %p198
        %p512 = pneg %p222
        %p513 = pneg %p219
        %p514 = pneg %p243
        %p515 = pneg %p240
        %p516 = pneg %p264
        %p517 = pneg %p261
        %p518 = pneg %p285
        %p519 = pneg %p282
        %p520 = pneg %p306
        %p521 = pneg %p303
        %p522 = pneg %p332
        %p523 = pneg %p329
        %s524 = sand.u32 %s319, 1
        %s525 = scalar_lea.sflag [#allocation4], %s524
        %s526 = sand.u32 %s319, 1
        %s527 = smul.addr %s526, 16
        %s528 = scalar_lea.vmem [#allocation13], %s527
        %v530 = vld [vmem:[%s466] sm:$0xff]
        %v531 = vld [vmem:[%s466 + $0x8] sm:$0xff]
        %v532 = vpack.c.bf16 %v531, %v530
        %v533 = vld [vmem:[#allocation5] sm:$0xff]
        %v534 = vld [vmem:[#allocation5 + $0x8] sm:$0xff]
        %v535 = vld [vmem:[#allocation5 + $0x10] sm:$0xff]
        %v536 = vld [vmem:[#allocation5 + $0x18] sm:$0xff]
        %v537 = vld [vmem:[#allocation5 + $0x20] sm:$0xff]
        %v538 = vld [vmem:[#allocation5 + $0x28] sm:$0xff]
        %v539 = vld [vmem:[#allocation5 + $0x30] sm:$0xff]
        %v540 = vld [vmem:[#allocation5 + $0x38] sm:$0xff]
        %v541 = vld [vmem:[#allocation5 + $0x40] sm:$0xff]
        %v542 = vld [vmem:[#allocation5 + $0x48] sm:$0xff]
        %v543 = vld [vmem:[#allocation5 + $0x50] sm:$0xff]
        %v544 = vld [vmem:[#allocation5 + $0x58] sm:$0xff]
        %v545 = vld [vmem:[#allocation5 + $0x60] sm:$0xff]
        %v546 = vld [vmem:[#allocation5 + $0x68] sm:$0xff]
        %v547 = vld [vmem:[#allocation5 + $0x70] sm:$0xff]
        %v548 = vld [vmem:[#allocation5 + $0x78] sm:$0xff]
        %v549 = vld [vmem:[#allocation5 + $0x80] sm:$0xff]
        %v550 = vld [vmem:[#allocation5 + $0x88] sm:$0xff]
        %v551 = vld [vmem:[#allocation5 + $0x90] sm:$0xff]
        %v552 = vld [vmem:[#allocation5 + $0x98] sm:$0xff]
        %v553 = vld [vmem:[#allocation5 + $0xa0] sm:$0xff]
        %v554 = vld [vmem:[#allocation5 + $0xa8] sm:$0xff]
        %v555 = vld [vmem:[#allocation5 + $0xb0] sm:$0xff]
        %v556 = vld [vmem:[#allocation5 + $0xb8] sm:$0xff]
        %v557 = vld [vmem:[#allocation5 + $0xc0] sm:$0xff]
        %v558 = vld [vmem:[#allocation5 + $0xc8] sm:$0xff]
        %v559 = vld [vmem:[#allocation5 + $0xd0] sm:$0xff]
        %v560 = vld [vmem:[#allocation5 + $0xd8] sm:$0xff]
        %v561 = vld [vmem:[#allocation5 + $0xe0] sm:$0xff]
        %v562 = vld [vmem:[#allocation5 + $0xe8] sm:$0xff]
        %v563 = vld [vmem:[#allocation5 + $0xf0] sm:$0xff]
        %v564 = vld [vmem:[#allocation5 + $0xf8] sm:$0xff]
        %v565 = vld [vmem:[#allocation5 + $0x100] sm:$0xff]
        %v566 = vld [vmem:[#allocation5 + $0x108] sm:$0xff]
        %v567 = vld [vmem:[#allocation5 + $0x110] sm:$0xff]
        %v568 = vld [vmem:[#allocation5 + $0x118] sm:$0xff]
        %v569 = vld [vmem:[#allocation5 + $0x120] sm:$0xff]
        %v570 = vld [vmem:[#allocation5 + $0x128] sm:$0xff]
        %v571 = vld [vmem:[#allocation5 + $0x130] sm:$0xff]
        %v572 = vld [vmem:[#allocation5 + $0x138] sm:$0xff]
        %v573 = vld [vmem:[#allocation5 + $0x140] sm:$0xff]
        %v574 = vld [vmem:[#allocation5 + $0x148] sm:$0xff]
        %v575 = vld [vmem:[#allocation5 + $0x150] sm:$0xff]
        %v576 = vld [vmem:[#allocation5 + $0x158] sm:$0xff]
        %v577 = vld [vmem:[#allocation5 + $0x160] sm:$0xff]
        %v578 = vld [vmem:[#allocation5 + $0x168] sm:$0xff]
        %v579 = vld [vmem:[#allocation5 + $0x170] sm:$0xff]
        %v580 = vld [vmem:[#allocation5 + $0x178] sm:$0xff]
        %v581 = vld [vmem:[#allocation5 + $0x180] sm:$0xff]
        %v582 = vld [vmem:[#allocation5 + $0x188] sm:$0xff]
        %v583 = vld [vmem:[#allocation5 + $0x190] sm:$0xff]
        %v584 = vld [vmem:[#allocation5 + $0x198] sm:$0xff]
        %v585 = vld [vmem:[#allocation5 + $0x1a0] sm:$0xff]
        %v586 = vld [vmem:[#allocation5 + $0x1a8] sm:$0xff]
        %v587 = vld [vmem:[#allocation5 + $0x1b0] sm:$0xff]
        %v588 = vld [vmem:[#allocation5 + $0x1b8] sm:$0xff]
        %v589 = vld [vmem:[#allocation5 + $0x1c0] sm:$0xff]
        %v590 = vld [vmem:[#allocation5 + $0x1c8] sm:$0xff]
        %v591 = vld [vmem:[#allocation5 + $0x1d0] sm:$0xff]
        %v592 = vld [vmem:[#allocation5 + $0x1d8] sm:$0xff]
        %v593 = vld [vmem:[#allocation5 + $0x1e0] sm:$0xff]
        %v594 = vld [vmem:[#allocation5 + $0x1e8] sm:$0xff]
        %v595 = vld [vmem:[#allocation5 + $0x1f0] sm:$0xff]
        %v596 = vld [vmem:[#allocation5 + $0x1f8] sm:$0xff]
        %v597 = vld [vmem:[#allocation5 + $0x200] sm:$0xff]
        %v598 = vld [vmem:[#allocation5 + $0x208] sm:$0xff]
        %v599 = vld [vmem:[#allocation5 + $0x210] sm:$0xff]
        %v600 = vld [vmem:[#allocation5 + $0x218] sm:$0xff]
        %v601 = vld [vmem:[#allocation5 + $0x220] sm:$0xff]
        %v602 = vld [vmem:[#allocation5 + $0x228] sm:$0xff]
        %v603 = vld [vmem:[#allocation5 + $0x230] sm:$0xff]
        %v604 = vld [vmem:[#allocation5 + $0x238] sm:$0xff]
        %v605 = vld [vmem:[#allocation5 + $0x240] sm:$0xff]
        %v606 = vld [vmem:[#allocation5 + $0x248] sm:$0xff]
        %v607 = vld [vmem:[#allocation5 + $0x250] sm:$0xff]
        %v608 = vld [vmem:[#allocation5 + $0x258] sm:$0xff]
        %v609 = vld [vmem:[#allocation5 + $0x260] sm:$0xff]
        %v610 = vld [vmem:[#allocation5 + $0x268] sm:$0xff]
        %v611 = vld [vmem:[#allocation5 + $0x270] sm:$0xff]
        %v612 = vld [vmem:[#allocation5 + $0x278] sm:$0xff]
        %v613 = vld [vmem:[#allocation5 + $0x280] sm:$0xff]
        %v614 = vld [vmem:[#allocation5 + $0x288] sm:$0xff]
        %v615 = vld [vmem:[#allocation5 + $0x290] sm:$0xff]
        %v616 = vld [vmem:[#allocation5 + $0x298] sm:$0xff]
        %v617 = vld [vmem:[#allocation5 + $0x2a0] sm:$0xff]
        %v618 = vld [vmem:[#allocation5 + $0x2a8] sm:$0xff]
        %v619 = vld [vmem:[#allocation5 + $0x2b0] sm:$0xff]
        %v620 = vld [vmem:[#allocation5 + $0x2b8] sm:$0xff]
        %v621 = vld [vmem:[#allocation5 + $0x2c0] sm:$0xff]
        %v622 = vld [vmem:[#allocation5 + $0x2c8] sm:$0xff]
        %v623 = vld [vmem:[#allocation5 + $0x2d0] sm:$0xff]
        %v624 = vld [vmem:[#allocation5 + $0x2d8] sm:$0xff]
        %v625 = vld [vmem:[#allocation5 + $0x2e0] sm:$0xff]
        %v626 = vld [vmem:[#allocation5 + $0x2e8] sm:$0xff]
        %v627 = vld [vmem:[#allocation5 + $0x2f0] sm:$0xff]
        %v628 = vld [vmem:[#allocation5 + $0x2f8] sm:$0xff]
        %v629 = vld [vmem:[#allocation7] sm:$0xff]
        %v630 = vld [vmem:[#allocation7 + $0x8] sm:$0xf]
        %v633 = vlaneseq
        %v634 = vshrl.u32 %v633, 7
        %v635 = vsub.s32 0, %v634
        %v636 = vrot.slane %v629, %v635
        %v637 = vlaneseq
        %v638 = vshrl.u32 %v637, 7
        %v639 = vsub.s32 1, %v638
        %v640 = vrot.slane %v629, %v639
        %v641 = vlaneseq
        %v642 = vshrl.u32 %v641, 7
        %v643 = vsub.s32 2, %v642
        %v644 = vrot.slane %v629, %v643
        %v645 = vlaneseq
        %v646 = vshrl.u32 %v645, 7
        %v647 = vsub.s32 3, %v646
        %v648 = vrot.slane %v629, %v647
        %v649 = vlaneseq
        %v650 = vshrl.u32 %v649, 7
        %v651 = vsub.s32 4, %v650
        %v652 = vrot.slane %v629, %v651
        %v653 = vlaneseq
        %v654 = vshrl.u32 %v653, 7
        %v655 = vsub.s32 5, %v654
        %v656 = vrot.slane %v629, %v655
        %v657 = vlaneseq
        %v658 = vshrl.u32 %v657, 7
        %v659 = vsub.s32 6, %v658
        %v660 = vrot.slane %v629, %v659
        %v661 = vlaneseq
        %v662 = vshrl.u32 %v661, 7
        %v663 = vsub.s32 7, %v662
        %v664 = vrot.slane %v629, %v663
        %v665 = vlaneseq
        %v666 = vshrl.u32 %v665, 7
        %v667 = vsub.s32 0, %v666
        %v668 = vrot.slane %v630, %v667
        %v669 = vlaneseq
        %v670 = vshrl.u32 %v669, 7
        %v671 = vsub.s32 1, %v670
        %v672 = vrot.slane %v630, %v671
        %v673 = vlaneseq
        %v674 = vshrl.u32 %v673, 7
        %v675 = vsub.s32 2, %v674
        %v676 = vrot.slane %v630, %v675
        %v677 = vlaneseq
        %v678 = vshrl.u32 %v677, 7
        %v679 = vsub.s32 3, %v678
        %v680 = vrot.slane %v630, %v679
        %v789 = vunpack.c.l.b16 %v533
        %v790 = vunpack.c.h.b16 %v533
        %v791 = vunpack.c.l.b16 %v534
        %v792 = vunpack.c.h.b16 %v534
        %v793 = vunpack.c.l.b16 %v535
        %v794 = vunpack.c.h.b16 %v535
        %v795 = vunpack.c.l.b16 %v536
        %v796 = vunpack.c.h.b16 %v536
        %v797 = vunpack.c.l.b16 %v537
        %v798 = vunpack.c.h.b16 %v537
        %v799 = vunpack.c.l.b16 %v538
        %v800 = vunpack.c.h.b16 %v538
        %v801 = vunpack.c.l.b16 %v539
        %v802 = vunpack.c.h.b16 %v539
        %v803 = vunpack.c.l.b16 %v540
        %v804 = vunpack.c.h.b16 %v540
        %v805 = vunpack.c.l.b16 %v541
        %v806 = vunpack.c.h.b16 %v541
        %v807 = vunpack.c.l.b16 %v542
        %v808 = vunpack.c.h.b16 %v542
        %v809 = vunpack.c.l.b16 %v543
        %v810 = vunpack.c.h.b16 %v543
        %v811 = vunpack.c.l.b16 %v544
        %v812 = vunpack.c.h.b16 %v544
        %v813 = vunpack.c.l.b16 %v545
        %v814 = vunpack.c.h.b16 %v545
        %v815 = vunpack.c.l.b16 %v546
        %v816 = vunpack.c.h.b16 %v546
        %v817 = vunpack.c.l.b16 %v547
        %v818 = vunpack.c.h.b16 %v547
        %v819 = vunpack.c.l.b16 %v548
        %v820 = vunpack.c.h.b16 %v548
        %v821 = vunpack.c.l.b16 %v549
        %v822 = vunpack.c.h.b16 %v549
        %v823 = vunpack.c.l.b16 %v550
        %v824 = vunpack.c.h.b16 %v550
        %v825 = vunpack.c.l.b16 %v551
        %v826 = vunpack.c.h.b16 %v551
        %v827 = vunpack.c.l.b16 %v552
        %v828 = vunpack.c.h.b16 %v552
        %v829 = vunpack.c.l.b16 %v553
        %v830 = vunpack.c.h.b16 %v553
        %v831 = vunpack.c.l.b16 %v554
        %v832 = vunpack.c.h.b16 %v554
        %v833 = vunpack.c.l.b16 %v555
        %v834 = vunpack.c.h.b16 %v555
        %v835 = vunpack.c.l.b16 %v556
        %v836 = vunpack.c.h.b16 %v556
        %v837 = vunpack.c.l.b16 %v557
        %v838 = vunpack.c.h.b16 %v557
        %v839 = vunpack.c.l.b16 %v558
        %v840 = vunpack.c.h.b16 %v558
        %v841 = vunpack.c.l.b16 %v559
        %v842 = vunpack.c.h.b16 %v559
        %v843 = vunpack.c.l.b16 %v560
        %v844 = vunpack.c.h.b16 %v560
        %v845 = vunpack.c.l.b16 %v561
        %v846 = vunpack.c.h.b16 %v561
        %v847 = vunpack.c.l.b16 %v562
        %v848 = vunpack.c.h.b16 %v562
        %v849 = vunpack.c.l.b16 %v563
        %v850 = vunpack.c.h.b16 %v563
        %v851 = vunpack.c.l.b16 %v564
        %v852 = vunpack.c.h.b16 %v564
        %v853 = vunpack.c.l.b16 %v565
        %v854 = vunpack.c.h.b16 %v565
        %v855 = vunpack.c.l.b16 %v566
        %v856 = vunpack.c.h.b16 %v566
        %v857 = vunpack.c.l.b16 %v567
        %v858 = vunpack.c.h.b16 %v567
        %v859 = vunpack.c.l.b16 %v568
        %v860 = vunpack.c.h.b16 %v568
        %v861 = vunpack.c.l.b16 %v569
        %v862 = vunpack.c.h.b16 %v569
        %v863 = vunpack.c.l.b16 %v570
        %v864 = vunpack.c.h.b16 %v570
        %v865 = vunpack.c.l.b16 %v571
        %v866 = vunpack.c.h.b16 %v571
        %v867 = vunpack.c.l.b16 %v572
        %v868 = vunpack.c.h.b16 %v572
        %v869 = vunpack.c.l.b16 %v573
        %v870 = vunpack.c.h.b16 %v573
        %v871 = vunpack.c.l.b16 %v574
        %v872 = vunpack.c.h.b16 %v574
        %v873 = vunpack.c.l.b16 %v575
        %v874 = vunpack.c.h.b16 %v575
        %v875 = vunpack.c.l.b16 %v576
        %v876 = vunpack.c.h.b16 %v576
        %v877 = vunpack.c.l.b16 %v577
        %v878 = vunpack.c.h.b16 %v577
        %v879 = vunpack.c.l.b16 %v578
        %v880 = vunpack.c.h.b16 %v578
        %v881 = vunpack.c.l.b16 %v579
        %v882 = vunpack.c.h.b16 %v579
        %v883 = vunpack.c.l.b16 %v580
        %v884 = vunpack.c.h.b16 %v580
        %v885 = vunpack.c.l.b16 %v581
        %v886 = vunpack.c.h.b16 %v581
        %v887 = vunpack.c.l.b16 %v582
        %v888 = vunpack.c.h.b16 %v582
        %v889 = vunpack.c.l.b16 %v583
        %v890 = vunpack.c.h.b16 %v583
        %v891 = vunpack.c.l.b16 %v584
        %v892 = vunpack.c.h.b16 %v584
        %v893 = vunpack.c.l.b16 %v585
        %v894 = vunpack.c.h.b16 %v585
        %v895 = vunpack.c.l.b16 %v586
        %v896 = vunpack.c.h.b16 %v586
        %v897 = vunpack.c.l.b16 %v587
        %v898 = vunpack.c.h.b16 %v587
        %v899 = vunpack.c.l.b16 %v588
        %v900 = vunpack.c.h.b16 %v588
        %v901 = vunpack.c.l.b16 %v589
        %v902 = vunpack.c.h.b16 %v589
        %v903 = vunpack.c.l.b16 %v590
        %v904 = vunpack.c.h.b16 %v590
        %v905 = vunpack.c.l.b16 %v591
        %v906 = vunpack.c.h.b16 %v591
        %v907 = vunpack.c.l.b16 %v592
        %v908 = vunpack.c.h.b16 %v592
        %v909 = vunpack.c.l.b16 %v593
        %v910 = vunpack.c.h.b16 %v593
        %v911 = vunpack.c.l.b16 %v594
        %v912 = vunpack.c.h.b16 %v594
        %v913 = vunpack.c.l.b16 %v595
        %v914 = vunpack.c.h.b16 %v595
        %v915 = vunpack.c.l.b16 %v596
        %v916 = vunpack.c.h.b16 %v596
        %v917 = vunpack.c.l.b16 %v597
        %v918 = vunpack.c.h.b16 %v597
        %v919 = vunpack.c.l.b16 %v598
        %v920 = vunpack.c.h.b16 %v598
        %v921 = vunpack.c.l.b16 %v599
        %v922 = vunpack.c.h.b16 %v599
        %v923 = vunpack.c.l.b16 %v600
        %v924 = vunpack.c.h.b16 %v600
        %v925 = vunpack.c.l.b16 %v601
        %v926 = vunpack.c.h.b16 %v601
        %v927 = vunpack.c.l.b16 %v602
        %v928 = vunpack.c.h.b16 %v602
        %v929 = vunpack.c.l.b16 %v603
        %v930 = vunpack.c.h.b16 %v603
        %v931 = vunpack.c.l.b16 %v604
        %v932 = vunpack.c.h.b16 %v604
        %v933 = vunpack.c.l.b16 %v605
        %v934 = vunpack.c.h.b16 %v605
        %v935 = vunpack.c.l.b16 %v606
        %v936 = vunpack.c.h.b16 %v606
        %v937 = vunpack.c.l.b16 %v607
        %v938 = vunpack.c.h.b16 %v607
        %v939 = vunpack.c.l.b16 %v608
        %v940 = vunpack.c.h.b16 %v608
        %v941 = vunpack.c.l.b16 %v609
        %v942 = vunpack.c.h.b16 %v609
        %v943 = vunpack.c.l.b16 %v610
        %v944 = vunpack.c.h.b16 %v610
        %v945 = vunpack.c.l.b16 %v611
        %v946 = vunpack.c.h.b16 %v611
        %v947 = vunpack.c.l.b16 %v612
        %v948 = vunpack.c.h.b16 %v612
        %v949 = vunpack.c.l.b16 %v613
        %v950 = vunpack.c.h.b16 %v613
        %v951 = vunpack.c.l.b16 %v614
        %v952 = vunpack.c.h.b16 %v614
        %v953 = vunpack.c.l.b16 %v615
        %v954 = vunpack.c.h.b16 %v615
        %v955 = vunpack.c.l.b16 %v616
        %v956 = vunpack.c.h.b16 %v616
        %v957 = vunpack.c.l.b16 %v617
        %v958 = vunpack.c.h.b16 %v617
        %v959 = vunpack.c.l.b16 %v618
        %v960 = vunpack.c.h.b16 %v618
        %v961 = vunpack.c.l.b16 %v619
        %v962 = vunpack.c.h.b16 %v619
        %v963 = vunpack.c.l.b16 %v620
        %v964 = vunpack.c.h.b16 %v620
        %v965 = vunpack.c.l.b16 %v621
        %v966 = vunpack.c.h.b16 %v621
        %v967 = vunpack.c.l.b16 %v622
        %v968 = vunpack.c.h.b16 %v622
        %v969 = vunpack.c.l.b16 %v623
        %v970 = vunpack.c.h.b16 %v623
        %v971 = vunpack.c.l.b16 %v624
        %v972 = vunpack.c.h.b16 %v624
        %v973 = vunpack.c.l.b16 %v625
        %v974 = vunpack.c.h.b16 %v625
        %v975 = vunpack.c.l.b16 %v626
        %v976 = vunpack.c.h.b16 %v626
        %v977 = vunpack.c.l.b16 %v627
        %v978 = vunpack.c.h.b16 %v627
        %v979 = vunpack.c.l.b16 %v628
        %v980 = vunpack.c.h.b16 %v628
        %v981 = vpack.c.b16 %v801, %v789
        %v982 = vpack.c.b16 %v802, %v790
        %v983 = vpack.c.b16 %v803, %v791
        %v984 = vpack.c.b16 %v804, %v792
        %v985 = vpack.c.b16 %v805, %v793
        %v986 = vpack.c.b16 %v806, %v794
        %v987 = vpack.c.b16 %v807, %v795
        %v988 = vpack.c.b16 %v808, %v796
        %v989 = vpack.c.b16 %v809, %v797
        %v990 = vpack.c.b16 %v810, %v798
        %v991 = vpack.c.b16 %v811, %v799
        %v992 = vpack.c.b16 %v812, %v800
        %v993 = vpack.c.b16 %v825, %v813
        %v994 = vpack.c.b16 %v826, %v814
        %v995 = vpack.c.b16 %v827, %v815
        %v996 = vpack.c.b16 %v828, %v816
        %v997 = vpack.c.b16 %v829, %v817
        %v998 = vpack.c.b16 %v830, %v818
        %v999 = vpack.c.b16 %v831, %v819
        %v1000 = vpack.c.b16 %v832, %v820
        %v1001 = vpack.c.b16 %v833, %v821
        %v1002 = vpack.c.b16 %v834, %v822
        %v1003 = vpack.c.b16 %v835, %v823
        %v1004 = vpack.c.b16 %v836, %v824
        %v1005 = vpack.c.b16 %v849, %v837
        %v1006 = vpack.c.b16 %v850, %v838
        %v1007 = vpack.c.b16 %v851, %v839
        %v1008 = vpack.c.b16 %v852, %v840
        %v1009 = vpack.c.b16 %v853, %v841
        %v1010 = vpack.c.b16 %v854, %v842
        %v1011 = vpack.c.b16 %v855, %v843
        %v1012 = vpack.c.b16 %v856, %v844
        %v1013 = vpack.c.b16 %v857, %v845
        %v1014 = vpack.c.b16 %v858, %v846
        %v1015 = vpack.c.b16 %v859, %v847
        %v1016 = vpack.c.b16 %v860, %v848
        %v1017 = vpack.c.b16 %v873, %v861
        %v1018 = vpack.c.b16 %v874, %v862
        %v1019 = vpack.c.b16 %v875, %v863
        %v1020 = vpack.c.b16 %v876, %v864
        %v1021 = vpack.c.b16 %v877, %v865
        %v1022 = vpack.c.b16 %v878, %v866
        %v1023 = vpack.c.b16 %v879, %v867
        %v1024 = vpack.c.b16 %v880, %v868
        %v1025 = vpack.c.b16 %v881, %v869
        %v1026 = vpack.c.b16 %v882, %v870
        %v1027 = vpack.c.b16 %v883, %v871
        %v1028 = vpack.c.b16 %v884, %v872
        %v1029 = vpack.c.b16 %v897, %v885
        %v1030 = vpack.c.b16 %v898, %v886
        %v1031 = vpack.c.b16 %v899, %v887
        %v1032 = vpack.c.b16 %v900, %v888
        %v1033 = vpack.c.b16 %v901, %v889
        %v1034 = vpack.c.b16 %v902, %v890
        %v1035 = vpack.c.b16 %v903, %v891
        %v1036 = vpack.c.b16 %v904, %v892
        %v1037 = vpack.c.b16 %v905, %v893
        %v1038 = vpack.c.b16 %v906, %v894
        %v1039 = vpack.c.b16 %v907, %v895
        %v1040 = vpack.c.b16 %v908, %v896
        %v1041 = vpack.c.b16 %v921, %v909
        %v1042 = vpack.c.b16 %v922, %v910
        %v1043 = vpack.c.b16 %v923, %v911
        %v1044 = vpack.c.b16 %v924, %v912
        %v1045 = vpack.c.b16 %v925, %v913
        %v1046 = vpack.c.b16 %v926, %v914
        %v1047 = vpack.c.b16 %v927, %v915
        %v1048 = vpack.c.b16 %v928, %v916
        %v1049 = vpack.c.b16 %v929, %v917
        %v1050 = vpack.c.b16 %v930, %v918
        %v1051 = vpack.c.b16 %v931, %v919
        %v1052 = vpack.c.b16 %v932, %v920
        %v1053 = vpack.c.b16 %v945, %v933
        %v1054 = vpack.c.b16 %v946, %v934
        %v1055 = vpack.c.b16 %v947, %v935
        %v1056 = vpack.c.b16 %v948, %v936
        %v1057 = vpack.c.b16 %v949, %v937
        %v1058 = vpack.c.b16 %v950, %v938
        %v1059 = vpack.c.b16 %v951, %v939
        %v1060 = vpack.c.b16 %v952, %v940
        %v1061 = vpack.c.b16 %v953, %v941
        %v1062 = vpack.c.b16 %v954, %v942
        %v1063 = vpack.c.b16 %v955, %v943
        %v1064 = vpack.c.b16 %v956, %v944
        %v1065 = vpack.c.b16 %v969, %v957
        %v1066 = vpack.c.b16 %v970, %v958
        %v1067 = vpack.c.b16 %v971, %v959
        %v1068 = vpack.c.b16 %v972, %v960
        %v1069 = vpack.c.b16 %v973, %v961
        %v1070 = vpack.c.b16 %v974, %v962
        %v1071 = vpack.c.b16 %v975, %v963
        %v1072 = vpack.c.b16 %v976, %v964
        %v1073 = vpack.c.b16 %v977, %v965
        %v1074 = vpack.c.b16 %v978, %v966
        %v1075 = vpack.c.b16 %v979, %v967
        %v1076 = vpack.c.b16 %v980, %v968
        %1173 = vmatprep.subr.bf16.mxu0 %v982
        %1174 = vmatpush1.bf16.msra.mxu0 %v981
        %1175 = vmatprep.subr.bf16.mxu0 %v994
        %1176 = vmatpush1.bf16.msra.mxu0 %v993
        %1177 = vmatprep.subr.bf16.mxu0 %v1006
        %1178 = vmatpush1.bf16.msra.mxu0 %v1005
        %1179 = vmatprep.subr.bf16.mxu0 %v1018
        %1180 = vmatpush1.bf16.msra.mxu0 %v1017
        %1181 = vmatprep.subr.bf16.mxu0 %v1030
        %1182 = vmatpush1.bf16.msra.mxu0 %v1029
        %1183 = vmatprep.subr.bf16.mxu0 %v1042
        %1184 = vmatpush1.bf16.msra.mxu0 %v1041
        %1185 = vmatprep.subr.bf16.mxu0 %v1054
        %1186 = vmatpush1.bf16.msra.mxu0 %v1053
        %1187 = vmatprep.subr.bf16.mxu0 %v1066
        %1188 = vmatpush1.bf16.msra.mxu0 %v1065
        %1189 = vmatprep.subr.bf16.mxu0 0
        %1190 = vmatpush1.bf16.msra.mxu0 0
        %1191 = vmatprep.subr.bf16.mxu0 0
        %1192 = vmatpush1.bf16.msra.mxu0 0
        %1193 = vmatprep.subr.bf16.mxu0 0
        %1194 = vmatpush1.bf16.msra.mxu0 0
        %1195 = vmatprep.subr.bf16.mxu0 0
        %1196 = vmatpush1.bf16.msra.mxu0 0
        %1197 = vmatprep.subr.bf16.mxu0 0
        %1198 = vmatpush1.bf16.msra.mxu0 0
        %1199 = vmatprep.subr.bf16.mxu0 0
        %1200 = vmatpush1.bf16.msra.mxu0 0
        %1201 = vmatprep.subr.bf16.mxu0 0
        %1202 = vmatpush1.bf16.msra.mxu0 0
        %1203 = vmatprep.subr.bf16.mxu0 0
        %1204 = vmatpush1.bf16.msra.mxu0 0
        %1205 = vmatprep.mubr.bf16.mxu0 0
        %1206 = vmatmul.mubr.bf16.gmra.mrb[0].mxu0 %v532
        %v1207 = vpop.f32.mrb[0].mxu0
        %v1208 = vadd.f32 %v636, %v1207
        %v1209 = vpop.f32.mrb[0].mxu0
        %v1210 = vadd.f32 %v640, %v1209
        %v1211 = vpop.f32.mrb[0].mxu0
        %v1212 = vadd.f32 %v636, %v1211
        %v1213 = vpop.f32.mrb[0].mxu0
        %v1214 = vadd.f32 %v640, %v1213
        %1215 = vdwg.mxu0
        %1216 = vmatprep.subr.bf16.mxu0 %v984
        %1217 = vmatpush1.bf16.msra.mxu0 %v983
        %1218 = vmatprep.subr.bf16.mxu0 %v996
        %1219 = vmatpush1.bf16.msra.mxu0 %v995
        %1220 = vmatprep.subr.bf16.mxu0 %v1008
        %1221 = vmatpush1.bf16.msra.mxu0 %v1007
        %1222 = vmatprep.subr.bf16.mxu0 %v1020
        %1223 = vmatpush1.bf16.msra.mxu0 %v1019
        %1224 = vmatprep.subr.bf16.mxu0 %v1032
        %1225 = vmatpush1.bf16.msra.mxu0 %v1031
        %1226 = vmatprep.subr.bf16.mxu0 %v1044
        %1227 = vmatpush1.bf16.msra.mxu0 %v1043
        %1228 = vmatprep.subr.bf16.mxu0 %v1056
        %1229 = vmatpush1.bf16.msra.mxu0 %v1055
        %1230 = vmatprep.subr.bf16.mxu0 %v1068
        %1231 = vmatpush1.bf16.msra.mxu0 %v1067
        %1232 = vmatprep.subr.bf16.mxu0 0
        %1233 = vmatpush1.bf16.msra.mxu0 0
        %1234 = vmatprep.subr.bf16.mxu0 0
        %1235 = vmatpush1.bf16.msra.mxu0 0
        %1236 = vmatprep.subr.bf16.mxu0 0
        %1237 = vmatpush1.bf16.msra.mxu0 0
        %1238 = vmatprep.subr.bf16.mxu0 0
        %1239 = vmatpush1.bf16.msra.mxu0 0
        %1240 = vmatprep.subr.bf16.mxu0 0
        %1241 = vmatpush1.bf16.msra.mxu0 0
        %1242 = vmatprep.subr.bf16.mxu0 0
        %1243 = vmatpush1.bf16.msra.mxu0 0
        %1244 = vmatprep.subr.bf16.mxu0 0
        %1245 = vmatpush1.bf16.msra.mxu0 0
        %1246 = vmatprep.subr.bf16.mxu0 0
        %1247 = vmatpush1.bf16.msra.mxu0 0
        %1248 = vmatprep.mubr.bf16.mxu0 0
        %1249 = vmatmul.mubr.bf16.gmra.mrb[0].mxu0 %v532
        %v1250 = vpop.f32.mrb[0].mxu0
        %v1251 = vadd.f32 %v644, %v1250
        %v1252 = vpop.f32.mrb[0].mxu0
        %v1253 = vadd.f32 %v648, %v1252
        %v1254 = vpop.f32.mrb[0].mxu0
        %v1255 = vadd.f32 %v644, %v1254
        %v1256 = vpop.f32.mrb[0].mxu0
        %v1257 = vadd.f32 %v648, %v1256
        %1258 = vdwg.mxu0
        %1259 = vmatprep.subr.bf16.mxu0 %v986
        %1260 = vmatpush1.bf16.msra.mxu0 %v985
        %1261 = vmatprep.subr.bf16.mxu0 %v998
        %1262 = vmatpush1.bf16.msra.mxu0 %v997
        %1263 = vmatprep.subr.bf16.mxu0 %v1010
        %1264 = vmatpush1.bf16.msra.mxu0 %v1009
        %1265 = vmatprep.subr.bf16.mxu0 %v1022
        %1266 = vmatpush1.bf16.msra.mxu0 %v1021
        %1267 = vmatprep.subr.bf16.mxu0 %v1034
        %1268 = vmatpush1.bf16.msra.mxu0 %v1033
        %1269 = vmatprep.subr.bf16.mxu0 %v1046
        %1270 = vmatpush1.bf16.msra.mxu0 %v1045
        %1271 = vmatprep.subr.bf16.mxu0 %v1058
        %1272 = vmatpush1.bf16.msra.mxu0 %v1057
        %1273 = vmatprep.subr.bf16.mxu0 %v1070
        %1274 = vmatpush1.bf16.msra.mxu0 %v1069
        %1275 = vmatprep.subr.bf16.mxu0 0
        %1276 = vmatpush1.bf16.msra.mxu0 0
        %1277 = vmatprep.subr.bf16.mxu0 0
        %1278 = vmatpush1.bf16.msra.mxu0 0
        %1279 = vmatprep.subr.bf16.mxu0 0
        %1280 = vmatpush1.bf16.msra.mxu0 0
        %1281 = vmatprep.subr.bf16.mxu0 0
        %1282 = vmatpush1.bf16.msra.mxu0 0
        %1283 = vmatprep.subr.bf16.mxu0 0
        %1284 = vmatpush1.bf16.msra.mxu0 0
        %1285 = vmatprep.subr.bf16.mxu0 0
        %1286 = vmatpush1.bf16.msra.mxu0 0
        %1287 = vmatprep.subr.bf16.mxu0 0
        %1288 = vmatpush1.bf16.msra.mxu0 0
        %1289 = vmatprep.subr.bf16.mxu0 0
        %1290 = vmatpush1.bf16.msra.mxu0 0
        %1291 = vmatprep.mubr.bf16.mxu0 0
        %1292 = vmatmul.mubr.bf16.gmra.mrb[0].mxu0 %v532
        %v1293 = vpop.f32.mrb[0].mxu0
        %v1294 = vadd.f32 %v652, %v1293
        %v1295 = vpop.f32.mrb[0].mxu0
        %v1296 = vadd.f32 %v656, %v1295
        %v1297 = vpop.f32.mrb[0].mxu0
        %v1298 = vadd.f32 %v652, %v1297
        %v1299 = vpop.f32.mrb[0].mxu0
        %v1300 = vadd.f32 %v656, %v1299
        %1301 = vdwg.mxu0
        %1302 = vmatprep.subr.bf16.mxu0 %v988
        %1303 = vmatpush1.bf16.msra.mxu0 %v987
        %1304 = vmatprep.subr.bf16.mxu0 %v1000
        %1305 = vmatpush1.bf16.msra.mxu0 %v999
        %1306 = vmatprep.subr.bf16.mxu0 %v1012
        %1307 = vmatpush1.bf16.msra.mxu0 %v1011
        %1308 = vmatprep.subr.bf16.mxu0 %v1024
        %1309 = vmatpush1.bf16.msra.mxu0 %v1023
        %1310 = vmatprep.subr.bf16.mxu0 %v1036
        %1311 = vmatpush1.bf16.msra.mxu0 %v1035
        %1312 = vmatprep.subr.bf16.mxu0 %v1048
        %1313 = vmatpush1.bf16.msra.mxu0 %v1047
        %1314 = vmatprep.subr.bf16.mxu0 %v1060
        %1315 = vmatpush1.bf16.msra.mxu0 %v1059
        %1316 = vmatprep.subr.bf16.mxu0 %v1072
        %1317 = vmatpush1.bf16.msra.mxu0 %v1071
        %1318 = vmatprep.subr.bf16.mxu0 0
        %1319 = vmatpush1.bf16.msra.mxu0 0
        %1320 = vmatprep.subr.bf16.mxu0 0
        %1321 = vmatpush1.bf16.msra.mxu0 0
        %1322 = vmatprep.subr.bf16.mxu0 0
        %1323 = vmatpush1.bf16.msra.mxu0 0
        %1324 = vmatprep.subr.bf16.mxu0 0
        %1325 = vmatpush1.bf16.msra.mxu0 0
        %1326 = vmatprep.subr.bf16.mxu0 0
        %1327 = vmatpush1.bf16.msra.mxu0 0
        %1328 = vmatprep.subr.bf16.mxu0 0
        %1329 = vmatpush1.bf16.msra.mxu0 0
        %1330 = vmatprep.subr.bf16.mxu0 0
        %1331 = vmatpush1.bf16.msra.mxu0 0
        %1332 = vmatprep.subr.bf16.mxu0 0
        %1333 = vmatpush1.bf16.msra.mxu0 0
        %1334 = vmatprep.mubr.bf16.mxu0 0
        %1335 = vmatmul.mubr.bf16.gmra.mrb[0].mxu0 %v532
        %v1336 = vpop.f32.mrb[0].mxu0
        %v1337 = vadd.f32 %v660, %v1336
        %v1338 = vpop.f32.mrb[0].mxu0
        %v1339 = vadd.f32 %v664, %v1338
        %v1340 = vpop.f32.mrb[0].mxu0
        %v1341 = vadd.f32 %v660, %v1340
        %v1342 = vpop.f32.mrb[0].mxu0
        %v1343 = vadd.f32 %v664, %v1342
        %1344 = vdwg.mxu0
        %1345 = vmatprep.subr.bf16.mxu0 %v990
        %1346 = vmatpush1.bf16.msra.mxu0 %v989
        %1347 = vmatprep.subr.bf16.mxu0 %v1002
        %1348 = vmatpush1.bf16.msra.mxu0 %v1001
        %1349 = vmatprep.subr.bf16.mxu0 %v1014
        %1350 = vmatpush1.bf16.msra.mxu0 %v1013
        %1351 = vmatprep.subr.bf16.mxu0 %v1026
        %1352 = vmatpush1.bf16.msra.mxu0 %v1025
        %1353 = vmatprep.subr.bf16.mxu0 %v1038
        %1354 = vmatpush1.bf16.msra.mxu0 %v1037
        %1355 = vmatprep.subr.bf16.mxu0 %v1050
        %1356 = vmatpush1.bf16.msra.mxu0 %v1049
        %1357 = vmatprep.subr.bf16.mxu0 %v1062
        %1358 = vmatpush1.bf16.msra.mxu0 %v1061
        %1359 = vmatprep.subr.bf16.mxu0 %v1074
        %1360 = vmatpush1.bf16.msra.mxu0 %v1073
        %1361 = vmatprep.subr.bf16.mxu0 0
        %1362 = vmatpush1.bf16.msra.mxu0 0
        %1363 = vmatprep.subr.bf16.mxu0 0
        %1364 = vmatpush1.bf16.msra.mxu0 0
        %1365 = vmatprep.subr.bf16.mxu0 0
        %1366 = vmatpush1.bf16.msra.mxu0 0
        %1367 = vmatprep.subr.bf16.mxu0 0
        %1368 = vmatpush1.bf16.msra.mxu0 0
        %1369 = vmatprep.subr.bf16.mxu0 0
        %1370 = vmatpush1.bf16.msra.mxu0 0
        %1371 = vmatprep.subr.bf16.mxu0 0
        %1372 = vmatpush1.bf16.msra.mxu0 0
        %1373 = vmatprep.subr.bf16.mxu0 0
        %1374 = vmatpush1.bf16.msra.mxu0 0
        %1375 = vmatprep.subr.bf16.mxu0 0
        %1376 = vmatpush1.bf16.msra.mxu0 0
        %1377 = vmatprep.mubr.bf16.mxu0 0
        %1378 = vmatmul.mubr.bf16.gmra.mrb[0].mxu0 %v532
        %v1379 = vpop.f32.mrb[0].mxu0
        %v1380 = vadd.f32 %v668, %v1379
        %v1381 = vpop.f32.mrb[0].mxu0
        %v1382 = vadd.f32 %v672, %v1381
        %v1383 = vpop.f32.mrb[0].mxu0
        %v1384 = vadd.f32 %v668, %v1383
        %v1385 = vpop.f32.mrb[0].mxu0
        %v1386 = vadd.f32 %v672, %v1385
        %1387 = vdwg.mxu0
        %1388 = vmatprep.subr.bf16.mxu0 %v992
        %1389 = vmatpush1.bf16.msra.mxu0 %v991
        %1390 = vmatprep.subr.bf16.mxu0 %v1004
        %1391 = vmatpush1.bf16.msra.mxu0 %v1003
        %1392 = vmatprep.subr.bf16.mxu0 %v1016
        %1393 = vmatpush1.bf16.msra.mxu0 %v1015
        %1394 = vmatprep.subr.bf16.mxu0 %v1028
        %1395 = vmatpush1.bf16.msra.mxu0 %v1027
        %1396 = vmatprep.subr.bf16.mxu0 %v1040
        %1397 = vmatpush1.bf16.msra.mxu0 %v1039
        %1398 = vmatprep.subr.bf16.mxu0 %v1052
        %1399 = vmatpush1.bf16.msra.mxu0 %v1051
        %1400 = vmatprep.subr.bf16.mxu0 %v1064
        %1401 = vmatpush1.bf16.msra.mxu0 %v1063
        %1402 = vmatprep.subr.bf16.mxu0 %v1076
        %1403 = vmatpush1.bf16.msra.mxu0 %v1075
        %1404 = vmatprep.subr.bf16.mxu0 0
        %1405 = vmatpush1.bf16.msra.mxu0 0
        %1406 = vmatprep.subr.bf16.mxu0 0
        %1407 = vmatpush1.bf16.msra.mxu0 0
        %1408 = vmatprep.subr.bf16.mxu0 0
        %1409 = vmatpush1.bf16.msra.mxu0 0
        %1410 = vmatprep.subr.bf16.mxu0 0
        %1411 = vmatpush1.bf16.msra.mxu0 0
        %1412 = vmatprep.subr.bf16.mxu0 0
        %1413 = vmatpush1.bf16.msra.mxu0 0
        %1414 = vmatprep.subr.bf16.mxu0 0
        %1415 = vmatpush1.bf16.msra.mxu0 0
        %1416 = vmatprep.subr.bf16.mxu0 0
        %1417 = vmatpush1.bf16.msra.mxu0 0
        %1418 = vmatprep.subr.bf16.mxu0 0
        %1419 = vmatpush1.bf16.msra.mxu0 0
        %1420 = vmatprep.mubr.bf16.mxu0 0
        %1421 = vmatmul.mubr.bf16.gmra.mrb[0].mxu0 %v532
        %v1422 = vpop.f32.mrb[0].mxu0
        %v1423 = vadd.f32 %v676, %v1422
        %v1424 = vpop.f32.mrb[0].mxu0
        %v1425 = vadd.f32 %v680, %v1424
        %v1426 = vpop.f32.mrb[0].mxu0
        %v1427 = vadd.f32 %v676, %v1426
        %v1428 = vpop.f32.mrb[0].mxu0
        %v1429 = vadd.f32 %v680, %v1428
        %1430 = vdwg.mxu0
        %v1431 = vmul.f32 %v1208, 0.17677669
        %v1432 = vmul.f32 %v1212, 0.17677669
        %v1433 = vpack.c.bf16 %v1432, %v1431
        %v1434 = vpack.c.bf16 %v1298, %v1294
        %1435 = vmatprep.subr.bf16.mxu0 0
        %1436 = vmatpush1.bf16.xpose.msra.mxu0 %v1434
        %1437 = vmatprep.subr.bf16.mxu0 0
        %1438 = vmatpush1.bf16.xpose.msra.mxu0 0
        %1439 = vmatprep.subr.bf16.mxu0 0
        %1440 = vmatpush1.bf16.xpose.msra.mxu0 0
        %1441 = vmatprep.subr.bf16.mxu0 0
        %1442 = vmatpush1.bf16.xpose.msra.mxu0 0
        %1443 = vmatprep.subr.bf16.mxu0 0
        %1444 = vmatpush1.bf16.xpose.msra.mxu0 0
        %1445 = vmatprep.subr.bf16.mxu0 0
        %1446 = vmatpush1.bf16.xpose.msra.mxu0 0
        %1447 = vmatprep.subr.bf16.mxu0 0
        %1448 = vmatpush1.bf16.xpose.msra.mxu0 0
        %1449 = vmatprep.subr.bf16.mxu0 0
        %1450 = vmatpush1.bf16.xpose.msra.mxu0 0
        %1451 = vmatprep.subr.bf16.mxu0 0
        %1452 = vmatpush1.bf16.xpose.msra.mxu0 0
        %1453 = vmatprep.subr.bf16.mxu0 0
        %1454 = vmatpush1.bf16.xpose.msra.mxu0 0
        %1455 = vmatprep.subr.bf16.mxu0 0
        %1456 = vmatpush1.bf16.xpose.msra.mxu0 0
        %1457 = vmatprep.subr.bf16.mxu0 0
        %1458 = vmatpush1.bf16.xpose.msra.mxu0 0
        %1459 = vmatprep.subr.bf16.mxu0 0
        %1460 = vmatpush1.bf16.xpose.msra.mxu0 0
        %1461 = vmatprep.subr.bf16.mxu0 0
        %1462 = vmatpush1.bf16.xpose.msra.mxu0 0
        %1463 = vmatprep.subr.bf16.mxu0 0
        %1464 = vmatpush1.bf16.xpose.msra.mxu0 0
        %1465 = vmatprep.subr.bf16.mxu0 0
        %1466 = vmatpush1.bf16.xpose.msra.mxu0 0
        %1467 = vmatprep.mubr.bf16.mxu0 0
        %1468 = vmatmul.mubr.bf16.gmra.mrb[0].mxu0 %v1433
        %v1469 = vpop.f32.mrb[0].mxu0
        %v1470 = vadd.f32 0.0, %v1469
        %v1471 = vpop.f32.mrb[0].mxu0
        %v1472 = vpop.f32.mrb[0].mxu0
        %v1473 = vadd.f32 0.0, %v1472
        %v1474 = vpop.f32.mrb[0].mxu0
        %1475 = vdwg.mxu0
        %vm1476 = vcmask 130048
        %v1477 = vsel %vm1476, %v1470, -inf
        %1478 = vmax.xlane.f32.xlu0 %v1477
        %v1479 = vpop.xlane.xlu0 %1478
        %v1480 = vsel %vm1476, %v1473, -inf
        %1481 = vmax.xlane.f32.xlu0 %v1480
        %v1482 = vpop.xlane.xlu0 %1481
        %v1483 = vsub.f32 %v1470, %v1479
        %v1484 = vsub.f32 %v1473, %v1482
        %v1485 = vmul.f32 %v1483, 1.442695
        %v1486 = vpow.pop %v1485
        %v1487 = vmul.f32 %v1484, 1.442695
        %v1488 = vpow.pop %v1487
        %v1489 = vsel %vm1476, %v1486, 0.0
        %1490 = vadd.xlane.f32.xlu0 %v1489
        %v1491 = vpop.xlane.xlu0 %1490
        %v1492 = vsel %vm1476, %v1488, 0.0
        %1493 = vadd.xlane.f32.xlu0 %v1492
        %v1494 = vpop.xlane.xlu0 %1493
        %v1495 = vpack.c.bf16 %v1488, %v1486
        %v1496 = vpack.c.bf16 %v1384, %v1380
        %v1498 = vsel %vm1476, %v1495, 0
        %1500 = vmatprep.subr.bf16.mxu0 0
        %1501 = vmatpush1.bf16.msra.mxu0 %v1496
        %1502 = vmatprep.subr.bf16.mxu0 0
        %1503 = vmatpush1.bf16.msra.mxu0 0
        %1504 = vmatprep.subr.bf16.mxu0 0
        %1505 = vmatpush1.bf16.msra.mxu0 0
        %1506 = vmatprep.subr.bf16.mxu0 0
        %1507 = vmatpush1.bf16.msra.mxu0 0
        %1508 = vmatprep.subr.bf16.mxu0 0
        %1509 = vmatpush1.bf16.msra.mxu0 0
        %1510 = vmatprep.subr.bf16.mxu0 0
        %1511 = vmatpush1.bf16.msra.mxu0 0
        %1512 = vmatprep.subr.bf16.mxu0 0
        %1513 = vmatpush1.bf16.msra.mxu0 0
        %1514 = vmatprep.subr.bf16.mxu0 0
        %1515 = vmatpush1.bf16.msra.mxu0 0
        %1516 = vmatprep.subr.bf16.mxu0 0
        %1517 = vmatpush1.bf16.msra.mxu0 0
        %1518 = vmatprep.subr.bf16.mxu0 0
        %1519 = vmatpush1.bf16.msra.mxu0 0
        %1520 = vmatprep.subr.bf16.mxu0 0
        %1521 = vmatpush1.bf16.msra.mxu0 0
        %1522 = vmatprep.subr.bf16.mxu0 0
        %1523 = vmatpush1.bf16.msra.mxu0 0
        %1524 = vmatprep.subr.bf16.mxu0 0
        %1525 = vmatpush1.bf16.msra.mxu0 0
        %1526 = vmatprep.subr.bf16.mxu0 0
        %1527 = vmatpush1.bf16.msra.mxu0 0
        %1528 = vmatprep.subr.bf16.mxu0 0
        %1529 = vmatpush1.bf16.msra.mxu0 0
        %1530 = vmatprep.subr.bf16.mxu0 0
        %1531 = vmatpush1.bf16.msra.mxu0 0
        %1532 = vmatprep.mubr.bf16.mxu0 0
        %1533 = vmatmul.mubr.bf16.gmra.mrb[0].mxu0 %v1498
        %v1534 = vpop.f32.mrb[0].mxu0
        %v1535 = vadd.f32 0.0, %v1534
        %v1536 = vpop.f32.mrb[0].mxu0
        %v1537 = vpop.f32.mrb[0].mxu0
        %v1538 = vadd.f32 0.0, %v1537
        %v1539 = vpop.f32.mrb[0].mxu0
        %1540 = vdwg.mxu0
        %v1541 = vrcp.pop %v1491
        %v1542 = vrcp.pop %v1494
        %v1543 = vmul.f32 %v1535, %v1541
        %v1544 = vmul.f32 %v1538, %v1542
        %v1545 = vmul.f32 %v1210, 0.17677669
        %v1546 = vmul.f32 %v1214, 0.17677669
        %v1547 = vpack.c.bf16 %v1546, %v1545
        %v1548 = vpack.c.bf16 %v1300, %v1296
        %1549 = vmatprep.subr.bf16.mxu0 0
        %1550 = vmatpush1.bf16.xpose.msra.mxu0 %v1548
        %1551 = vmatprep.subr.bf16.mxu0 0
        %1552 = vmatpush1.bf16.xpose.msra.mxu0 0
        %1553 = vmatprep.subr.bf16.mxu0 0
        %1554 = vmatpush1.bf16.xpose.msra.mxu0 0
        %1555 = vmatprep.subr.bf16.mxu0 0
        %1556 = vmatpush1.bf16.xpose.msra.mxu0 0
        %1557 = vmatprep.subr.bf16.mxu0 0
        %1558 = vmatpush1.bf16.xpose.msra.mxu0 0
        %1559 = vmatprep.subr.bf16.mxu0 0
        %1560 = vmatpush1.bf16.xpose.msra.mxu0 0
        %1561 = vmatprep.subr.bf16.mxu0 0
        %1562 = vmatpush1.bf16.xpose.msra.mxu0 0
        %1563 = vmatprep.subr.bf16.mxu0 0
        %1564 = vmatpush1.bf16.xpose.msra.mxu0 0
        %1565 = vmatprep.subr.bf16.mxu0 0
        %1566 = vmatpush1.bf16.xpose.msra.mxu0 0
        %1567 = vmatprep.subr.bf16.mxu0 0
        %1568 = vmatpush1.bf16.xpose.msra.mxu0 0
        %1569 = vmatprep.subr.bf16.mxu0 0
        %1570 = vmatpush1.bf16.xpose.msra.mxu0 0
        %1571 = vmatprep.subr.bf16.mxu0 0
        %1572 = vmatpush1.bf16.xpose.msra.mxu0 0
        %1573 = vmatprep.subr.bf16.mxu0 0
        %1574 = vmatpush1.bf16.xpose.msra.mxu0 0
        %1575 = vmatprep.subr.bf16.mxu0 0
        %1576 = vmatpush1.bf16.xpose.msra.mxu0 0
        %1577 = vmatprep.subr.bf16.mxu0 0
        %1578 = vmatpush1.bf16.xpose.msra.mxu0 0
        %1579 = vmatprep.subr.bf16.mxu0 0
        %1580 = vmatpush1.bf16.xpose.msra.mxu0 0
        %1581 = vmatprep.mubr.bf16.mxu0 0
        %1582 = vmatmul.mubr.bf16.gmra.mrb[0].mxu0 %v1547
        %v1583 = vpop.f32.mrb[0].mxu0
        %v1584 = vadd.f32 0.0, %v1583
        %v1585 = vpop.f32.mrb[0].mxu0
        %v1586 = vpop.f32.mrb[0].mxu0
        %v1587 = vadd.f32 0.0, %v1586
        %v1588 = vpop.f32.mrb[0].mxu0
        %1589 = vdwg.mxu0
        %v1590 = vsel %vm1476, %v1584, -inf
        %1591 = vmax.xlane.f32.xlu0 %v1590
        %v1592 = vpop.xlane.xlu0 %1591
        %v1593 = vsel %vm1476, %v1587, -inf
        %1594 = vmax.xlane.f32.xlu0 %v1593
        %v1595 = vpop.xlane.xlu0 %1594
        %v1596 = vsub.f32 %v1584, %v1592
        %v1597 = vsub.f32 %v1587, %v1595
        %v1598 = vmul.f32 %v1596, 1.442695
        %v1599 = vpow.pop %v1598
        %v1600 = vmul.f32 %v1597, 1.442695
        %v1601 = vpow.pop %v1600
        %v1602 = vsel %vm1476, %v1599, 0.0
        %1603 = vadd.xlane.f32.xlu0 %v1602
        %v1604 = vpop.xlane.xlu0 %1603
        %v1605 = vsel %vm1476, %v1601, 0.0
        %1606 = vadd.xlane.f32.xlu0 %v1605
        %v1607 = vpop.xlane.xlu0 %1606
        %v1608 = vpack.c.bf16 %v1601, %v1599
        %v1609 = vpack.c.bf16 %v1386, %v1382
        %v1611 = vsel %vm1476, %v1608, 0
        %1613 = vmatprep.subr.bf16.mxu0 0
        %1614 = vmatpush1.bf16.msra.mxu0 %v1609
        %1615 = vmatprep.subr.bf16.mxu0 0
        %1616 = vmatpush1.bf16.msra.mxu0 0
        %1617 = vmatprep.subr.bf16.mxu0 0
        %1618 = vmatpush1.bf16.msra.mxu0 0
        %1619 = vmatprep.subr.bf16.mxu0 0
        %1620 = vmatpush1.bf16.msra.mxu0 0
        %1621 = vmatprep.subr.bf16.mxu0 0
        %1622 = vmatpush1.bf16.msra.mxu0 0
        %1623 = vmatprep.subr.bf16.mxu0 0
        %1624 = vmatpush1.bf16.msra.mxu0 0
        %1625 = vmatprep.subr.bf16.mxu0 0
        %1626 = vmatpush1.bf16.msra.mxu0 0
        %1627 = vmatprep.subr.bf16.mxu0 0
        %1628 = vmatpush1.bf16.msra.mxu0 0
        %1629 = vmatprep.subr.bf16.mxu0 0
        %1630 = vmatpush1.bf16.msra.mxu0 0
        %1631 = vmatprep.subr.bf16.mxu0 0
        %1632 = vmatpush1.bf16.msra.mxu0 0
        %1633 = vmatprep.subr.bf16.mxu0 0
        %1634 = vmatpush1.bf16.msra.mxu0 0
        %1635 = vmatprep.subr.bf16.mxu0 0
        %1636 = vmatpush1.bf16.msra.mxu0 0
        %1637 = vmatprep.subr.bf16.mxu0 0
        %1638 = vmatpush1.bf16.msra.mxu0 0
        %1639 = vmatprep.subr.bf16.mxu0 0
        %1640 = vmatpush1.bf16.msra.mxu0 0
        %1641 = vmatprep.subr.bf16.mxu0 0
        %1642 = vmatpush1.bf16.msra.mxu0 0
        %1643 = vmatprep.subr.bf16.mxu0 0
        %1644 = vmatpush1.bf16.msra.mxu0 0
        %1645 = vmatprep.mubr.bf16.mxu0 0
        %1646 = vmatmul.mubr.bf16.gmra.mrb[0].mxu0 %v1611
        %v1647 = vpop.f32.mrb[0].mxu0
        %v1648 = vadd.f32 0.0, %v1647
        %v1649 = vpop.f32.mrb[0].mxu0
        %v1650 = vpop.f32.mrb[0].mxu0
        %v1651 = vadd.f32 0.0, %v1650
        %v1652 = vpop.f32.mrb[0].mxu0
        %1653 = vdwg.mxu0
        %v1654 = vrcp.pop %v1604
        %v1655 = vrcp.pop %v1607
        %v1656 = vmul.f32 %v1648, %v1654
        %v1657 = vmul.f32 %v1651, %v1655
        %v1658 = vmul.f32 %v1251, 0.17677669
        %v1659 = vmul.f32 %v1255, 0.17677669
        %v1660 = vpack.c.bf16 %v1659, %v1658
        %v1661 = vpack.c.bf16 %v1341, %v1337
        %1662 = vmatprep.subr.bf16.mxu0 0
        %1663 = vmatpush1.bf16.xpose.msra.mxu0 %v1661
        %1664 = vmatprep.subr.bf16.mxu0 0
        %1665 = vmatpush1.bf16.xpose.msra.mxu0 0
        %1666 = vmatprep.subr.bf16.mxu0 0
        %1667 = vmatpush1.bf16.xpose.msra.mxu0 0
        %1668 = vmatprep.subr.bf16.mxu0 0
        %1669 = vmatpush1.bf16.xpose.msra.mxu0 0
        %1670 = vmatprep.subr.bf16.mxu0 0
        %1671 = vmatpush1.bf16.xpose.msra.mxu0 0
        %1672 = vmatprep.subr.bf16.mxu0 0
        %1673 = vmatpush1.bf16.xpose.msra.mxu0 0
        %1674 = vmatprep.subr.bf16.mxu0 0
        %1675 = vmatpush1.bf16.xpose.msra.mxu0 0
        %1676 = vmatprep.subr.bf16.mxu0 0
        %1677 = vmatpush1.bf16.xpose.msra.mxu0 0
        %1678 = vmatprep.subr.bf16.mxu0 0
        %1679 = vmatpush1.bf16.xpose.msra.mxu0 0
        %1680 = vmatprep.subr.bf16.mxu0 0
        %1681 = vmatpush1.bf16.xpose.msra.mxu0 0
        %1682 = vmatprep.subr.bf16.mxu0 0
        %1683 = vmatpush1.bf16.xpose.msra.mxu0 0
        %1684 = vmatprep.subr.bf16.mxu0 0
        %1685 = vmatpush1.bf16.xpose.msra.mxu0 0
        %1686 = vmatprep.subr.bf16.mxu0 0
        %1687 = vmatpush1.bf16.xpose.msra.mxu0 0
        %1688 = vmatprep.subr.bf16.mxu0 0
        %1689 = vmatpush1.bf16.xpose.msra.mxu0 0
        %1690 = vmatprep.subr.bf16.mxu0 0
        %1691 = vmatpush1.bf16.xpose.msra.mxu0 0
        %1692 = vmatprep.subr.bf16.mxu0 0
        %1693 = vmatpush1.bf16.xpose.msra.mxu0 0
        %1694 = vmatprep.mubr.bf16.mxu0 0
        %1695 = vmatmul.mubr.bf16.gmra.mrb[0].mxu0 %v1660
        %v1696 = vpop.f32.mrb[0].mxu0
        %v1697 = vadd.f32 0.0, %v1696
        %v1698 = vpop.f32.mrb[0].mxu0
        %v1699 = vpop.f32.mrb[0].mxu0
        %v1700 = vadd.f32 0.0, %v1699
        %v1701 = vpop.f32.mrb[0].mxu0
        %1702 = vdwg.mxu0
        %v1703 = vsel %vm1476, %v1697, -inf
        %1704 = vmax.xlane.f32.xlu0 %v1703
        %v1705 = vpop.xlane.xlu0 %1704
        %v1706 = vsel %vm1476, %v1700, -inf
        %1707 = vmax.xlane.f32.xlu0 %v1706
        %v1708 = vpop.xlane.xlu0 %1707
        %v1709 = vsub.f32 %v1697, %v1705
        %v1710 = vsub.f32 %v1700, %v1708
        %v1711 = vmul.f32 %v1709, 1.442695
        %v1712 = vpow.pop %v1711
        %v1713 = vmul.f32 %v1710, 1.442695
        %v1714 = vpow.pop %v1713
        %v1715 = vsel %vm1476, %v1712, 0.0
        %1716 = vadd.xlane.f32.xlu0 %v1715
        %v1717 = vpop.xlane.xlu0 %1716
        %v1718 = vsel %vm1476, %v1714, 0.0
        %1719 = vadd.xlane.f32.xlu0 %v1718
        %v1720 = vpop.xlane.xlu0 %1719
        %v1721 = vpack.c.bf16 %v1714, %v1712
        %v1722 = vpack.c.bf16 %v1427, %v1423
        %v1724 = vsel %vm1476, %v1721, 0
        %1726 = vmatprep.subr.bf16.mxu0 0
        %1727 = vmatpush1.bf16.msra.mxu0 %v1722
        %1728 = vmatprep.subr.bf16.mxu0 0
        %1729 = vmatpush1.bf16.msra.mxu0 0
        %1730 = vmatprep.subr.bf16.mxu0 0
        %1731 = vmatpush1.bf16.msra.mxu0 0
        %1732 = vmatprep.subr.bf16.mxu0 0
        %1733 = vmatpush1.bf16.msra.mxu0 0
        %1734 = vmatprep.subr.bf16.mxu0 0
        %1735 = vmatpush1.bf16.msra.mxu0 0
        %1736 = vmatprep.subr.bf16.mxu0 0
        %1737 = vmatpush1.bf16.msra.mxu0 0
        %1738 = vmatprep.subr.bf16.mxu0 0
        %1739 = vmatpush1.bf16.msra.mxu0 0
        %1740 = vmatprep.subr.bf16.mxu0 0
        %1741 = vmatpush1.bf16.msra.mxu0 0
        %1742 = vmatprep.subr.bf16.mxu0 0
        %1743 = vmatpush1.bf16.msra.mxu0 0
        %1744 = vmatprep.subr.bf16.mxu0 0
        %1745 = vmatpush1.bf16.msra.mxu0 0
        %1746 = vmatprep.subr.bf16.mxu0 0
        %1747 = vmatpush1.bf16.msra.mxu0 0
        %1748 = vmatprep.subr.bf16.mxu0 0
        %1749 = vmatpush1.bf16.msra.mxu0 0
        %1750 = vmatprep.subr.bf16.mxu0 0
        %1751 = vmatpush1.bf16.msra.mxu0 0
        %1752 = vmatprep.subr.bf16.mxu0 0
        %1753 = vmatpush1.bf16.msra.mxu0 0
        %1754 = vmatprep.subr.bf16.mxu0 0
        %1755 = vmatpush1.bf16.msra.mxu0 0
        %1756 = vmatprep.subr.bf16.mxu0 0
        %1757 = vmatpush1.bf16.msra.mxu0 0
        %1758 = vmatprep.mubr.bf16.mxu0 0
        %1759 = vmatmul.mubr.bf16.gmra.mrb[0].mxu0 %v1724
        %v1760 = vpop.f32.mrb[0].mxu0
        %v1761 = vadd.f32 0.0, %v1760
        %v1762 = vpop.f32.mrb[0].mxu0
        %v1763 = vpop.f32.mrb[0].mxu0
        %v1764 = vadd.f32 0.0, %v1763
        %v1765 = vpop.f32.mrb[0].mxu0
        %1766 = vdwg.mxu0
        %v1767 = vrcp.pop %v1717
        %v1768 = vrcp.pop %v1720
        %v1769 = vmul.f32 %v1761, %v1767
        %v1770 = vmul.f32 %v1764, %v1768
        %v1771 = vmul.f32 %v1253, 0.17677669
        %v1772 = vmul.f32 %v1257, 0.17677669
        %v1773 = vpack.c.bf16 %v1772, %v1771
        %v1774 = vpack.c.bf16 %v1343, %v1339
        %1775 = vmatprep.subr.bf16.mxu0 0
        %1776 = vmatpush1.bf16.xpose.msra.mxu0 %v1774
        %1777 = vmatprep.subr.bf16.mxu0 0
        %1778 = vmatpush1.bf16.xpose.msra.mxu0 0
        %1779 = vmatprep.subr.bf16.mxu0 0
        %1780 = vmatpush1.bf16.xpose.msra.mxu0 0
        %1781 = vmatprep.subr.bf16.mxu0 0
        %1782 = vmatpush1.bf16.xpose.msra.mxu0 0
        %1783 = vmatprep.subr.bf16.mxu0 0
        %1784 = vmatpush1.bf16.xpose.msra.mxu0 0
        %1785 = vmatprep.subr.bf16.mxu0 0
        %1786 = vmatpush1.bf16.xpose.msra.mxu0 0
        %1787 = vmatprep.subr.bf16.mxu0 0
        %1788 = vmatpush1.bf16.xpose.msra.mxu0 0
        %1789 = vmatprep.subr.bf16.mxu0 0
        %1790 = vmatpush1.bf16.xpose.msra.mxu0 0
        %1791 = vmatprep.subr.bf16.mxu0 0
        %1792 = vmatpush1.bf16.xpose.msra.mxu0 0
        %1793 = vmatprep.subr.bf16.mxu0 0
        %1794 = vmatpush1.bf16.xpose.msra.mxu0 0
        %1795 = vmatprep.subr.bf16.mxu0 0
        %1796 = vmatpush1.bf16.xpose.msra.mxu0 0
        %1797 = vmatprep.subr.bf16.mxu0 0
        %1798 = vmatpush1.bf16.xpose.msra.mxu0 0
        %1799 = vmatprep.subr.bf16.mxu0 0
        %1800 = vmatpush1.bf16.xpose.msra.mxu0 0
        %1801 = vmatprep.subr.bf16.mxu0 0
        %1802 = vmatpush1.bf16.xpose.msra.mxu0 0
        %1803 = vmatprep.subr.bf16.mxu0 0
        %1804 = vmatpush1.bf16.xpose.msra.mxu0 0
        %1805 = vmatprep.subr.bf16.mxu0 0
        %1806 = vmatpush1.bf16.xpose.msra.mxu0 0
        %1807 = vmatprep.mubr.bf16.mxu0 0
        %1808 = vmatmul.mubr.bf16.gmra.mrb[0].mxu0 %v1773
        %v1809 = vpop.f32.mrb[0].mxu0
        %v1810 = vadd.f32 0.0, %v1809
        %v1811 = vpop.f32.mrb[0].mxu0
        %v1812 = vpop.f32.mrb[0].mxu0
        %v1813 = vadd.f32 0.0, %v1812
        %v1814 = vpop.f32.mrb[0].mxu0
        %1815 = vdwg.mxu0
        %v1816 = vsel %vm1476, %v1810, -inf
        %1817 = vmax.xlane.f32.xlu0 %v1816
        %v1818 = vpop.xlane.xlu0 %1817
        %v1819 = vsel %vm1476, %v1813, -inf
        %1820 = vmax.xlane.f32.xlu0 %v1819
        %v1821 = vpop.xlane.xlu0 %1820
        %v1822 = vsub.f32 %v1810, %v1818
        %v1823 = vsub.f32 %v1813, %v1821
        %v1824 = vmul.f32 %v1822, 1.442695
        %v1825 = vpow.pop %v1824
        %v1826 = vmul.f32 %v1823, 1.442695
        %v1827 = vpow.pop %v1826
        %v1828 = vsel %vm1476, %v1825, 0.0
        %1829 = vadd.xlane.f32.xlu0 %v1828
        %v1830 = vpop.xlane.xlu0 %1829
        %v1831 = vsel %vm1476, %v1827, 0.0
        %1832 = vadd.xlane.f32.xlu0 %v1831
        %v1833 = vpop.xlane.xlu0 %1832
        %v1834 = vpack.c.bf16 %v1827, %v1825
        %v1835 = vpack.c.bf16 %v1429, %v1425
        %v1837 = vsel %vm1476, %v1834, 0
        %1839 = vmatprep.subr.bf16.mxu0 0
        %1840 = vmatpush1.bf16.msra.mxu0 %v1835
        %1841 = vmatprep.subr.bf16.mxu0 0
        %1842 = vmatpush1.bf16.msra.mxu0 0
        %1843 = vmatprep.subr.bf16.mxu0 0
        %1844 = vmatpush1.bf16.msra.mxu0 0
        %1845 = vmatprep.subr.bf16.mxu0 0
        %1846 = vmatpush1.bf16.msra.mxu0 0
        %1847 = vmatprep.subr.bf16.mxu0 0
        %1848 = vmatpush1.bf16.msra.mxu0 0
        %1849 = vmatprep.subr.bf16.mxu0 0
        %1850 = vmatpush1.bf16.msra.mxu0 0
        %1851 = vmatprep.subr.bf16.mxu0 0
        %1852 = vmatpush1.bf16.msra.mxu0 0
        %1853 = vmatprep.subr.bf16.mxu0 0
        %1854 = vmatpush1.bf16.msra.mxu0 0
        %1855 = vmatprep.subr.bf16.mxu0 0
        %1856 = vmatpush1.bf16.msra.mxu0 0
        %1857 = vmatprep.subr.bf16.mxu0 0
        %1858 = vmatpush1.bf16.msra.mxu0 0
        %1859 = vmatprep.subr.bf16.mxu0 0
        %1860 = vmatpush1.bf16.msra.mxu0 0
        %1861 = vmatprep.subr.bf16.mxu0 0
        %1862 = vmatpush1.bf16.msra.mxu0 0
        %1863 = vmatprep.subr.bf16.mxu0 0
        %1864 = vmatpush1.bf16.msra.mxu0 0
        %1865 = vmatprep.subr.bf16.mxu0 0
        %1866 = vmatpush1.bf16.msra.mxu0 0
        %1867 = vmatprep.subr.bf16.mxu0 0
        %1868 = vmatpush1.bf16.msra.mxu0 0
        %1869 = vmatprep.subr.bf16.mxu0 0
        %1870 = vmatpush1.bf16.msra.mxu0 0
        %1871 = vmatprep.mubr.bf16.mxu0 0
        %1872 = vmatmul.mubr.bf16.gmra.mrb[0].mxu0 %v1837
        %v1873 = vpop.f32.mrb[0].mxu0
        %v1874 = vadd.f32 0.0, %v1873
        %v1875 = vpop.f32.mrb[0].mxu0
        %v1876 = vpop.f32.mrb[0].mxu0
        %v1877 = vadd.f32 0.0, %v1876
        %v1878 = vpop.f32.mrb[0].mxu0
        %1879 = vdwg.mxu0
        %v1880 = vrcp.pop %v1830
        %v1881 = vrcp.pop %v1833
        %v1882 = vmul.f32 %v1874, %v1880
        %v1883 = vmul.f32 %v1877, %v1881
        %v1884 = vpack.c.bf16 %v1544, %v1543
        %v1885 = vpack.c.bf16 %v1657, %v1656
        %v1886 = vpack.c.bf16 %v1770, %v1769
        %v1887 = vpack.c.bf16 %v1883, %v1882
        %v1888 = vld [vmem:[#allocation8] sm:$0xf]
        %v1889 = vld [vmem:[#allocation8 + $0x4] sm:$0xf]
        %v1890 = vld [vmem:[#allocation8 + $0x8] sm:$0xf]
        %v1891 = vld [vmem:[#allocation8 + $0xc] sm:$0xf]
        %v1892 = vld [vmem:[#allocation8 + $0x10] sm:$0xf]
        %v1893 = vld [vmem:[#allocation8 + $0x14] sm:$0xf]
        %v1894 = vld [vmem:[#allocation8 + $0x18] sm:$0xf]
        %v1895 = vld [vmem:[#allocation8 + $0x1c] sm:$0xf]
        %v1896 = vld [vmem:[#allocation8 + $0x20] sm:$0xf]
        %v1897 = vld [vmem:[#allocation8 + $0x24] sm:$0xf]
        %v1898 = vld [vmem:[#allocation8 + $0x28] sm:$0xf]
        %v1899 = vld [vmem:[#allocation8 + $0x2c] sm:$0xf]
        %v1900 = vld [vmem:[#allocation8 + $0x30] sm:$0xf]
        %v1901 = vld [vmem:[#allocation8 + $0x34] sm:$0xf]
        %v1902 = vld [vmem:[#allocation8 + $0x38] sm:$0xf]
        %v1903 = vld [vmem:[#allocation8 + $0x3c] sm:$0xf]
        %v1904 = vld [vmem:[#allocation8 + $0x40] sm:$0xf]
        %v1905 = vld [vmem:[#allocation8 + $0x44] sm:$0xf]
        %v1906 = vld [vmem:[#allocation8 + $0x48] sm:$0xf]
        %v1907 = vld [vmem:[#allocation8 + $0x4c] sm:$0xf]
        %v1908 = vld [vmem:[#allocation8 + $0x50] sm:$0xf]
        %v1909 = vld [vmem:[#allocation8 + $0x54] sm:$0xf]
        %v1910 = vld [vmem:[#allocation8 + $0x58] sm:$0xf]
        %v1911 = vld [vmem:[#allocation8 + $0x5c] sm:$0xf]
        %v1912 = vld [vmem:[#allocation8 + $0x60] sm:$0xf]
        %v1913 = vld [vmem:[#allocation8 + $0x64] sm:$0xf]
        %v1914 = vld [vmem:[#allocation8 + $0x68] sm:$0xf]
        %v1915 = vld [vmem:[#allocation8 + $0x6c] sm:$0xf]
        %v1916 = vld [vmem:[#allocation8 + $0x70] sm:$0xf]
        %v1917 = vld [vmem:[#allocation8 + $0x74] sm:$0xf]
        %v1918 = vld [vmem:[#allocation8 + $0x78] sm:$0xf]
        %v1919 = vld [vmem:[#allocation8 + $0x7c] sm:$0xf]
        %v1920 = vld [vmem:[#allocation8 + $0x80] sm:$0xf]
        %v1921 = vld [vmem:[#allocation8 + $0x84] sm:$0xf]
        %v1922 = vld [vmem:[#allocation8 + $0x88] sm:$0xf]
        %v1923 = vld [vmem:[#allocation8 + $0x8c] sm:$0xf]
        %v1924 = vld [vmem:[#allocation8 + $0x90] sm:$0xf]
        %v1925 = vld [vmem:[#allocation8 + $0x94] sm:$0xf]
        %v1926 = vld [vmem:[#allocation8 + $0x98] sm:$0xf]
        %v1927 = vld [vmem:[#allocation8 + $0x9c] sm:$0xf]
        %v1928 = vld [vmem:[#allocation8 + $0xa0] sm:$0xf]
        %v1929 = vld [vmem:[#allocation8 + $0xa4] sm:$0xf]
        %v1930 = vld [vmem:[#allocation8 + $0xa8] sm:$0xf]
        %v1931 = vld [vmem:[#allocation8 + $0xac] sm:$0xf]
        %v1932 = vld [vmem:[#allocation8 + $0xb0] sm:$0xf]
        %v1933 = vld [vmem:[#allocation8 + $0xb4] sm:$0xf]
        %v1934 = vld [vmem:[#allocation8 + $0xb8] sm:$0xf]
        %v1935 = vld [vmem:[#allocation8 + $0xbc] sm:$0xf]
        %v1936 = vld [vmem:[#allocation8 + $0xc0] sm:$0xf]
        %v1937 = vld [vmem:[#allocation8 + $0xc4] sm:$0xf]
        %v1938 = vld [vmem:[#allocation8 + $0xc8] sm:$0xf]
        %v1939 = vld [vmem:[#allocation8 + $0xcc] sm:$0xf]
        %v1940 = vld [vmem:[#allocation8 + $0xd0] sm:$0xf]
        %v1941 = vld [vmem:[#allocation8 + $0xd4] sm:$0xf]
        %v1942 = vld [vmem:[#allocation8 + $0xd8] sm:$0xf]
        %v1943 = vld [vmem:[#allocation8 + $0xdc] sm:$0xf]
        %v1944 = vld [vmem:[#allocation8 + $0xe0] sm:$0xf]
        %v1945 = vld [vmem:[#allocation8 + $0xe4] sm:$0xf]
        %v1946 = vld [vmem:[#allocation8 + $0xe8] sm:$0xf]
        %v1947 = vld [vmem:[#allocation8 + $0xec] sm:$0xf]
        %v1948 = vld [vmem:[#allocation8 + $0xf0] sm:$0xf]
        %v1949 = vld [vmem:[#allocation8 + $0xf4] sm:$0xf]
        %v1950 = vld [vmem:[#allocation8 + $0xf8] sm:$0xf]
        %v1951 = vld [vmem:[#allocation8 + $0xfc] sm:$0xf]
        %v1952 = vld [vmem:[%s4] sm:$0x1]
        %v1954 = vlaneseq
        %v1955 = vshrl.u32 %v1954, 7
        %v1956 = vsub.s32 0, %v1955
        %v1957 = vrot.slane %v1952, %v1956
        %v2023 = vunpack.c.l.b16 %v1888
        %v2024 = vunpack.c.l.b16 %v1889
        %v2025 = vunpack.c.l.b16 %v1890
        %v2026 = vunpack.c.l.b16 %v1891
        %v2027 = vunpack.c.l.b16 %v1892
        %v2028 = vunpack.c.l.b16 %v1893
        %v2029 = vunpack.c.l.b16 %v1894
        %v2030 = vunpack.c.l.b16 %v1895
        %v2031 = vunpack.c.l.b16 %v1896
        %v2032 = vunpack.c.l.b16 %v1897
        %v2033 = vunpack.c.l.b16 %v1898
        %v2034 = vunpack.c.l.b16 %v1899
        %v2035 = vunpack.c.l.b16 %v1900
        %v2036 = vunpack.c.l.b16 %v1901
        %v2037 = vunpack.c.l.b16 %v1902
        %v2038 = vunpack.c.l.b16 %v1903
        %v2039 = vunpack.c.l.b16 %v1904
        %v2040 = vunpack.c.l.b16 %v1905
        %v2041 = vunpack.c.l.b16 %v1906
        %v2042 = vunpack.c.l.b16 %v1907
        %v2043 = vunpack.c.l.b16 %v1908
        %v2044 = vunpack.c.l.b16 %v1909
        %v2045 = vunpack.c.l.b16 %v1910
        %v2046 = vunpack.c.l.b16 %v1911
        %v2047 = vunpack.c.l.b16 %v1912
        %v2048 = vunpack.c.l.b16 %v1913
        %v2049 = vunpack.c.l.b16 %v1914
        %v2050 = vunpack.c.l.b16 %v1915
        %v2051 = vunpack.c.l.b16 %v1916
        %v2052 = vunpack.c.l.b16 %v1917
        %v2053 = vunpack.c.l.b16 %v1918
        %v2054 = vunpack.c.l.b16 %v1919
        %v2055 = vunpack.c.l.b16 %v1920
        %v2056 = vunpack.c.l.b16 %v1921
        %v2057 = vunpack.c.l.b16 %v1922
        %v2058 = vunpack.c.l.b16 %v1923
        %v2059 = vunpack.c.l.b16 %v1924
        %v2060 = vunpack.c.l.b16 %v1925
        %v2061 = vunpack.c.l.b16 %v1926
        %v2062 = vunpack.c.l.b16 %v1927
        %v2063 = vunpack.c.l.b16 %v1928
        %v2064 = vunpack.c.l.b16 %v1929
        %v2065 = vunpack.c.l.b16 %v1930
        %v2066 = vunpack.c.l.b16 %v1931
        %v2067 = vunpack.c.l.b16 %v1932
        %v2068 = vunpack.c.l.b16 %v1933
        %v2069 = vunpack.c.l.b16 %v1934
        %v2070 = vunpack.c.l.b16 %v1935
        %v2071 = vunpack.c.l.b16 %v1936
        %v2072 = vunpack.c.l.b16 %v1937
        %v2073 = vunpack.c.l.b16 %v1938
        %v2074 = vunpack.c.l.b16 %v1939
        %v2075 = vunpack.c.l.b16 %v1940
        %v2076 = vunpack.c.l.b16 %v1941
        %v2077 = vunpack.c.l.b16 %v1942
        %v2078 = vunpack.c.l.b16 %v1943
        %v2079 = vunpack.c.l.b16 %v1944
        %v2080 = vunpack.c.l.b16 %v1945
        %v2081 = vunpack.c.l.b16 %v1946
        %v2082 = vunpack.c.l.b16 %v1947
        %v2083 = vunpack.c.l.b16 %v1948
        %v2084 = vunpack.c.l.b16 %v1949
        %v2085 = vunpack.c.l.b16 %v1950
        %v2086 = vunpack.c.l.b16 %v1951
        %v2087 = vpack.c.b16 %v2024, %v2023
        %v2088 = vpack.c.b16 %v2026, %v2025
        %v2089 = vpack.c.b16 %v2028, %v2027
        %v2090 = vpack.c.b16 %v2030, %v2029
        %v2091 = vpack.c.b16 %v2032, %v2031
        %v2092 = vpack.c.b16 %v2034, %v2033
        %v2093 = vpack.c.b16 %v2036, %v2035
        %v2094 = vpack.c.b16 %v2038, %v2037
        %v2095 = vpack.c.b16 %v2040, %v2039
        %v2096 = vpack.c.b16 %v2042, %v2041
        %v2097 = vpack.c.b16 %v2044, %v2043
        %v2098 = vpack.c.b16 %v2046, %v2045
        %v2099 = vpack.c.b16 %v2048, %v2047
        %v2100 = vpack.c.b16 %v2050, %v2049
        %v2101 = vpack.c.b16 %v2052, %v2051
        %v2102 = vpack.c.b16 %v2054, %v2053
        %v2103 = vpack.c.b16 %v2056, %v2055
        %v2104 = vpack.c.b16 %v2058, %v2057
        %v2105 = vpack.c.b16 %v2060, %v2059
        %v2106 = vpack.c.b16 %v2062, %v2061
        %v2107 = vpack.c.b16 %v2064, %v2063
        %v2108 = vpack.c.b16 %v2066, %v2065
        %v2109 = vpack.c.b16 %v2068, %v2067
        %v2110 = vpack.c.b16 %v2070, %v2069
        %v2111 = vpack.c.b16 %v2072, %v2071
        %v2112 = vpack.c.b16 %v2074, %v2073
        %v2113 = vpack.c.b16 %v2076, %v2075
        %v2114 = vpack.c.b16 %v2078, %v2077
        %v2115 = vpack.c.b16 %v2080, %v2079
        %v2116 = vpack.c.b16 %v2082, %v2081
        %v2117 = vpack.c.b16 %v2084, %v2083
        %v2118 = vpack.c.b16 %v2086, %v2085
        %2151 = vmatprep.subr.bf16.mxu0 0
        %2152 = vmatpush1.bf16.msra.mxu0 %v2087
        %2153 = vmatprep.subr.bf16.mxu0 0
        %2154 = vmatpush1.bf16.msra.mxu0 %v2088
        %2155 = vmatprep.subr.bf16.mxu0 0
        %2156 = vmatpush1.bf16.msra.mxu0 %v2089
        %2157 = vmatprep.subr.bf16.mxu0 0
        %2158 = vmatpush1.bf16.msra.mxu0 %v2090
        %2159 = vmatprep.subr.bf16.mxu0 0
        %2160 = vmatpush1.bf16.msra.mxu0 %v2091
        %2161 = vmatprep.subr.bf16.mxu0 0
        %2162 = vmatpush1.bf16.msra.mxu0 %v2092
        %2163 = vmatprep.subr.bf16.mxu0 0
        %2164 = vmatpush1.bf16.msra.mxu0 %v2093
        %2165 = vmatprep.subr.bf16.mxu0 0
        %2166 = vmatpush1.bf16.msra.mxu0 %v2094
        %2167 = vmatprep.subr.bf16.mxu0 0
        %2168 = vmatpush1.bf16.msra.mxu0 %v2095
        %2169 = vmatprep.subr.bf16.mxu0 0
        %2170 = vmatpush1.bf16.msra.mxu0 %v2096
        %2171 = vmatprep.subr.bf16.mxu0 0
        %2172 = vmatpush1.bf16.msra.mxu0 %v2097
        %2173 = vmatprep.subr.bf16.mxu0 0
        %2174 = vmatpush1.bf16.msra.mxu0 %v2098
        %2175 = vmatprep.subr.bf16.mxu0 0
        %2176 = vmatpush1.bf16.msra.mxu0 %v2099
        %2177 = vmatprep.subr.bf16.mxu0 0
        %2178 = vmatpush1.bf16.msra.mxu0 %v2100
        %2179 = vmatprep.subr.bf16.mxu0 0
        %2180 = vmatpush1.bf16.msra.mxu0 %v2101
        %2181 = vmatprep.subr.bf16.mxu0 0
        %2182 = vmatpush1.bf16.msra.mxu0 %v2102
        %2183 = vmatprep.mubr.bf16.mxu0 %v1885
        %2184 = vmatmul.mubr.bf16.gmra.mrb[0].mxu0 %v1884
        %v2185 = vpop.f32.mrb[0].mxu0
        %v2186 = vadd.f32 %v1957, %v2185
        %v2187 = vpop.f32.mrb[0].mxu0
        %v2188 = vpop.f32.mrb[0].mxu0
        %v2189 = vadd.f32 %v1957, %v2188
        %v2190 = vpop.f32.mrb[0].mxu0
        %2191 = vdwg.mxu0
        %2192 = vmatprep.subr.bf16.mxu0 0
        %2193 = vmatpush1.bf16.msra.mxu0 %v2103
        %2194 = vmatprep.subr.bf16.mxu0 0
        %2195 = vmatpush1.bf16.msra.mxu0 %v2104
        %2196 = vmatprep.subr.bf16.mxu0 0
        %2197 = vmatpush1.bf16.msra.mxu0 %v2105
        %2198 = vmatprep.subr.bf16.mxu0 0
        %2199 = vmatpush1.bf16.msra.mxu0 %v2106
        %2200 = vmatprep.subr.bf16.mxu0 0
        %2201 = vmatpush1.bf16.msra.mxu0 %v2107
        %2202 = vmatprep.subr.bf16.mxu0 0
        %2203 = vmatpush1.bf16.msra.mxu0 %v2108
        %2204 = vmatprep.subr.bf16.mxu0 0
        %2205 = vmatpush1.bf16.msra.mxu0 %v2109
        %2206 = vmatprep.subr.bf16.mxu0 0
        %2207 = vmatpush1.bf16.msra.mxu0 %v2110
        %2208 = vmatprep.subr.bf16.mxu0 0
        %2209 = vmatpush1.bf16.msra.mxu0 %v2111
        %2210 = vmatprep.subr.bf16.mxu0 0
        %2211 = vmatpush1.bf16.msra.mxu0 %v2112
        %2212 = vmatprep.subr.bf16.mxu0 0
        %2213 = vmatpush1.bf16.msra.mxu0 %v2113
        %2214 = vmatprep.subr.bf16.mxu0 0
        %2215 = vmatpush1.bf16.msra.mxu0 %v2114
        %2216 = vmatprep.subr.bf16.mxu0 0
        %2217 = vmatpush1.bf16.msra.mxu0 %v2115
        %2218 = vmatprep.subr.bf16.mxu0 0
        %2219 = vmatpush1.bf16.msra.mxu0 %v2116
        %2220 = vmatprep.subr.bf16.mxu0 0
        %2221 = vmatpush1.bf16.msra.mxu0 %v2117
        %2222 = vmatprep.subr.bf16.mxu0 0
        %2223 = vmatpush1.bf16.msra.mxu0 %v2118
        %2224 = vmatprep.mubr.bf16.mxu0 %v1887
        %2225 = vmatmul.mubr.bf16.gmra.mrb[0].mxu0 %v1886
        %v2226 = vpop.f32.mrb[0].mxu0
        %v2227 = vadd.f32 %v2186, %v2226
        %v2228 = vpop.f32.mrb[0].mxu0
        %v2229 = vpop.f32.mrb[0].mxu0
        %v2230 = vadd.f32 %v2189, %v2229
        %v2231 = vpop.f32.mrb[0].mxu0
        %2232 = vdwg.mxu0
        %v2233 = vadd.f32 %v530, %v2227
        %v2234 = vadd.f32 %v531, %v2230
        %v2235 = vld [vmem:[%s9] sm:$0x1]
        %v2236 = vld [vmem:[%s10] sm:$0x1]
        %2237 = vadd.xlane.f32.xlu0 %v2233
        %v2238 = vpop.xlane.xlu0 %2237
        %2239 = vadd.xlane.f32.xlu0 %v2234
        %v2240 = vpop.xlane.xlu0 %2239
        %v2241 = vrcp.pop 128.0
        %v2242 = vmul.f32 %v2238, %v2241
        %v2243 = vmul.f32 %v2240, %v2241
        %v2244 = vsub.f32 %v2233, %v2242
        %v2245 = vsub.f32 %v2234, %v2243
        %v2246 = vmul.f32 %v2244, %v2244
        %v2247 = vmul.f32 %v2245, %v2245
        %2248 = vadd.xlane.f32.xlu0 %v2246
        %v2249 = vpop.xlane.xlu0 %2248
        %2250 = vadd.xlane.f32.xlu0 %v2247
        %v2251 = vpop.xlane.xlu0 %2250
        %v2252 = vmul.f32 %v2249, %v2241
        %v2253 = vmul.f32 %v2251, %v2241
        %v2254 = vadd.f32 %v2252, 1e-05
        %v2255 = vadd.f32 %v2253, 1e-05
        %v2256 = vrsqrt.pop %v2254
        %v2257 = vrsqrt.pop %v2255
        %v2258 = vmul.f32 %v2244, %v2256
        %v2259 = vmul.f32 %v2245, %v2257
        %v2261 = vlaneseq
        %v2262 = vshrl.u32 %v2261, 7
        %v2263 = vsub.s32 0, %v2262
        %v2264 = vrot.slane %v2235, %v2263
        %v2266 = vmul.f32 %v2258, %v2264
        %v2267 = vmul.f32 %v2259, %v2264
        %v2269 = vlaneseq
        %v2270 = vshrl.u32 %v2269, 7
        %v2271 = vsub.s32 0, %v2270
        %v2272 = vrot.slane %v2236, %v2271
        %v2274 = vadd.f32 %v2266, %v2272
        %v2275 = vadd.f32 %v2267, %v2272
        %v2276 = vpack.c.bf16 %v2275, %v2274
        %v2277 = vld [vmem:[#allocation10] sm:$0xff]
        %v2278 = vld [vmem:[#allocation10 + $0x8] sm:$0xff]
        %v2279 = vld [vmem:[#allocation10 + $0x10] sm:$0xff]
        %v2280 = vld [vmem:[#allocation10 + $0x18] sm:$0xff]
        %v2281 = vld [vmem:[#allocation10 + $0x20] sm:$0xff]
        %v2282 = vld [vmem:[#allocation10 + $0x28] sm:$0xff]
        %v2283 = vld [vmem:[#allocation10 + $0x30] sm:$0xff]
        %v2284 = vld [vmem:[#allocation10 + $0x38] sm:$0xff]
        %v2285 = vld [vmem:[#allocation10 + $0x40] sm:$0xff]
        %v2286 = vld [vmem:[#allocation10 + $0x48] sm:$0xff]
        %v2287 = vld [vmem:[#allocation10 + $0x50] sm:$0xff]
        %v2288 = vld [vmem:[#allocation10 + $0x58] sm:$0xff]
        %v2289 = vld [vmem:[#allocation10 + $0x60] sm:$0xff]
        %v2290 = vld [vmem:[#allocation10 + $0x68] sm:$0xff]
        %v2291 = vld [vmem:[#allocation10 + $0x70] sm:$0xff]
        %v2292 = vld [vmem:[#allocation10 + $0x78] sm:$0xff]
        %v2293 = vld [vmem:[%s6] sm:$0x3]
        %v2295 = vlaneseq
        %v2296 = vshrl.u32 %v2295, 7
        %v2297 = vsub.s32 0, %v2296
        %v2298 = vrot.slane %v2293, %v2297
        %v2299 = vlaneseq
        %v2300 = vshrl.u32 %v2299, 7
        %v2301 = vsub.s32 1, %v2300
        %v2302 = vrot.slane %v2293, %v2301
        %v2321 = vunpack.c.l.b16 %v2277
        %v2322 = vunpack.c.h.b16 %v2277
        %v2323 = vunpack.c.l.b16 %v2278
        %v2324 = vunpack.c.h.b16 %v2278
        %v2325 = vunpack.c.l.b16 %v2279
        %v2326 = vunpack.c.h.b16 %v2279
        %v2327 = vunpack.c.l.b16 %v2280
        %v2328 = vunpack.c.h.b16 %v2280
        %v2329 = vunpack.c.l.b16 %v2281
        %v2330 = vunpack.c.h.b16 %v2281
        %v2331 = vunpack.c.l.b16 %v2282
        %v2332 = vunpack.c.h.b16 %v2282
        %v2333 = vunpack.c.l.b16 %v2283
        %v2334 = vunpack.c.h.b16 %v2283
        %v2335 = vunpack.c.l.b16 %v2284
        %v2336 = vunpack.c.h.b16 %v2284
        %v2337 = vunpack.c.l.b16 %v2285
        %v2338 = vunpack.c.h.b16 %v2285
        %v2339 = vunpack.c.l.b16 %v2286
        %v2340 = vunpack.c.h.b16 %v2286
        %v2341 = vunpack.c.l.b16 %v2287
        %v2342 = vunpack.c.h.b16 %v2287
        %v2343 = vunpack.c.l.b16 %v2288
        %v2344 = vunpack.c.h.b16 %v2288
        %v2345 = vunpack.c.l.b16 %v2289
        %v2346 = vunpack.c.h.b16 %v2289
        %v2347 = vunpack.c.l.b16 %v2290
        %v2348 = vunpack.c.h.b16 %v2290
        %v2349 = vunpack.c.l.b16 %v2291
        %v2350 = vunpack.c.h.b16 %v2291
        %v2351 = vunpack.c.l.b16 %v2292
        %v2352 = vunpack.c.h.b16 %v2292
        %v2353 = vpack.c.b16 %v2323, %v2321
        %v2354 = vpack.c.b16 %v2324, %v2322
        %v2355 = vpack.c.b16 %v2327, %v2325
        %v2356 = vpack.c.b16 %v2328, %v2326
        %v2357 = vpack.c.b16 %v2331, %v2329
        %v2358 = vpack.c.b16 %v2332, %v2330
        %v2359 = vpack.c.b16 %v2335, %v2333
        %v2360 = vpack.c.b16 %v2336, %v2334
        %v2361 = vpack.c.b16 %v2339, %v2337
        %v2362 = vpack.c.b16 %v2340, %v2338
        %v2363 = vpack.c.b16 %v2343, %v2341
        %v2364 = vpack.c.b16 %v2344, %v2342
        %v2365 = vpack.c.b16 %v2347, %v2345
        %v2366 = vpack.c.b16 %v2348, %v2346
        %v2367 = vpack.c.b16 %v2351, %v2349
        %v2368 = vpack.c.b16 %v2352, %v2350
        %2385 = vmatprep.subr.bf16.mxu0 %v2354
        %2386 = vmatpush1.bf16.msra.mxu0 %v2353
        %2387 = vmatprep.subr.bf16.mxu0 %v2356
        %2388 = vmatpush1.bf16.msra.mxu0 %v2355
        %2389 = vmatprep.subr.bf16.mxu0 %v2358
        %2390 = vmatpush1.bf16.msra.mxu0 %v2357
        %2391 = vmatprep.subr.bf16.mxu0 %v2360
        %2392 = vmatpush1.bf16.msra.mxu0 %v2359
        %2393 = vmatprep.subr.bf16.mxu0 %v2362
        %2394 = vmatpush1.bf16.msra.mxu0 %v2361
        %2395 = vmatprep.subr.bf16.mxu0 %v2364
        %2396 = vmatpush1.bf16.msra.mxu0 %v2363
        %2397 = vmatprep.subr.bf16.mxu0 %v2366
        %2398 = vmatpush1.bf16.msra.mxu0 %v2365
        %2399 = vmatprep.subr.bf16.mxu0 %v2368
        %2400 = vmatpush1.bf16.msra.mxu0 %v2367
        %2401 = vmatprep.subr.bf16.mxu0 0
        %2402 = vmatpush1.bf16.msra.mxu0 0
        %2403 = vmatprep.subr.bf16.mxu0 0
        %2404 = vmatpush1.bf16.msra.mxu0 0
        %2405 = vmatprep.subr.bf16.mxu0 0
        %2406 = vmatpush1.bf16.msra.mxu0 0
        %2407 = vmatprep.subr.bf16.mxu0 0
        %2408 = vmatpush1.bf16.msra.mxu0 0
        %2409 = vmatprep.subr.bf16.mxu0 0
        %2410 = vmatpush1.bf16.msra.mxu0 0
        %2411 = vmatprep.subr.bf16.mxu0 0
        %2412 = vmatpush1.bf16.msra.mxu0 0
        %2413 = vmatprep.subr.bf16.mxu0 0
        %2414 = vmatpush1.bf16.msra.mxu0 0
        %2415 = vmatprep.subr.bf16.mxu0 0
        %2416 = vmatpush1.bf16.msra.mxu0 0
        %2417 = vmatprep.mubr.bf16.mxu0 0
        %2418 = vmatmul.mubr.bf16.gmra.mrb[0].mxu0 %v2276
        %v2419 = vpop.f32.mrb[0].mxu0
        %v2420 = vadd.f32 %v2298, %v2419
        %v2421 = vpop.f32.mrb[0].mxu0
        %v2422 = vadd.f32 %v2302, %v2421
        %v2423 = vpop.f32.mrb[0].mxu0
        %v2424 = vadd.f32 %v2298, %v2423
        %v2425 = vpop.f32.mrb[0].mxu0
        %v2426 = vadd.f32 %v2302, %v2425
        %2427 = vdwg.mxu0
        %v2428 = vmax.f32 %v2420, 0.0
        %v2429 = vmax.f32 %v2422, 0.0
        %v2430 = vmax.f32 %v2424, 0.0
        %v2431 = vmax.f32 %v2426, 0.0
        %v2432 = vpack.c.bf16 %v2430, %v2428
        %v2433 = vpack.c.bf16 %v2431, %v2429
        %v2434 = vld [vmem:[#allocation11] sm:$0xf]
        %v2435 = vld [vmem:[#allocation11 + $0x4] sm:$0xf]
        %v2436 = vld [vmem:[#allocation11 + $0x8] sm:$0xf]
        %v2437 = vld [vmem:[#allocation11 + $0xc] sm:$0xf]
        %v2438 = vld [vmem:[#allocation11 + $0x10] sm:$0xf]
        %v2439 = vld [vmem:[#allocation11 + $0x14] sm:$0xf]
        %v2440 = vld [vmem:[#allocation11 + $0x18] sm:$0xf]
        %v2441 = vld [vmem:[#allocation11 + $0x1c] sm:$0xf]
        %v2442 = vld [vmem:[#allocation11 + $0x20] sm:$0xf]
        %v2443 = vld [vmem:[#allocation11 + $0x24] sm:$0xf]
        %v2444 = vld [vmem:[#allocation11 + $0x28] sm:$0xf]
        %v2445 = vld [vmem:[#allocation11 + $0x2c] sm:$0xf]
        %v2446 = vld [vmem:[#allocation11 + $0x30] sm:$0xf]
        %v2447 = vld [vmem:[#allocation11 + $0x34] sm:$0xf]
        %v2448 = vld [vmem:[#allocation11 + $0x38] sm:$0xf]
        %v2449 = vld [vmem:[#allocation11 + $0x3c] sm:$0xf]
        %v2450 = vld [vmem:[#allocation11 + $0x40] sm:$0xf]
        %v2451 = vld [vmem:[#allocation11 + $0x44] sm:$0xf]
        %v2452 = vld [vmem:[#allocation11 + $0x48] sm:$0xf]
        %v2453 = vld [vmem:[#allocation11 + $0x4c] sm:$0xf]
        %v2454 = vld [vmem:[#allocation11 + $0x50] sm:$0xf]
        %v2455 = vld [vmem:[#allocation11 + $0x54] sm:$0xf]
        %v2456 = vld [vmem:[#allocation11 + $0x58] sm:$0xf]
        %v2457 = vld [vmem:[#allocation11 + $0x5c] sm:$0xf]
        %v2458 = vld [vmem:[#allocation11 + $0x60] sm:$0xf]
        %v2459 = vld [vmem:[#allocation11 + $0x64] sm:$0xf]
        %v2460 = vld [vmem:[#allocation11 + $0x68] sm:$0xf]
        %v2461 = vld [vmem:[#allocation11 + $0x6c] sm:$0xf]
        %v2462 = vld [vmem:[#allocation11 + $0x70] sm:$0xf]
        %v2463 = vld [vmem:[#allocation11 + $0x74] sm:$0xf]
        %v2464 = vld [vmem:[#allocation11 + $0x78] sm:$0xf]
        %v2465 = vld [vmem:[#allocation11 + $0x7c] sm:$0xf]
        %v2466 = vld [vmem:[%s8] sm:$0x1]
        %v2468 = vlaneseq
        %v2469 = vshrl.u32 %v2468, 7
        %v2470 = vsub.s32 0, %v2469
        %v2471 = vrot.slane %v2466, %v2470
        %v2505 = vunpack.c.l.b16 %v2434
        %v2506 = vunpack.c.l.b16 %v2435
        %v2507 = vunpack.c.l.b16 %v2436
        %v2508 = vunpack.c.l.b16 %v2437
        %v2509 = vunpack.c.l.b16 %v2438
        %v2510 = vunpack.c.l.b16 %v2439
        %v2511 = vunpack.c.l.b16 %v2440
        %v2512 = vunpack.c.l.b16 %v2441
        %v2513 = vunpack.c.l.b16 %v2442
        %v2514 = vunpack.c.l.b16 %v2443
        %v2515 = vunpack.c.l.b16 %v2444
        %v2516 = vunpack.c.l.b16 %v2445
        %v2517 = vunpack.c.l.b16 %v2446
        %v2518 = vunpack.c.l.b16 %v2447
        %v2519 = vunpack.c.l.b16 %v2448
        %v2520 = vunpack.c.l.b16 %v2449
        %v2521 = vunpack.c.l.b16 %v2450
        %v2522 = vunpack.c.l.b16 %v2451
        %v2523 = vunpack.c.l.b16 %v2452
        %v2524 = vunpack.c.l.b16 %v2453
        %v2525 = vunpack.c.l.b16 %v2454
        %v2526 = vunpack.c.l.b16 %v2455
        %v2527 = vunpack.c.l.b16 %v2456
        %v2528 = vunpack.c.l.b16 %v2457
        %v2529 = vunpack.c.l.b16 %v2458
        %v2530 = vunpack.c.l.b16 %v2459
        %v2531 = vunpack.c.l.b16 %v2460
        %v2532 = vunpack.c.l.b16 %v2461
        %v2533 = vunpack.c.l.b16 %v2462
        %v2534 = vunpack.c.l.b16 %v2463
        %v2535 = vunpack.c.l.b16 %v2464
        %v2536 = vunpack.c.l.b16 %v2465
        %v2537 = vpack.c.b16 %v2506, %v2505
        %v2538 = vpack.c.b16 %v2508, %v2507
        %v2539 = vpack.c.b16 %v2510, %v2509
        %v2540 = vpack.c.b16 %v2512, %v2511
        %v2541 = vpack.c.b16 %v2514, %v2513
        %v2542 = vpack.c.b16 %v2516, %v2515
        %v2543 = vpack.c.b16 %v2518, %v2517
        %v2544 = vpack.c.b16 %v2520, %v2519
        %v2545 = vpack.c.b16 %v2522, %v2521
        %v2546 = vpack.c.b16 %v2524, %v2523
        %v2547 = vpack.c.b16 %v2526, %v2525
        %v2548 = vpack.c.b16 %v2528, %v2527
        %v2549 = vpack.c.b16 %v2530, %v2529
        %v2550 = vpack.c.b16 %v2532, %v2531
        %v2551 = vpack.c.b16 %v2534, %v2533
        %v2552 = vpack.c.b16 %v2536, %v2535
        %2569 = vmatprep.subr.bf16.mxu0 0
        %2570 = vmatpush1.bf16.msra.mxu0 %v2537
        %2571 = vmatprep.subr.bf16.mxu0 0
        %2572 = vmatpush1.bf16.msra.mxu0 %v2538
        %2573 = vmatprep.subr.bf16.mxu0 0
        %2574 = vmatpush1.bf16.msra.mxu0 %v2539
        %2575 = vmatprep.subr.bf16.mxu0 0
        %2576 = vmatpush1.bf16.msra.mxu0 %v2540
        %2577 = vmatprep.subr.bf16.mxu0 0
        %2578 = vmatpush1.bf16.msra.mxu0 %v2541
        %2579 = vmatprep.subr.bf16.mxu0 0
        %2580 = vmatpush1.bf16.msra.mxu0 %v2542
        %2581 = vmatprep.subr.bf16.mxu0 0
        %2582 = vmatpush1.bf16.msra.mxu0 %v2543
        %2583 = vmatprep.subr.bf16.mxu0 0
        %2584 = vmatpush1.bf16.msra.mxu0 %v2544
        %2585 = vmatprep.subr.bf16.mxu0 0
        %2586 = vmatpush1.bf16.msra.mxu0 %v2545
        %2587 = vmatprep.subr.bf16.mxu0 0
        %2588 = vmatpush1.bf16.msra.mxu0 %v2546
        %2589 = vmatprep.subr.bf16.mxu0 0
        %2590 = vmatpush1.bf16.msra.mxu0 %v2547
        %2591 = vmatprep.subr.bf16.mxu0 0
        %2592 = vmatpush1.bf16.msra.mxu0 %v2548
        %2593 = vmatprep.subr.bf16.mxu0 0
        %2594 = vmatpush1.bf16.msra.mxu0 %v2549
        %2595 = vmatprep.subr.bf16.mxu0 0
        %2596 = vmatpush1.bf16.msra.mxu0 %v2550
        %2597 = vmatprep.subr.bf16.mxu0 0
        %2598 = vmatpush1.bf16.msra.mxu0 %v2551
        %2599 = vmatprep.subr.bf16.mxu0 0
        %2600 = vmatpush1.bf16.msra.mxu0 %v2552
        %2601 = vmatprep.mubr.bf16.mxu0 %v2433
        %2602 = vmatmul.mubr.bf16.gmra.mrb[0].mxu0 %v2432
        %v2603 = vpop.f32.mrb[0].mxu0
        %v2604 = vadd.f32 %v2471, %v2603
        %v2605 = vpop.f32.mrb[0].mxu0
        %v2606 = vpop.f32.mrb[0].mxu0
        %v2607 = vadd.f32 %v2471, %v2606
        %v2608 = vpop.f32.mrb[0].mxu0
        %2609 = vdwg.mxu0
        %v2610 = vadd.f32 %v2274, %v2604
        %v2611 = vadd.f32 %v2275, %v2607
        %v2612 = vld [vmem:[%s11] sm:$0x1]
        %v2613 = vld [vmem:[%s12] sm:$0x1]
        %2614 = vadd.xlane.f32.xlu0 %v2610
        %v2615 = vpop.xlane.xlu0 %2614
        %2616 = vadd.xlane.f32.xlu0 %v2611
        %v2617 = vpop.xlane.xlu0 %2616
        %v2618 = vmul.f32 %v2615, %v2241
        %v2619 = vmul.f32 %v2617, %v2241
        %v2620 = vsub.f32 %v2610, %v2618
        %v2621 = vsub.f32 %v2611, %v2619
        %v2622 = vmul.f32 %v2620, %v2620
        %v2623 = vmul.f32 %v2621, %v2621
        %2624 = vadd.xlane.f32.xlu0 %v2622
        %v2625 = vpop.xlane.xlu0 %2624
        %2626 = vadd.xlane.f32.xlu0 %v2623
        %v2627 = vpop.xlane.xlu0 %2626
        %v2628 = vmul.f32 %v2625, %v2241
        %v2629 = vmul.f32 %v2627, %v2241
        %v2630 = vadd.f32 %v2628, 1e-05
        %v2631 = vadd.f32 %v2629, 1e-05
        %v2632 = vrsqrt.pop %v2630
        %v2633 = vrsqrt.pop %v2631
        %v2634 = vmul.f32 %v2620, %v2632
        %v2635 = vmul.f32 %v2621, %v2633
        %v2637 = vlaneseq
        %v2638 = vshrl.u32 %v2637, 7
        %v2639 = vsub.s32 0, %v2638
        %v2640 = vrot.slane %v2612, %v2639
        %v2642 = vmul.f32 %v2634, %v2640
        %v2643 = vmul.f32 %v2635, %v2640
        %v2645 = vlaneseq
        %v2646 = vshrl.u32 %v2645, 7
        %v2647 = vsub.s32 0, %v2646
        %v2648 = vrot.slane %v2613, %v2647
        %v2650 = vadd.f32 %v2642, %v2648
        %v2651 = vadd.f32 %v2643, %v2648
        %2652 = vst [vmem:[%s528] sm:$0xff] %v2650
        %2653 = vst [vmem:[%s528 + $0x8] sm:$0xff] %v2651
        %s2654 = sand.u32 %s319, 1
        %s2655 = scalar_lea.sflag [#allocation4], %s2654
        %s2656 = sand.u32 %s319, 1
        %s2657 = smul.addr %s2656, 16
        %s2658 = scalar_lea.vmem [#allocation13], %s2657
        // Predicated region
        $region97: #{tpu_custom_call.1} parent=71 // pred_check
          %p2659 = pneg %p329
        $region98: #{tpu_custom_call.1} parent=71 // pred_check_branch
          %2661 = sbr.rel (%p2659) target = $region100
        $region99: #{tpu_custom_call.1} parent=71 // pred_region
          %s2663 = ssub.s32 256, 256
          %2664 = vsyncadd %s2655, %s2663
          %s2665 = smul.addr %s33, 128
          %s2666 = scalar_lea.hbm %s13, %s2665
          %s2667 = sshll.u32 %s2658, 4
          %s2668 = int_to_ptr.vmem [resolvable:$true] %s2667
          %2673 = dma.vmem_to_hbm [thread:$0]  %s2668, 256, %s2666, %s2655, 128, 256, 8
        $region100: #{tpu_custom_call.1} parent=71 // pred_fallthru
          _
      $region72: #{tpu_custom_call.1} parent=5 // pred_fallthru
        _
      %p2674 = scmp.le.s32.totalorder 2, %s28
      // Predicated region
      $region101: #{tpu_custom_call.1} parent=5 // pred_check
        %p2675 = pneg %p2674
      $region102: #{tpu_custom_call.1} parent=5 // pred_check_branch
        %2677 = sbr.rel (%p2675) target = $region104
      $region103: #{tpu_custom_call.1} parent=5 // pred_region
        %s2678 = ssub.s32 %s28, 2
        // Predicated region
        $region105: #{tpu_custom_call.1} parent=103 // pred_check
          %p2679 = pneg %p335
        $region106: #{tpu_custom_call.1} parent=103 // pred_check_branch
          %2681 = sbr.rel (%p2679) target = $region108
        $region107: #{tpu_custom_call.1} parent=103 // pred_region
          %s2682 = sand.u32 %s320, 1
          %s2683 = scalar_lea.sflag [#allocation4], %s2682
          %s2684 = sand.u32 %s320, 1
          %s2685 = smul.addr %s2684, 16
          %s2686 = scalar_lea.vmem [#allocation13], %s2685
          %2687 = dma.done %s2683, 256
        $region108: #{tpu_custom_call.1} parent=103 // pred_fallthru
          _
      $region104: #{tpu_custom_call.1} parent=5 // pred_fallthru
        _
    $region6: #{tpu_custom_call.1} parent=1 // loop_footer
      %s32 = sadd.s32 1, %s28
    $region7: #{tpu_custom_call.1} parent=1 // loop_footer_branch
      %27 = sbr.rel target = $region3
    $region8: #{tpu_custom_call.1} parent=1 // loop_exit
      _
    %2688 = vsyncpa [#allocation3], 1
    %s2689 = scalar_lea.sflag [#allocation3], 1
    %2690 = vsyncpa %s2689, 1
    %2691 = vsyncpa [#allocation6], 1
    %2692 = vsyncpa [#allocation9], 1
    %2693 = vsyncpa [#allocation12], 1
    %2694 = vsyncpa [#allocation4], 1
    %s2695 = scalar_lea.sflag [#allocation4], 1
    %2696 = vsyncpa %s2695, 1

// kernel: tpu_custom_call.1
$region0: #{tpu_custom_call.1}
  #allocation0 [shape = 'u32[]', space=smem, size = 0x4, offset = 0x4, fixed_abs, tag = 'smem constant byte address 0x4 - core index']
  #allocation1 [shape = 'u32[144,128]{1,0:T(1,128)}', space=vmem, size = 0x12000, scoped, tag = 'internal scratch']
  %s0 = inlined_call_operand.hbm [shape: f32[16,256], index: 0, kind: input, shape index: {}]
  %s1 = inlined_call_operand.hbm [shape: bf16[128,1536], index: 1, kind: input, shape index: {}]
  %s2 = inlined_call_operand.hbm [shape: f32[1,1536], index: 2, kind: input, shape index: {}]
  %s3 = inlined_call_operand.hbm [shape: bf16[512,128], index: 3, kind: input, shape index: {}]
  %s4 = inlined_call_operand.vmem [shape: f32[1,128], index: 4, kind: input, shape index: {}]
  %s5 = inlined_call_operand.hbm [shape: bf16[128,256], index: 5, kind: input, shape index: {}]
  %s6 = inlined_call_operand.vmem [shape: f32[1,256], index: 6, kind: input, shape index: {}]
  %s7 = inlined_call_operand.hbm [shape: bf16[256,128], index: 7, kind: input, shape index: {}]
  %s8 = inlined_call_operand.vmem [shape: f32[1,128], index: 8, kind: input, shape index: {}]
  %s9 = inlined_call_operand.vmem [shape: f32[1,128], index: 9, kind: input, shape index: {}]
  %s10 = inlined_call_operand.vmem [shape: f32[1,128], index: 10, kind: input, shape index: {}]
  %s11 = inlined_call_operand.vmem [shape: f32[1,128], index: 11, kind: input, shape index: {}]
  %s12 = inlined_call_operand.vmem [shape: f32[1,128], index: 12, kind: input, shape index: {}]
  %s13 = inlined_call_operand.hbm [shape: f32[16,256], index: 13, kind: output, shape index: {}]
  %s14 = sld [smem:[#allocation0]]
  $region109: #{tpu_custom_call.1} parent=0
    _
  %s16 = ssub.s32 1, %s14
  %s17 = scalar_select 0, %s16, %s14
  $region1: #{tpu_custom_call.1} parent=0
    #allocation2 [shape = 'u8[16384]{0}', space=vmem, size = 0x4000, scoped, tag = 'input window, operand 0']
    #allocation3 [shape = 's32[2]{0}', space=sflag, size = 0x8, scoped, tag = 'scoped memory for tpu_custom_call.1']
    #allocation4 [shape = 's32[2]{0}', space=sflag, size = 0x8, scoped, tag = 'scoped memory for tpu_custom_call.1']
    #allocation5 [shape = 'u8[393216]{0}', space=vmem, size = 0x60000, scoped, tag = 'input window, operand 1, single buffered']
    #allocation6 [shape = 's32[1]{0}', space=sflag, size = 0x4, scoped, tag = 'scoped memory for tpu_custom_call.1']
    #allocation7 [shape = 'u8[6144]{0}', space=vmem, size = 0x1800, scoped, tag = 'input window, operand 2, single buffered']
    #allocation8 [shape = 'u8[131072]{0}', space=vmem, size = 0x20000, scoped, tag = 'input window, operand 3, single buffered']
    #allocation9 [shape = 's32[1]{0}', space=sflag, size = 0x4, scoped, tag = 'scoped memory for tpu_custom_call.1']
    #allocation10 [shape = 'u8[65536]{0}', space=vmem, size = 0x10000, scoped, tag = 'input window, operand 5, single buffered']
    #allocation11 [shape = 'u8[65536]{0}', space=vmem, size = 0x10000, scoped, tag = 'input window, operand 7, single buffered']
    #allocation12 [shape = 's32[1]{0}', space=sflag, size = 0x4, scoped, tag = 'scoped memory for tpu_custom_call.1']
    #allocation13 [shape = 'u8[16384]{0}', space=vmem, size = 0x4000, scoped, tag = 'output window, operand 0']
    %18 = vsyncpa [#allocation3], 0
    %s19 = scalar_lea.sflag [#allocation3], 1
    %20 = vsyncpa %s19, 0
    %21 = vsyncpa [#allocation6], 0
    %22 = vsyncpa [#allocation9], 0
    %23 = vsyncpa [#allocation12], 0
    %24 = vsyncpa [#allocation4], 0
    %s25 = scalar_lea.sflag [#allocation4], 1
    %26 = vsyncpa %s25, 0
    loop: start=0, step=1, limit=4
    $region2: #{tpu_custom_call.1} parent=1 // loop_pre_header
      _
    $region3: #{tpu_custom_call.1} parent=1 // loop_header
      %s28 = sphi 0, %s32
      %p29 = scmp.ge.s32.totalorder %s28, 4
      %s38 = sphi 0, %s40
      %s41 = sphi 0, %s38
      %s42 = sphi 0, %s41
      %s58 = sphi 0, %s42
      %s62 = sphi 0, %s62
      %s64 = sphi 0, %s62
      %s65 = sphi 0, %s64
      %s79 = sphi 0, %s65
      %s83 = sphi 0, %s83
      %s85 = sphi 0, %s83
      %s86 = sphi 0, %s85
      %s100 = sphi 0, %s86
      %s104 = sphi 0, %s104
      %s106 = sphi 0, %s104
      %s107 = sphi 0, %s106
      %s121 = sphi 0, %s107
      %s125 = sphi 0, %s125
      %s127 = sphi 0, %s125
      %s128 = sphi 0, %s127
      %s142 = sphi 0, %s128
      %s146 = sphi 0, %s146
      %s148 = sphi 0, %s146
      %s149 = sphi 0, %s148
      %s163 = sphi 0, %s149
      %s167 = sphi 0, %s167
      %s169 = sphi 0, %s167
      %s170 = sphi 0, %s169
      %s184 = sphi 0, %s170
      %s188 = sphi 0, %s188
      %s190 = sphi 0, %s188
      %s191 = sphi 0, %s190
      %s205 = sphi 0, %s191
      %s209 = sphi 0, %s209
      %s211 = sphi 0, %s209
      %s212 = sphi 0, %s211
      %s226 = sphi 0, %s212
      %s230 = sphi 0, %s230
      %s232 = sphi 0, %s230
      %s233 = sphi 0, %s232
      %s247 = sphi 0, %s233
      %s251 = sphi 0, %s251
      %s253 = sphi 0, %s251
      %s254 = sphi 0, %s253
      %s268 = sphi 0, %s254
      %s272 = sphi 0, %s272
      %s274 = sphi 0, %s272
      %s275 = sphi 0, %s274
      %s289 = sphi 0, %s275
      %s293 = sphi 0, %s293
      %s295 = sphi 0, %s293
      %s296 = sphi 0, %s295
      %s310 = sphi 0, %s296
      %s316 = sphi 0, %s318
      %s319 = sphi 0, %s316
      %s320 = sphi 0, %s319
      %s336 = sphi 0, %s320
    $region4: #{tpu_custom_call.1} parent=1 // loop_header_branch
      %31 = sbr.rel (%p29) target = $region8
    $region5: #{tpu_custom_call.1} parent=1 // loop_body
      %s33 = ssub.s32 %s28, 1
      %s34 = ssub.s32 %s28, 2
      %s35 = sadd.s32 %s28, 1
      %s36 = ssub.s32 %s28, %s35
      %p37 = scmp.eq.s32.totalorder %s36, 0
      %s39 = sadd.s32 %s38, 1
      %s40 = scalar_select %p37, %s38, %s39
      %p43 = pneg %p37
      %p44 = scmp.eq.s32.totalorder %s28, 1
      %p45 = por %p43, %p44
      %p46 = scmp.ne.s32.totalorder %s38, %s41
      %p47 = scmp.eq.s32.totalorder %s28, 0
      %p48 = por %p46, %p47
      %p49 = scmp.ne.s32.totalorder %s38, %s41
      %p50 = scmp.eq.s32.totalorder %s33, 1
      %p51 = por %p49, %p50
      %p52 = scmp.ne.s32.totalorder %s41, %s42
      %p53 = scmp.eq.s32.totalorder %s33, 0
      %p54 = por %p52, %p53
      %p55 = scmp.ne.s32.totalorder %s41, %s42
      %p56 = scmp.eq.s32.totalorder %s34, 1
      %p57 = por %p55, %p56
      %p59 = scmp.ne.s32.totalorder %s42, %s58
      %p60 = scmp.eq.s32.totalorder %s34, 0
      %p61 = por %p59, %p60
      %s63 = sadd.s32 %s62, 1
      %p66 = scmp.eq.s32.totalorder %s28, 1
      %p67 = scmp.ne.s32.totalorder %s62, %s64
      %p68 = scmp.eq.s32.totalorder %s28, 0
      %p69 = por %p67, %p68
      %p70 = scmp.ne.s32.totalorder %s62, %s64
      %p71 = scmp.eq.s32.totalorder %s33, 1
      %p72 = por %p70, %p71
      %p73 = scmp.ne.s32.totalorder %s64, %s65
      %p74 = scmp.eq.s32.totalorder %s33, 0
      %p75 = por %p73, %p74
      %p76 = scmp.ne.s32.totalorder %s64, %s65
      %p77 = scmp.eq.s32.totalorder %s34, 1
      %p78 = por %p76, %p77
      %p80 = scmp.ne.s32.totalorder %s65, %s79
      %p81 = scmp.eq.s32.totalorder %s34, 0
      %p82 = por %p80, %p81
      %s84 = sadd.s32 %s83, 1
      %p87 = scmp.eq.s32.totalorder %s28, 1
      %p88 = scmp.ne.s32.totalorder %s83, %s85
      %p89 = scmp.eq.s32.totalorder %s28, 0
      %p90 = por %p88, %p89
      %p91 = scmp.ne.s32.totalorder %s83, %s85
      %p92 = scmp.eq.s32.totalorder %s33, 1
      %p93 = por %p91, %p92
      %p94 = scmp.ne.s32.totalorder %s85, %s86
      %p95 = scmp.eq.s32.totalorder %s33, 0
      %p96 = por %p94, %p95
      %p97 = scmp.ne.s32.totalorder %s85, %s86
      %p98 = scmp.eq.s32.totalorder %s34, 1
      %p99 = por %p97, %p98
      %p101 = scmp.ne.s32.totalorder %s86, %s100
      %p102 = scmp.eq.s32.totalorder %s34, 0
      %p103 = por %p101, %p102
      %s105 = sadd.s32 %s104, 1
      %p108 = scmp.eq.s32.totalorder %s28, 1
      %p109 = scmp.ne.s32.totalorder %s104, %s106
      %p110 = scmp.eq.s32.totalorder %s28, 0
      %p111 = por %p109, %p110
      %p112 = scmp.ne.s32.totalorder %s104, %s106
      %p113 = scmp.eq.s32.totalorder %s33, 1
      %p114 = por %p112, %p113
      %p115 = scmp.ne.s32.totalorder %s106, %s107
      %p116 = scmp.eq.s32.totalorder %s33, 0
      %p117 = por %p115, %p116
      %p118 = scmp.ne.s32.totalorder %s106, %s107
      %p119 = scmp.eq.s32.totalorder %s34, 1
      %p120 = por %p118, %p119
      %p122 = scmp.ne.s32.totalorder %s107, %s121
      %p123 = scmp.eq.s32.totalorder %s34, 0
      %p124 = por %p122, %p123
      %s126 = sadd.s32 %s125, 1
      %p129 = scmp.eq.s32.totalorder %s28, 1
      %p130 = scmp.ne.s32.totalorder %s125, %s127
      %p131 = scmp.eq.s32.totalorder %s28, 0
      %p132 = por %p130, %p131
      %p133 = scmp.ne.s32.totalorder %s125, %s127
      %p134 = scmp.eq.s32.totalorder %s33, 1
      %p135 = por %p133, %p134
      %p136 = scmp.ne.s32.totalorder %s127, %s128
      %p137 = scmp.eq.s32.totalorder %s33, 0
      %p138 = por %p136, %p137
      %p139 = scmp.ne.s32.totalorder %s127, %s128
      %p140 = scmp.eq.s32.totalorder %s34, 1
      %p141 = por %p139, %p140
      %p143 = scmp.ne.s32.totalorder %s128, %s142
      %p144 = scmp.eq.s32.totalorder %s34, 0
      %p145 = por %p143, %p144
      %s147 = sadd.s32 %s146, 1
      %p150 = scmp.eq.s32.totalorder %s28, 1
      %p151 = scmp.ne.s32.totalorder %s146, %s148
      %p152 = scmp.eq.s32.totalorder %s28, 0
      %p153 = por %p151, %p152
      %p154 = scmp.ne.s32.totalorder %s146, %s148
      %p155 = scmp.eq.s32.totalorder %s33, 1
      %p156 = por %p154, %p155
      %p157 = scmp.ne.s32.totalorder %s148, %s149
      %p158 = scmp.eq.s32.totalorder %s33, 0
      %p159 = por %p157, %p158
      %p160 = scmp.ne.s32.totalorder %s148, %s149
      %p161 = scmp.eq.s32.totalorder %s34, 1
      %p162 = por %p160, %p161
      %p164 = scmp.ne.s32.totalorder %s149, %s163
      %p165 = scmp.eq.s32.totalorder %s34, 0
      %p166 = por %p164, %p165
      %s168 = sadd.s32 %s167, 1
      %p171 = scmp.eq.s32.totalorder %s28, 1
      %p172 = scmp.ne.s32.totalorder %s167, %s169
      %p173 = scmp.eq.s32.totalorder %s28, 0
      %p174 = por %p172, %p173
      %p175 = scmp.ne.s32.totalorder %s167, %s169
      %p176 = scmp.eq.s32.totalorder %s33, 1
      %p177 = por %p175, %p176
      %p178 = scmp.ne.s32.totalorder %s169, %s170
      %p179 = scmp.eq.s32.totalorder %s33, 0
      %p180 = por %p178, %p179
      %p181 = scmp.ne.s32.totalorder %s169, %s170
      %p182 = scmp.eq.s32.totalorder %s34, 1
      %p183 = por %p181, %p182
      %p185 = scmp.ne.s32.totalorder %s170, %s184
      %p186 = scmp.eq.s32.totalorder %s34, 0
      %p187 = por %p185, %p186
      %s189 = sadd.s32 %s188, 1
      %p192 = scmp.eq.s32.totalorder %s28, 1
      %p193 = scmp.ne.s32.totalorder %s188, %s190
      %p194 = scmp.eq.s32.totalorder %s28, 0
      %p195 = por %p193, %p194
      %p196 = scmp.ne.s32.totalorder %s188, %s190
      %p197 = scmp.eq.s32.totalorder %s33, 1
      %p198 = por %p196, %p197
      %p199 = scmp.ne.s32.totalorder %s190, %s191
      %p200 = scmp.eq.s32.totalorder %s33, 0
      %p201 = por %p199, %p200
      %p202 = scmp.ne.s32.totalorder %s190, %s191
      %p203 = scmp.eq.s32.totalorder %s34, 1
      %p204 = por %p202, %p203
      %p206 = scmp.ne.s32.totalorder %s191, %s205
      %p207 = scmp.eq.s32.totalorder %s34, 0
      %p208 = por %p206, %p207
      %s210 = sadd.s32 %s209, 1
      %p213 = scmp.eq.s32.totalorder %s28, 1
      %p214 = scmp.ne.s32.totalorder %s209, %s211
      %p215 = scmp.eq.s32.totalorder %s28, 0
      %p216 = por %p214, %p215
      %p217 = scmp.ne.s32.totalorder %s209, %s211
      %p218 = scmp.eq.s32.totalorder %s33, 1
      %p219 = por %p217, %p218
      %p220 = scmp.ne.s32.totalorder %s211, %s212
      %p221 = scmp.eq.s32.totalorder %s33, 0
      %p222 = por %p220, %p221
      %p223 = scmp.ne.s32.totalorder %s211, %s212
      %p224 = scmp.eq.s32.totalorder %s34, 1
      %p225 = por %p223, %p224
      %p227 = scmp.ne.s32.totalorder %s212, %s226
      %p228 = scmp.eq.s32.totalorder %s34, 0
      %p229 = por %p227, %p228
      %s231 = sadd.s32 %s230, 1
      %p234 = scmp.eq.s32.totalorder %s28, 1
      %p235 = scmp.ne.s32.totalorder %s230, %s232
      %p236 = scmp.eq.s32.totalorder %s28, 0
      %p237 = por %p235, %p236
      %p238 = scmp.ne.s32.totalorder %s230, %s232
      %p239 = scmp.eq.s32.totalorder %s33, 1
      %p240 = por %p238, %p239
      %p241 = scmp.ne.s32.totalorder %s232, %s233
      %p242 = scmp.eq.s32.totalorder %s33, 0
      %p243 = por %p241, %p242
      %p244 = scmp.ne.s32.totalorder %s232, %s233
      %p245 = scmp.eq.s32.totalorder %s34, 1
      %p246 = por %p244, %p245
      %p248 = scmp.ne.s32.totalorder %s233, %s247
      %p249 = scmp.eq.s32.totalorder %s34, 0
      %p250 = por %p248, %p249
      %s252 = sadd.s32 %s251, 1
      %p255 = scmp.eq.s32.totalorder %s28, 1
      %p256 = scmp.ne.s32.totalorder %s251, %s253
      %p257 = scmp.eq.s32.totalorder %s28, 0
      %p258 = por %p256, %p257
      %p259 = scmp.ne.s32.totalorder %s251, %s253
      %p260 = scmp.eq.s32.totalorder %s33, 1
      %p261 = por %p259, %p260
      %p262 = scmp.ne.s32.totalorder %s253, %s254
      %p263 = scmp.eq.s32.totalorder %s33, 0
      %p264 = por %p262, %p263
      %p265 = scmp.ne.s32.totalorder %s253, %s254
      %p266 = scmp.eq.s32.totalorder %s34, 1
      %p267 = por %p265, %p266
      %p269 = scmp.ne.s32.totalorder %s254, %s268
      %p270 = scmp.eq.s32.totalorder %s34, 0
      %p271 = por %p269, %p270
      %s273 = sadd.s32 %s272, 1
      %p276 = scmp.eq.s32.totalorder %s28, 1
      %p277 = scmp.ne.s32.totalorder %s272, %s274
      %p278 = scmp.eq.s32.totalorder %s28, 0
      %p279 = por %p277, %p278
      %p280 = scmp.ne.s32.totalorder %s272, %s274
      %p281 = scmp.eq.s32.totalorder %s33, 1
      %p282 = por %p280, %p281
      %p283 = scmp.ne.s32.totalorder %s274, %s275
      %p284 = scmp.eq.s32.totalorder %s33, 0
      %p285 = por %p283, %p284
      %p286 = scmp.ne.s32.totalorder %s274, %s275
      %p287 = scmp.eq.s32.totalorder %s34, 1
      %p288 = por %p286, %p287
      %p290 = scmp.ne.s32.totalorder %s275, %s289
      %p291 = scmp.eq.s32.totalorder %s34, 0
      %p292 = por %p290, %p291
      %s294 = sadd.s32 %s293, 1
      %p297 = scmp.eq.s32.totalorder %s28, 1
      %p298 = scmp.ne.s32.totalorder %s293, %s295
      %p299 = scmp.eq.s32.totalorder %s28, 0
      %p300 = por %p298, %p299
      %p301 = scmp.ne.s32.totalorder %s293, %s295
      %p302 = scmp.eq.s32.totalorder %s33, 1
      %p303 = por %p301, %p302
      %p304 = scmp.ne.s32.totalorder %s295, %s296
      %p305 = scmp.eq.s32.totalorder %s33, 0
      %p306 = por %p304, %p305
      %p307 = scmp.ne.s32.totalorder %s295, %s296
      %p308 = scmp.eq.s32.totalorder %s34, 1
      %p309 = por %p307, %p308
      %p311 = scmp.ne.s32.totalorder %s296, %s310
      %p312 = scmp.eq.s32.totalorder %s34, 0
      %p313 = por %p311, %p312
      %s314 = ssub.s32 %s28, %s35
      %p315 = scmp.eq.s32.totalorder %s314, 0
      %s317 = sadd.s32 %s316, 1
      %s318 = scalar_select %p315, %s316, %s317
      %p321 = pneg %p315
      %p322 = scmp.eq.s32.totalorder %s28, 1
      %p323 = por %p321, %p322
      %p324 = scmp.ne.s32.totalorder %s316, %s319
      %p325 = scmp.eq.s32.totalorder %s28, 0
      %p326 = por %p324, %p325
      %p327 = scmp.ne.s32.totalorder %s316, %s319
      %p328 = scmp.eq.s32.totalorder %s33, 1
      %p329 = por %p327, %p328
      %p330 = scmp.ne.s32.totalorder %s319, %s320
      %p331 = scmp.eq.s32.totalorder %s33, 0
      %p332 = por %p330, %p331
      %p333 = scmp.ne.s32.totalorder %s319, %s320
      %p334 = scmp.eq.s32.totalorder %s34, 1
      %p335 = por %p333, %p334
      %p337 = scmp.ne.s32.totalorder %s320, %s336
      %p338 = scmp.eq.s32.totalorder %s34, 0
      %p339 = por %p337, %p338
      %p340 = scmp.le.s32.totalorder 1, %s28
      %p341 = scmp.lt.s32.totalorder %s28, 3
      %p342 = pnand %p340, %p341
      %p343 = pneg %p342
      // Predicated region
      $region9: #{tpu_custom_call.1} parent=5 // pred_check
        _
      $region10: #{tpu_custom_call.1} parent=5 // pred_check_branch
        %345 = sbr.rel (%p342) target = $region12
      $region11: #{tpu_custom_call.1} parent=5 // pred_region
        %s346 = ssub.s32 %s28, 1
        // Predicated region
        $region13: #{tpu_custom_call.1} parent=11 // pred_check
          %p347 = pneg %p75
        $region14: #{tpu_custom_call.1} parent=11 // pred_check_branch
          %349 = sbr.rel (%p347) target = $region16
        $region15: #{tpu_custom_call.1} parent=11 // pred_region
          %s351 = ssub.s32 12288, 12288
          %352 = vsyncadd [#allocation6], %s351
          %s353 = sshll.u32 [#allocation5], 4
          %s354 = int_to_ptr.vmem [resolvable:$true] %s353
          %359 = dma.hbm_to_vmem [thread:$0]  %s1, 12288, %s354, [#allocation6], 768, 768, 48
        $region16: #{tpu_custom_call.1} parent=11 // pred_fallthru
          _
        // Predicated region
        $region17: #{tpu_custom_call.1} parent=11 // pred_check
          %p360 = pneg %p96
        $region18: #{tpu_custom_call.1} parent=11 // pred_check_branch
          %362 = sbr.rel (%p360) target = $region20
        $region19: #{tpu_custom_call.1} parent=11 // pred_region
          %s364 = ssub.s32 192, 192
          %365 = vsyncadd [#allocation6], %s364
          %s367 = sshll.u32 [#allocation7], 4
          %s368 = int_to_ptr.vmem [resolvable:$true] %s367
          %370 = dma.hbm_to_vmem [thread:$0]  %s2, 192, %s368, [#allocation6]
        $region20: #{tpu_custom_call.1} parent=11 // pred_fallthru
          _
        // Predicated region
        $region21: #{tpu_custom_call.1} parent=11 // pred_check
          %p371 = pneg %p117
        $region22: #{tpu_custom_call.1} parent=11 // pred_check_branch
          %373 = sbr.rel (%p371) target = $region24
        $region23: #{tpu_custom_call.1} parent=11 // pred_region
          %s375 = ssub.s32 4096, 4096
          %376 = vsyncadd [#allocation9], %s375
          %s377 = sshll.u32 [#allocation8], 4
          %s378 = int_to_ptr.vmem [resolvable:$true] %s377
          %383 = dma.hbm_to_vmem [thread:$0]  %s3, 4096, %s378, [#allocation9], 64, 64, 4
        $region24: #{tpu_custom_call.1} parent=11 // pred_fallthru
          _
        // Predicated region
        $region25: #{tpu_custom_call.1} parent=11 // pred_check
          %p384 = pneg %p138
        $region26: #{tpu_custom_call.1} parent=11 // pred_check_branch
          %386 = sbr.rel (%p384) target = $region28
        $region27: #{tpu_custom_call.1} parent=11 // pred_region
          _
        $region28: #{tpu_custom_call.1} parent=11 // pred_fallthru
          _
        // Predicated region
        $region29: #{tpu_custom_call.1} parent=11 // pred_check
          %p387 = pneg %p159
        $region30: #{tpu_custom_call.1} parent=11 // pred_check_branch
          %389 = sbr.rel (%p387) target = $region32
        $region31: #{tpu_custom_call.1} parent=11 // pred_region
          %s391 = ssub.s32 2048, 2048
          %392 = vsyncadd [#allocation9], %s391
          %s393 = sshll.u32 [#allocation10], 4
          %s394 = int_to_ptr.vmem [resolvable:$true] %s393
          %399 = dma.hbm_to_vmem [thread:$0]  %s5, 2048, %s394, [#allocation9], 128, 128, 8
        $region32: #{tpu_custom_call.1} parent=11 // pred_fallthru
          _
        // Predicated region
        $region33: #{tpu_custom_call.1} parent=11 // pred_check
          %p400 = pneg %p180
        $region34: #{tpu_custom_call.1} parent=11 // pred_check_branch
          %402 = sbr.rel (%p400) target = $region36
        $region35: #{tpu_custom_call.1} parent=11 // pred_region
          _
        $region36: #{tpu_custom_call.1} parent=11 // pred_fallthru
          _
        // Predicated region
        $region37: #{tpu_custom_call.1} parent=11 // pred_check
          %p403 = pneg %p201
        $region38: #{tpu_custom_call.1} parent=11 // pred_check_branch
          %405 = sbr.rel (%p403) target = $region40
        $region39: #{tpu_custom_call.1} parent=11 // pred_region
          %s407 = ssub.s32 2048, 2048
          %408 = vsyncadd [#allocation12], %s407
          %s409 = sshll.u32 [#allocation11], 4
          %s410 = int_to_ptr.vmem [resolvable:$true] %s409
          %415 = dma.hbm_to_vmem [thread:$0]  %s7, 2048, %s410, [#allocation12], 64, 64, 4
        $region40: #{tpu_custom_call.1} parent=11 // pred_fallthru
          _
        // Predicated region
        $region41: #{tpu_custom_call.1} parent=11 // pred_check
          %p416 = pneg %p222
        $region42: #{tpu_custom_call.1} parent=11 // pred_check_branch
          %418 = sbr.rel (%p416) target = $region44
        $region43: #{tpu_custom_call.1} parent=11 // pred_region
          _
        $region44: #{tpu_custom_call.1} parent=11 // pred_fallthru
          _
        // Predicated region
        $region45: #{tpu_custom_call.1} parent=11 // pred_check
          %p419 = pneg %p243
        $region46: #{tpu_custom_call.1} parent=11 // pred_check_branch
          %421 = sbr.rel (%p419) target = $region48
        $region47: #{tpu_custom_call.1} parent=11 // pred_region
          _
        $region48: #{tpu_custom_call.1} parent=11 // pred_fallthru
          _
        // Predicated region
        $region49: #{tpu_custom_call.1} parent=11 // pred_check
          %p422 = pneg %p264
        $region50: #{tpu_custom_call.1} parent=11 // pred_check_branch
          %424 = sbr.rel (%p422) target = $region52
        $region51: #{tpu_custom_call.1} parent=11 // pred_region
          _
        $region52: #{tpu_custom_call.1} parent=11 // pred_fallthru
          _
        // Predicated region
        $region53: #{tpu_custom_call.1} parent=11 // pred_check
          %p425 = pneg %p285
        $region54: #{tpu_custom_call.1} parent=11 // pred_check_branch
          %427 = sbr.rel (%p425) target = $region56
        $region55: #{tpu_custom_call.1} parent=11 // pred_region
          _
        $region56: #{tpu_custom_call.1} parent=11 // pred_fallthru
          _
        // Predicated region
        $region57: #{tpu_custom_call.1} parent=11 // pred_check
          %p428 = pneg %p306
        $region58: #{tpu_custom_call.1} parent=11 // pred_check_branch
          %430 = sbr.rel (%p428) target = $region60
        $region59: #{tpu_custom_call.1} parent=11 // pred_region
          _
        $region60: #{tpu_custom_call.1} parent=11 // pred_fallthru
          _
      $region12: #{tpu_custom_call.1} parent=5 // pred_fallthru
        _
      %p431 = scmp.lt.s32.totalorder %s28, 2
      // Predicated region
      $region61: #{tpu_custom_call.1} parent=5 // pred_check
        %p432 = pneg %p431
      $region62: #{tpu_custom_call.1} parent=5 // pred_check_branch
        %434 = sbr.rel (%p432) target = $region64
      $region63: #{tpu_custom_call.1} parent=5 // pred_region
        // Predicated region
        $region65: #{tpu_custom_call.1} parent=63 // pred_check
          %p435 = pneg %p48
        $region66: #{tpu_custom_call.1} parent=63 // pred_check_branch
          %437 = sbr.rel (%p435) target = $region68
        $region67: #{tpu_custom_call.1} parent=63 // pred_region
          %s438 = sand.u32 %s38, 1
          %s439 = scalar_lea.sflag [#allocation3], %s438
          %s440 = sand.u32 %s38, 1
          %s441 = smul.addr %s440, 16
          %s442 = scalar_lea.vmem [#allocation2], %s441
          %s444 = ssub.s32 256, 256
          %445 = vsyncadd %s439, %s444
          %s446 = smul.addr %s28, 128
          %s447 = scalar_lea.hbm %s0, %s446
          %s448 = sshll.u32 %s442, 4
          %s449 = int_to_ptr.vmem [resolvable:$true] %s448
          %454 = dma.hbm_to_vmem [thread:$0]  %s447, 256, %s449, %s439, 256, 128, 8
        $region68: #{tpu_custom_call.1} parent=63 // pred_fallthru
          _
      $region64: #{tpu_custom_call.1} parent=5 // pred_fallthru
        _
      %p455 = scmp.le.s32.totalorder 1, %s28
      %p456 = scmp.lt.s32.totalorder %s28, 3
      %p457 = pnand %p455, %p456
      %p458 = pneg %p457
      // Predicated region
      $region69: #{tpu_custom_call.1} parent=5 // pred_check
        _
      $region70: #{tpu_custom_call.1} parent=5 // pred_check_branch
        %460 = sbr.rel (%p457) target = $region72
      $region71: #{tpu_custom_call.1} parent=5 // pred_region
        %s461 = ssub.s32 %s28, 1
        %s462 = sand.u32 %s41, 1
        %s463 = scalar_lea.sflag [#allocation3], %s462
        %s464 = sand.u32 %s41, 1
        %s465 = smul.addr %s464, 16
        %s466 = scalar_lea.vmem [#allocation2], %s465
        // Predicated region
        $region73: #{tpu_custom_call.1} parent=71 // pred_check
          %p467 = pneg %p54
        $region74: #{tpu_custom_call.1} parent=71 // pred_check_branch
          %469 = sbr.rel (%p467) target = $region76
        $region75: #{tpu_custom_call.1} parent=71 // pred_region
          %470 = dma.done %s463, 256
        $region76: #{tpu_custom_call.1} parent=71 // pred_fallthru
          _
        // Predicated region
        $region77: #{tpu_custom_call.1} parent=71 // pred_check
          %p471 = pneg %p75
        $region78: #{tpu_custom_call.1} parent=71 // pred_check_branch
          %473 = sbr.rel (%p471) target = $region80
        $region79: #{tpu_custom_call.1} parent=71 // pred_region
          %474 = dma.done [#allocation6], 12288
        $region80: #{tpu_custom_call.1} parent=71 // pred_fallthru
          _
        // Predicated region
        $region81: #{tpu_custom_call.1} parent=71 // pred_check
          %p475 = pneg %p96
        $region82: #{tpu_custom_call.1} parent=71 // pred_check_branch
          %477 = sbr.rel (%p475) target = $region84
        $region83: #{tpu_custom_call.1} parent=71 // pred_region
          %478 = dma.done [#allocation6], 192
        $region84: #{tpu_custom_call.1} parent=71 // pred_fallthru
          _
        // Predicated region
        $region85: #{tpu_custom_call.1} parent=71 // pred_check
          %p479 = pneg %p117
        $region86: #{tpu_custom_call.1} parent=71 // pred_check_branch
          %481 = sbr.rel (%p479) target = $region88
        $region87: #{tpu_custom_call.1} parent=71 // pred_region
          %482 = dma.done [#allocation9], 4096
        $region88: #{tpu_custom_call.1} parent=71 // pred_fallthru
          _
        // Predicated region
        $region89: #{tpu_custom_call.1} parent=71 // pred_check
          %p483 = pneg %p159
        $region90: #{tpu_custom_call.1} parent=71 // pred_check_branch
          %485 = sbr.rel (%p483) target = $region92
        $region91: #{tpu_custom_call.1} parent=71 // pred_region
          %486 = dma.done [#allocation9], 2048
        $region92: #{tpu_custom_call.1} parent=71 // pred_fallthru
          _
        // Predicated region
        $region93: #{tpu_custom_call.1} parent=71 // pred_check
          %p487 = pneg %p201
        $region94: #{tpu_custom_call.1} parent=71 // pred_check_branch
          %489 = sbr.rel (%p487) target = $region96
        $region95: #{tpu_custom_call.1} parent=71 // pred_region
          %490 = dma.done [#allocation12], 2048
        $region96: #{tpu_custom_call.1} parent=71 // pred_fallthru
          _
        %s491 = sand.u32 %s41, 1
        %s492 = scalar_lea.sflag [#allocation3], %s491
        %s493 = sand.u32 %s41, 1
        %s494 = smul.addr %s493, 16
        %s495 = scalar_lea.vmem [#allocation2], %s494
        %p496 = pneg %p54
        %p497 = pneg %p51
        %p498 = pneg %p75
        %p499 = pneg %p72
        %p500 = pneg %p96
        %p501 = pneg %p93
        %p502 = pneg %p117
        %p503 = pneg %p114
        %p504 = pneg %p138
        %p505 = pneg %p135
        %p506 = pneg %p159
        %p507 = pneg %p156
        %p508 = pneg %p180
        %p509 = pneg %p177
        %p510 = pneg %p201
        %p511 = pneg %p198
        %p512 = pneg %p222
        %p513 = pneg %p219
        %p514 = pneg %p243
        %p515 = pneg %p240
        %p516 = pneg %p264
        %p517 = pneg %p261
        %p518 = pneg %p285
        %p519 = pneg %p282
        %p520 = pneg %p306
        %p521 = pneg %p303
        %p522 = pneg %p332
        %p523 = pneg %p329
        %s524 = sand.u32 %s319, 1
        %s525 = scalar_lea.sflag [#allocation4], %s524
        %s526 = sand.u32 %s319, 1
        %s527 = smul.addr %s526, 16
        %s528 = scalar_lea.vmem [#allocation13], %s527
        %v530 = vld [vmem:[%s466] sm:$0xff]
        %v531 = vld [vmem:[%s466 + $0x8] sm:$0xff]
        %v532 = vpack.c.bf16 %v531, %v530
        %v533 = vld [vmem:[#allocation5] sm:$0xff]
        %v534 = vld [vmem:[#allocation5 + $0x8] sm:$0xff]
        %v535 = vld [vmem:[#allocation5 + $0x10] sm:$0xff]
        %v536 = vld [vmem:[#allocation5 + $0x18] sm:$0xff]
        %v537 = vld [vmem:[#allocation5 + $0x20] sm:$0xff]
        %v538 = vld [vmem:[#allocation5 + $0x28] sm:$0xff]
        %v539 = vld [vmem:[#allocation5 + $0x30] sm:$0xff]
        %v540 = vld [vmem:[#allocation5 + $0x38] sm:$0xff]
        %v541 = vld [vmem:[#allocation5 + $0x40] sm:$0xff]
        %v542 = vld [vmem:[#allocation5 + $0x48] sm:$0xff]
        %v543 = vld [vmem:[#allocation5 + $0x50] sm:$0xff]
        %v544 = vld [vmem:[#allocation5 + $0x58] sm:$0xff]
        %v545 = vld [vmem:[#allocation5 + $0x60] sm:$0xff]
        %v546 = vld [vmem:[#allocation5 + $0x68] sm:$0xff]
        %v547 = vld [vmem:[#allocation5 + $0x70] sm:$0xff]
        %v548 = vld [vmem:[#allocation5 + $0x78] sm:$0xff]
        %v549 = vld [vmem:[#allocation5 + $0x80] sm:$0xff]
        %v550 = vld [vmem:[#allocation5 + $0x88] sm:$0xff]
        %v551 = vld [vmem:[#allocation5 + $0x90] sm:$0xff]
        %v552 = vld [vmem:[#allocation5 + $0x98] sm:$0xff]
        %v553 = vld [vmem:[#allocation5 + $0xa0] sm:$0xff]
        %v554 = vld [vmem:[#allocation5 + $0xa8] sm:$0xff]
        %v555 = vld [vmem:[#allocation5 + $0xb0] sm:$0xff]
        %v556 = vld [vmem:[#allocation5 + $0xb8] sm:$0xff]
        %v557 = vld [vmem:[#allocation5 + $0xc0] sm:$0xff]
        %v558 = vld [vmem:[#allocation5 + $0xc8] sm:$0xff]
        %v559 = vld [vmem:[#allocation5 + $0xd0] sm:$0xff]
        %v560 = vld [vmem:[#allocation5 + $0xd8] sm:$0xff]
        %v561 = vld [vmem:[#allocation5 + $0xe0] sm:$0xff]
        %v562 = vld [vmem:[#allocation5 + $0xe8] sm:$0xff]
        %v563 = vld [vmem:[#allocation5 + $0xf0] sm:$0xff]
        %v564 = vld [vmem:[#allocation5 + $0xf8] sm:$0xff]
        %v565 = vld [vmem:[#allocation5 + $0x100] sm:$0xff]
        %v566 = vld [vmem:[#allocation5 + $0x108] sm:$0xff]
        %v567 = vld [vmem:[#allocation5 + $0x110] sm:$0xff]
        %v568 = vld [vmem:[#allocation5 + $0x118] sm:$0xff]
        %v569 = vld [vmem:[#allocation5 + $0x120] sm:$0xff]
        %v570 = vld [vmem:[#allocation5 + $0x128] sm:$0xff]
        %v571 = vld [vmem:[#allocation5 + $0x130] sm:$0xff]
        %v572 = vld [vmem:[#allocation5 + $0x138] sm:$0xff]
        %v573 = vld [vmem:[#allocation5 + $0x140] sm:$0xff]
        %v574 = vld [vmem:[#allocation5 + $0x148] sm:$0xff]
        %v575 = vld [vmem:[#allocation5 + $0x150] sm:$0xff]
        %v576 = vld [vmem:[#allocation5 + $0x158] sm:$0xff]
        %v577 = vld [vmem:[#allocation5 + $0x160] sm:$0xff]
        %v578 = vld [vmem:[#allocation5 + $0x168] sm:$0xff]
        %v579 = vld [vmem:[#allocation5 + $0x170] sm:$0xff]
        %v580 = vld [vmem:[#allocation5 + $0x178] sm:$0xff]
        %v581 = vld [vmem:[#allocation5 + $0x180] sm:$0xff]
        %v582 = vld [vmem:[#allocation5 + $0x188] sm:$0xff]
        %v583 = vld [vmem:[#allocation5 + $0x190] sm:$0xff]
        %v584 = vld [vmem:[#allocation5 + $0x198] sm:$0xff]
        %v585 = vld [vmem:[#allocation5 + $0x1a0] sm:$0xff]
        %v586 = vld [vmem:[#allocation5 + $0x1a8] sm:$0xff]
        %v587 = vld [vmem:[#allocation5 + $0x1b0] sm:$0xff]
        %v588 = vld [vmem:[#allocation5 + $0x1b8] sm:$0xff]
        %v589 = vld [vmem:[#allocation5 + $0x1c0] sm:$0xff]
        %v590 = vld [vmem:[#allocation5 + $0x1c8] sm:$0xff]
        %v591 = vld [vmem:[#allocation5 + $0x1d0] sm:$0xff]
        %v592 = vld [vmem:[#allocation5 + $0x1d8] sm:$0xff]
        %v593 = vld [vmem:[#allocation5 + $0x1e0] sm:$0xff]
        %v594 = vld [vmem:[#allocation5 + $0x1e8] sm:$0xff]
        %v595 = vld [vmem:[#allocation5 + $0x1f0] sm:$0xff]
        %v596 = vld [vmem:[#allocation5 + $0x1f8] sm:$0xff]
        %v597 = vld [vmem:[#allocation5 + $0x200] sm:$0xff]
        %v598 = vld [vmem:[#allocation5 + $0x208] sm:$0xff]
        %v599 = vld [vmem:[#allocation5 + $0x210] sm:$0xff]
        %v600 = vld [vmem:[#allocation5 + $0x218] sm:$0xff]
        %v601 = vld [vmem:[#allocation5 + $0x220] sm:$0xff]
        %v602 = vld [vmem:[#allocation5 + $0x228] sm:$0xff]
        %v603 = vld [vmem:[#allocation5 + $0x230] sm:$0xff]
        %v604 = vld [vmem:[#allocation5 + $0x238] sm:$0xff]
        %v605 = vld [vmem:[#allocation5 + $0x240] sm:$0xff]
        %v606 = vld [vmem:[#allocation5 + $0x248] sm:$0xff]
        %v607 = vld [vmem:[#allocation5 + $0x250] sm:$0xff]
        %v608 = vld [vmem:[#allocation5 + $0x258] sm:$0xff]
        %v609 = vld [vmem:[#allocation5 + $0x260] sm:$0xff]
        %v610 = vld [vmem:[#allocation5 + $0x268] sm:$0xff]
        %v611 = vld [vmem:[#allocation5 + $0x270] sm:$0xff]
        %v612 = vld [vmem:[#allocation5 + $0x278] sm:$0xff]
        %v613 = vld [vmem:[#allocation5 + $0x280] sm:$0xff]
        %v614 = vld [vmem:[#allocation5 + $0x288] sm:$0xff]
        %v615 = vld [vmem:[#allocation5 + $0x290] sm:$0xff]
        %v616 = vld [vmem:[#allocation5 + $0x298] sm:$0xff]
        %v617 = vld [vmem:[#allocation5 + $0x2a0] sm:$0xff]
        %v618 = vld [vmem:[#allocation5 + $0x2a8] sm:$0xff]
        %v619 = vld [vmem:[#allocation5 + $0x2b0] sm:$0xff]
        %v620 = vld [vmem:[#allocation5 + $0x2b8] sm:$0xff]
        %v621 = vld [vmem:[#allocation5 + $0x2c0] sm:$0xff]
        %v622 = vld [vmem:[#allocation5 + $0x2c8] sm:$0xff]
        %v623 = vld [vmem:[#allocation5 + $0x2d0] sm:$0xff]
        %v624 = vld [vmem:[#allocation5 + $0x2d8] sm:$0xff]
        %v625 = vld [vmem:[#allocation5 + $0x2e0] sm:$0xff]
        %v626 = vld [vmem:[#allocation5 + $0x2e8] sm:$0xff]
        %v627 = vld [vmem:[#allocation5 + $0x2f0] sm:$0xff]
        %v628 = vld [vmem:[#allocation5 + $0x2f8] sm:$0xff]
        %v629 = vld [vmem:[#allocation7] sm:$0xff]
        %v630 = vld [vmem:[#allocation7 + $0x8] sm:$0xf]
        %v633 = vlaneseq
        %v634 = vshrl.u32 %v633, 7
        %v635 = vsub.s32 0, %v634
        %v636 = vrot.slane %v629, %v635
        %v637 = vlaneseq
        %v638 = vshrl.u32 %v637, 7
        %v639 = vsub.s32 1, %v638
        %v640 = vrot.slane %v629, %v639
        %v641 = vlaneseq
        %v642 = vshrl.u32 %v641, 7
        %v643 = vsub.s32 2, %v642
        %v644 = vrot.slane %v629, %v643
        %v645 = vlaneseq
        %v646 = vshrl.u32 %v645, 7
        %v647 = vsub.s32 3, %v646
        %v648 = vrot.slane %v629, %v647
        %v649 = vlaneseq
        %v650 = vshrl.u32 %v649, 7
        %v651 = vsub.s32 4, %v650
        %v652 = vrot.slane %v629, %v651
        %v653 = vlaneseq
        %v654 = vshrl.u32 %v653, 7
        %v655 = vsub.s32 5, %v654
        %v656 = vrot.slane %v629, %v655
        %v657 = vlaneseq
        %v658 = vshrl.u32 %v657, 7
        %v659 = vsub.s32 6, %v658
        %v660 = vrot.slane %v629, %v659
        %v661 = vlaneseq
        %v662 = vshrl.u32 %v661, 7
        %v663 = vsub.s32 7, %v662
        %v664 = vrot.slane %v629, %v663
        %v665 = vlaneseq
        %v666 = vshrl.u32 %v665, 7
        %v667 = vsub.s32 0, %v666
        %v668 = vrot.slane %v630, %v667
        %v669 = vlaneseq
        %v670 = vshrl.u32 %v669, 7
        %v671 = vsub.s32 1, %v670
        %v672 = vrot.slane %v630, %v671
        %v673 = vlaneseq
        %v674 = vshrl.u32 %v673, 7
        %v675 = vsub.s32 2, %v674
        %v676 = vrot.slane %v630, %v675
        %v677 = vlaneseq
        %v678 = vshrl.u32 %v677, 7
        %v679 = vsub.s32 3, %v678
        %v680 = vrot.slane %v630, %v679
        %v789 = vunpack.c.l.b16 %v533
        %v790 = vunpack.c.h.b16 %v533
        %v791 = vunpack.c.l.b16 %v534
        %v792 = vunpack.c.h.b16 %v534
        %v793 = vunpack.c.l.b16 %v535
        %v794 = vunpack.c.h.b16 %v535
        %v795 = vunpack.c.l.b16 %v536
        %v796 = vunpack.c.h.b16 %v536
        %v797 = vunpack.c.l.b16 %v537
        %v798 = vunpack.c.h.b16 %v537
        %v799 = vunpack.c.l.b16 %v538
        %v800 = vunpack.c.h.b16 %v538
        %v801 = vunpack.c.l.b16 %v539
        %v802 = vunpack.c.h.b16 %v539
        %v803 = vunpack.c.l.b16 %v540
        %v804 = vunpack.c.h.b16 %v540
        %v805 = vunpack.c.l.b16 %v541
        %v806 = vunpack.c.h.b16 %v541
        %v807 = vunpack.c.l.b16 %v542
        %v808 = vunpack.c.h.b16 %v542
        %v809 = vunpack.c.l.b16 %v543
        %v810 = vunpack.c.h.b16 %v543
        %v811 = vunpack.c.l.b16 %v544
        %v812 = vunpack.c.h.b16 %v544
        %v813 = vunpack.c.l.b16 %v545
        %v814 = vunpack.c.h.b16 %v545
        %v815 = vunpack.c.l.b16 %v546
        %v816 = vunpack.c.h.b16 %v546
        %v817 = vunpack.c.l.b16 %v547
        %v818 = vunpack.c.h.b16 %v547
        %v819 = vunpack.c.l.b16 %v548
        %v820 = vunpack.c.h.b16 %v548
        %v821 = vunpack.c.l.b16 %v549
        %v822 = vunpack.c.h.b16 %v549
        %v823 = vunpack.c.l.b16 %v550
        %v824 = vunpack.c.h.b16 %v550
        %v825 = vunpack.c.l.b16 %v551
        %v826 = vunpack.c.h.b16 %v551
        %v827 = vunpack.c.l.b16 %v552
        %v828 = vunpack.c.h.b16 %v552
        %v829 = vunpack.c.l.b16 %v553
        %v830 = vunpack.c.h.b16 %v553
        %v831 = vunpack.c.l.b16 %v554
        %v832 = vunpack.c.h.b16 %v554
        %v833 = vunpack.c.l.b16 %v555
        %v834 = vunpack.c.h.b16 %v555
        %v835 = vunpack.c.l.b16 %v556
        %v836 = vunpack.c.h.b16 %v556
        %v837 = vunpack.c.l.b16 %v557
        %v838 = vunpack.c.h.b16 %v557
        %v839 = vunpack.c.l.b16 %v558
        %v840 = vunpack.c.h.b16 %v558
        %v841 = vunpack.c.l.b16 %v559
        %v842 = vunpack.c.h.b16 %v559
        %v843 = vunpack.c.l.b16 %v560
        %v844 = vunpack.c.h.b16 %v560
        %v845 = vunpack.c.l.b16 %v561
        %v846 = vunpack.c.h.b16 %v561
        %v847 = vunpack.c.l.b16 %v562
        %v848 = vunpack.c.h.b16 %v562
        %v849 = vunpack.c.l.b16 %v563
        %v850 = vunpack.c.h.b16 %v563
        %v851 = vunpack.c.l.b16 %v564
        %v852 = vunpack.c.h.b16 %v564
        %v853 = vunpack.c.l.b16 %v565
        %v854 = vunpack.c.h.b16 %v565
        %v855 = vunpack.c.l.b16 %v566
        %v856 = vunpack.c.h.b16 %v566
        %v857 = vunpack.c.l.b16 %v567
        %v858 = vunpack.c.h.b16 %v567
        %v859 = vunpack.c.l.b16 %v568
        %v860 = vunpack.c.h.b16 %v568
        %v861 = vunpack.c.l.b16 %v569
        %v862 = vunpack.c.h.b16 %v569
        %v863 = vunpack.c.l.b16 %v570
        %v864 = vunpack.c.h.b16 %v570
        %v865 = vunpack.c.l.b16 %v571
        %v866 = vunpack.c.h.b16 %v571
        %v867 = vunpack.c.l.b16 %v572
        %v868 = vunpack.c.h.b16 %v572
        %v869 = vunpack.c.l.b16 %v573
        %v870 = vunpack.c.h.b16 %v573
        %v871 = vunpack.c.l.b16 %v574
        %v872 = vunpack.c.h.b16 %v574
        %v873 = vunpack.c.l.b16 %v575
        %v874 = vunpack.c.h.b16 %v575
        %v875 = vunpack.c.l.b16 %v576
        %v876 = vunpack.c.h.b16 %v576
        %v877 = vunpack.c.l.b16 %v577
        %v878 = vunpack.c.h.b16 %v577
        %v879 = vunpack.c.l.b16 %v578
        %v880 = vunpack.c.h.b16 %v578
        %v881 = vunpack.c.l.b16 %v579
        %v882 = vunpack.c.h.b16 %v579
        %v883 = vunpack.c.l.b16 %v580
        %v884 = vunpack.c.h.b16 %v580
        %v885 = vunpack.c.l.b16 %v581
        %v886 = vunpack.c.h.b16 %v581
        %v887 = vunpack.c.l.b16 %v582
        %v888 = vunpack.c.h.b16 %v582
        %v889 = vunpack.c.l.b16 %v583
        %v890 = vunpack.c.h.b16 %v583
        %v891 = vunpack.c.l.b16 %v584
        %v892 = vunpack.c.h.b16 %v584
        %v893 = vunpack.c.l.b16 %v585
        %v894 = vunpack.c.h.b16 %v585
        %v895 = vunpack.c.l.b16 %v586
        %v896 = vunpack.c.h.b16 %v586
        %v897 = vunpack.c.l.b16 %v587
        %v898 = vunpack.c.h.b16 %v587
        %v899 = vunpack.c.l.b16 %v588
        %v900 = vunpack.c.h.b16 %v588
        %v901 = vunpack.c.l.b16 %v589
        %v902 = vunpack.c.h.b16 %v589
        %v903 = vunpack.c.l.b16 %v590
        %v904 = vunpack.c.h.b16 %v590
        %v905 = vunpack.c.l.b16 %v591
        %v906 = vunpack.c.h.b16 %v591
        %v907 = vunpack.c.l.b16 %v592
        %v908 = vunpack.c.h.b16 %v592
        %v909 = vunpack.c.l.b16 %v593
        %v910 = vunpack.c.h.b16 %v593
        %v911 = vunpack.c.l.b16 %v594
        %v912 = vunpack.c.h.b16 %v594
        %v913 = vunpack.c.l.b16 %v595
        %v914 = vunpack.c.h.b16 %v595
        %v915 = vunpack.c.l.b16 %v596
        %v916 = vunpack.c.h.b16 %v596
        %v917 = vunpack.c.l.b16 %v597
        %v918 = vunpack.c.h.b16 %v597
        %v919 = vunpack.c.l.b16 %v598
        %v920 = vunpack.c.h.b16 %v598
        %v921 = vunpack.c.l.b16 %v599
        %v922 = vunpack.c.h.b16 %v599
        %v923 = vunpack.c.l.b16 %v600
        %v924 = vunpack.c.h.b16 %v600
        %v925 = vunpack.c.l.b16 %v601
        %v926 = vunpack.c.h.b16 %v601
        %v927 = vunpack.c.l.b16 %v602
        %v928 = vunpack.c.h.b16 %v602
        %v929 = vunpack.c.l.b16 %v603
        %v930 = vunpack.c.h.b16 %v603
        %v931 = vunpack.c.l.b16 %v604
        %v932 = vunpack.c.h.b16 %v604
        %v933 = vunpack.c.l.b16 %v605
        %v934 = vunpack.c.h.b16 %v605
        %v935 = vunpack.c.l.b16 %v606
        %v936 = vunpack.c.h.b16 %v606
        %v937 = vunpack.c.l.b16 %v607
        %v938 = vunpack.c.h.b16 %v607
        %v939 = vunpack.c.l.b16 %v608
        %v940 = vunpack.c.h.b16 %v608
        %v941 = vunpack.c.l.b16 %v609
        %v942 = vunpack.c.h.b16 %v609
        %v943 = vunpack.c.l.b16 %v610
        %v944 = vunpack.c.h.b16 %v610
        %v945 = vunpack.c.l.b16 %v611
        %v946 = vunpack.c.h.b16 %v611
        %v947 = vunpack.c.l.b16 %v612
        %v948 = vunpack.c.h.b16 %v612
        %v949 = vunpack.c.l.b16 %v613
        %v950 = vunpack.c.h.b16 %v613
        %v951 = vunpack.c.l.b16 %v614
        %v952 = vunpack.c.h.b16 %v614
        %v953 = vunpack.c.l.b16 %v615
        %v954 = vunpack.c.h.b16 %v615
        %v955 = vunpack.c.l.b16 %v616
        %v956 = vunpack.c.h.b16 %v616
        %v957 = vunpack.c.l.b16 %v617
        %v958 = vunpack.c.h.b16 %v617
        %v959 = vunpack.c.l.b16 %v618
        %v960 = vunpack.c.h.b16 %v618
        %v961 = vunpack.c.l.b16 %v619
        %v962 = vunpack.c.h.b16 %v619
        %v963 = vunpack.c.l.b16 %v620
        %v964 = vunpack.c.h.b16 %v620
        %v965 = vunpack.c.l.b16 %v621
        %v966 = vunpack.c.h.b16 %v621
        %v967 = vunpack.c.l.b16 %v622
        %v968 = vunpack.c.h.b16 %v622
        %v969 = vunpack.c.l.b16 %v623
        %v970 = vunpack.c.h.b16 %v623
        %v971 = vunpack.c.l.b16 %v624
        %v972 = vunpack.c.h.b16 %v624
        %v973 = vunpack.c.l.b16 %v625
        %v974 = vunpack.c.h.b16 %v625
        %v975 = vunpack.c.l.b16 %v626
        %v976 = vunpack.c.h.b16 %v626
        %v977 = vunpack.c.l.b16 %v627
        %v978 = vunpack.c.h.b16 %v627
        %v979 = vunpack.c.l.b16 %v628
        %v980 = vunpack.c.h.b16 %v628
        %v981 = vpack.c.b16 %v801, %v789
        %v982 = vpack.c.b16 %v802, %v790
        %v983 = vpack.c.b16 %v803, %v791
        %v984 = vpack.c.b16 %v804, %v792
        %v985 = vpack.c.b16 %v805, %v793
        %v986 = vpack.c.b16 %v806, %v794
        %v987 = vpack.c.b16 %v807, %v795
        %v988 = vpack.c.b16 %v808, %v796
        %v989 = vpack.c.b16 %v809, %v797
        %v990 = vpack.c.b16 %v810, %v798
        %v991 = vpack.c.b16 %v811, %v799
        %v992 = vpack.c.b16 %v812, %v800
        %v993 = vpack.c.b16 %v825, %v813
        %v994 = vpack.c.b16 %v826, %v814
        %v995 = vpack.c.b16 %v827, %v815
        %v996 = vpack.c.b16 %v828, %v816
        %v997 = vpack.c.b16 %v829, %v817
        %v998 = vpack.c.b16 %v830, %v818
        %v999 = vpack.c.b16 %v831, %v819
        %v1000 = vpack.c.b16 %v832, %v820
        %v1001 = vpack.c.b16 %v833, %v821
        %v1002 = vpack.c.b16 %v834, %v822
        %v1003 = vpack.c.b16 %v835, %v823
        %v1004 = vpack.c.b16 %v836, %v824
        %v1005 = vpack.c.b16 %v849, %v837
        %v1006 = vpack.c.b16 %v850, %v838
        %v1007 = vpack.c.b16 %v851, %v839
        %v1008 = vpack.c.b16 %v852, %v840
        %v1009 = vpack.c.b16 %v853, %v841
        %v1010 = vpack.c.b16 %v854, %v842
        %v1011 = vpack.c.b16 %v855, %v843
        %v1012 = vpack.c.b16 %v856, %v844
        %v1013 = vpack.c.b16 %v857, %v845
        %v1014 = vpack.c.b16 %v858, %v846
        %v1015 = vpack.c.b16 %v859, %v847
        %v1016 = vpack.c.b16 %v860, %v848
        %v1017 = vpack.c.b16 %v873, %v861
        %v1018 = vpack.c.b16 %v874, %v862
        %v1019 = vpack.c.b16 %v875, %v863
        %v1020 = vpack.c.b16 %v876, %v864
        %v1021 = vpack.c.b16 %v877, %v865
        %v1022 = vpack.c.b16 %v878, %v866
        %v1023 = vpack.c.b16 %v879, %v867
        %v1024 = vpack.c.b16 %v880, %v868
        %v1025 = vpack.c.b16 %v881, %v869
        %v1026 = vpack.c.b16 %v882, %v870
        %v1027 = vpack.c.b16 %v883, %v871
        %v1028 = vpack.c.b16 %v884, %v872
        %v1029 = vpack.c.b16 %v897, %v885
        %v1030 = vpack.c.b16 %v898, %v886
        %v1031 = vpack.c.b16 %v899, %v887
        %v1032 = vpack.c.b16 %v900, %v888
        %v1033 = vpack.c.b16 %v901, %v889
        %v1034 = vpack.c.b16 %v902, %v890
        %v1035 = vpack.c.b16 %v903, %v891
        %v1036 = vpack.c.b16 %v904, %v892
        %v1037 = vpack.c.b16 %v905, %v893
        %v1038 = vpack.c.b16 %v906, %v894
        %v1039 = vpack.c.b16 %v907, %v895
        %v1040 = vpack.c.b16 %v908, %v896
        %v1041 = vpack.c.b16 %v921, %v909
        %v1042 = vpack.c.b16 %v922, %v910
        %v1043 = vpack.c.b16 %v923, %v911
        %v1044 = vpack.c.b16 %v924, %v912
        %v1045 = vpack.c.b16 %v925, %v913
        %v1046 = vpack.c.b16 %v926, %v914
        %v1047 = vpack.c.b16 %v927, %v915
        %v1048 = vpack.c.b16 %v928, %v916
        %v1049 = vpack.c.b16 %v929, %v917
        %v1050 = vpack.c.b16 %v930, %v918
        %v1051 = vpack.c.b16 %v931, %v919
        %v1052 = vpack.c.b16 %v932, %v920
        %v1053 = vpack.c.b16 %v945, %v933
        %v1054 = vpack.c.b16 %v946, %v934
        %v1055 = vpack.c.b16 %v947, %v935
        %v1056 = vpack.c.b16 %v948, %v936
        %v1057 = vpack.c.b16 %v949, %v937
        %v1058 = vpack.c.b16 %v950, %v938
        %v1059 = vpack.c.b16 %v951, %v939
        %v1060 = vpack.c.b16 %v952, %v940
        %v1061 = vpack.c.b16 %v953, %v941
        %v1062 = vpack.c.b16 %v954, %v942
        %v1063 = vpack.c.b16 %v955, %v943
        %v1064 = vpack.c.b16 %v956, %v944
        %v1065 = vpack.c.b16 %v969, %v957
        %v1066 = vpack.c.b16 %v970, %v958
        %v1067 = vpack.c.b16 %v971, %v959
        %v1068 = vpack.c.b16 %v972, %v960
        %v1069 = vpack.c.b16 %v973, %v961
        %v1070 = vpack.c.b16 %v974, %v962
        %v1071 = vpack.c.b16 %v975, %v963
        %v1072 = vpack.c.b16 %v976, %v964
        %v1073 = vpack.c.b16 %v977, %v965
        %v1074 = vpack.c.b16 %v978, %v966
        %v1075 = vpack.c.b16 %v979, %v967
        %v1076 = vpack.c.b16 %v980, %v968
        %1173 = vmatprep.subr.bf16.mxu0 %v982
        %1174 = vmatpush1.bf16.msra.mxu0 %v981
        %1175 = vmatprep.subr.bf16.mxu0 %v994
        %1176 = vmatpush1.bf16.msra.mxu0 %v993
        %1177 = vmatprep.subr.bf16.mxu0 %v1006
        %1178 = vmatpush1.bf16.msra.mxu0 %v1005
        %1179 = vmatprep.subr.bf16.mxu0 %v1018
        %1180 = vmatpush1.bf16.msra.mxu0 %v1017
        %1181 = vmatprep.subr.bf16.mxu0 %v1030
        %1182 = vmatpush1.bf16.msra.mxu0 %v1029
        %1183 = vmatprep.subr.bf16.mxu0 %v1042
        %1184 = vmatpush1.bf16.msra.mxu0 %v1041
        %1185 = vmatprep.subr.bf16.mxu0 %v1054
        %1186 = vmatpush1.bf16.msra.mxu0 %v1053
        %1187 = vmatprep.subr.bf16.mxu0 %v1066
        %1188 = vmatpush1.bf16.msra.mxu0 %v1065
        %1189 = vmatprep.subr.bf16.mxu0 0
        %1190 = vmatpush1.bf16.msra.mxu0 0
        %1191 = vmatprep.subr.bf16.mxu0 0
        %1192 = vmatpush1.bf16.msra.mxu0 0
        %1193 = vmatprep.subr.bf16.mxu0 0
        %1194 = vmatpush1.bf16.msra.mxu0 0
        %1195 = vmatprep.subr.bf16.mxu0 0
        %1196 = vmatpush1.bf16.msra.mxu0 0
        %1197 = vmatprep.subr.bf16.mxu0 0
        %1198 = vmatpush1.bf16.msra.mxu0 0
        %1199 = vmatprep.subr.bf16.mxu0 0
        %1200 = vmatpush1.bf16.msra.mxu0 0
        %1201 = vmatprep.subr.bf16.mxu0 0
        %1202 = vmatpush1.bf16.msra.mxu0 0
        %1203 = vmatprep.subr.bf16.mxu0 0
        %1204 = vmatpush1.bf16.msra.mxu0 0
        %1205 = vmatprep.mubr.bf16.mxu0 0
        %1206 = vmatmul.mubr.bf16.gmra.mrb[0].mxu0 %v532
        %v1207 = vpop.f32.mrb[0].mxu0
        %v1208 = vadd.f32 %v636, %v1207
        %v1209 = vpop.f32.mrb[0].mxu0
        %v1210 = vadd.f32 %v640, %v1209
        %v1211 = vpop.f32.mrb[0].mxu0
        %v1212 = vadd.f32 %v636, %v1211
        %v1213 = vpop.f32.mrb[0].mxu0
        %v1214 = vadd.f32 %v640, %v1213
        %1215 = vdwg.mxu0
        %1216 = vmatprep.subr.bf16.mxu0 %v984
        %1217 = vmatpush1.bf16.msra.mxu0 %v983
        %1218 = vmatprep.subr.bf16.mxu0 %v996
        %1219 = vmatpush1.bf16.msra.mxu0 %v995
        %1220 = vmatprep.subr.bf16.mxu0 %v1008
        %1221 = vmatpush1.bf16.msra.mxu0 %v1007
        %1222 = vmatprep.subr.bf16.mxu0 %v1020
        %1223 = vmatpush1.bf16.msra.mxu0 %v1019
        %1224 = vmatprep.subr.bf16.mxu0 %v1032
        %1225 = vmatpush1.bf16.msra.mxu0 %v1031
        %1226 = vmatprep.subr.bf16.mxu0 %v1044
        %1227 = vmatpush1.bf16.msra.mxu0 %v1043
        %1228 = vmatprep.subr.bf16.mxu0 %v1056
        %1229 = vmatpush1.bf16.msra.mxu0 %v1055
        %1230 = vmatprep.subr.bf16.mxu0 %v1068
        %1231 = vmatpush1.bf16.msra.mxu0 %v1067
        %1232 = vmatprep.subr.bf16.mxu0 0
        %1233 = vmatpush1.bf16.msra.mxu0 0
        %1234 = vmatprep.subr.bf16.mxu0 0
        %1235 = vmatpush1.bf16.msra.mxu0 0
        %1236 = vmatprep.subr.bf16.mxu0 0
        %1237 = vmatpush1.bf16.msra.mxu0 0
        %1238 = vmatprep.subr.bf16.mxu0 0
        %1239 = vmatpush1.bf16.msra.mxu0 0
        %1240 = vmatprep.subr.bf16.mxu0 0
        %1241 = vmatpush1.bf16.msra.mxu0 0
        %1242 = vmatprep.subr.bf16.mxu0 0
        %1243 = vmatpush1.bf16.msra.mxu0 0
        %1244 = vmatprep.subr.bf16.mxu0 0
        %1245 = vmatpush1.bf16.msra.mxu0 0
        %1246 = vmatprep.subr.bf16.mxu0 0
        %1247 = vmatpush1.bf16.msra.mxu0 0
        %1248 = vmatprep.mubr.bf16.mxu0 0
        %1249 = vmatmul.mubr.bf16.gmra.mrb[0].mxu0 %v532
        %v1250 = vpop.f32.mrb[0].mxu0
        %v1251 = vadd.f32 %v644, %v1250
        %v1252 = vpop.f32.mrb[0].mxu0
        %v1253 = vadd.f32 %v648, %v1252
        %v1254 = vpop.f32.mrb[0].mxu0
        %v1255 = vadd.f32 %v644, %v1254
        %v1256 = vpop.f32.mrb[0].mxu0
        %v1257 = vadd.f32 %v648, %v1256
        %1258 = vdwg.mxu0
        %1259 = vmatprep.subr.bf16.mxu0 %v986
        %1260 = vmatpush1.bf16.msra.mxu0 %v985
        %1261 = vmatprep.subr.bf16.mxu0 %v998
        %1262 = vmatpush1.bf16.msra.mxu0 %v997
        %1263 = vmatprep.subr.bf16.mxu0 %v1010
        %1264 = vmatpush1.bf16.msra.mxu0 %v1009
        %1265 = vmatprep.subr.bf16.mxu0 %v1022
        %1266 = vmatpush1.bf16.msra.mxu0 %v1021
        %1267 = vmatprep.subr.bf16.mxu0 %v1034
        %1268 = vmatpush1.bf16.msra.mxu0 %v1033
        %1269 = vmatprep.subr.bf16.mxu0 %v1046
        %1270 = vmatpush1.bf16.msra.mxu0 %v1045
        %1271 = vmatprep.subr.bf16.mxu0 %v1058
        %1272 = vmatpush1.bf16.msra.mxu0 %v1057
        %1273 = vmatprep.subr.bf16.mxu0 %v1070
        %1274 = vmatpush1.bf16.msra.mxu0 %v1069
        %1275 = vmatprep.subr.bf16.mxu0 0
        %1276 = vmatpush1.bf16.msra.mxu0 0
        %1277 = vmatprep.subr.bf16.mxu0 0
        %1278 = vmatpush1.bf16.msra.mxu0 0
        %1279 = vmatprep.subr.bf16.mxu0 0
        %1280 = vmatpush1.bf16.msra.mxu0 0
        %1281 = vmatprep.subr.bf16.mxu0 0
        %1282 = vmatpush1.bf16.msra.mxu0 0
        %1283 = vmatprep.subr.bf16.mxu0 0
        %1284 = vmatpush1.bf16.msra.mxu0 0
        %1285 = vmatprep.subr.bf16.mxu0 0
        %1286 = vmatpush1.bf16.msra.mxu0 0
        %1287 = vmatprep.subr.bf16.mxu0 0
        %1288 = vmatpush1.bf16.msra.mxu0 0
        %1289 = vmatprep.subr.bf16.mxu0 0
        %1290 = vmatpush1.bf16.msra.mxu0 0
        %1291 = vmatprep.mubr.bf16.mxu0 0
        %1292 = vmatmul.mubr.bf16.gmra.mrb[0].mxu0 %v532
        %v1293 = vpop.f32.mrb[0].mxu0
        %v1294 = vadd.f32 %v652, %v1293
        %v1295 = vpop.f32.mrb[0].mxu0
        %v1296 = vadd.f32 %v656, %v1295
        %v1297 = vpop.f32.mrb[0].mxu0
        %v1298 = vadd.f32 %v652, %v1297
        %v1299 = vpop.f32.mrb[0].mxu0
        %v1300 = vadd.f32 %v656, %v1299
        %1301 = vdwg.mxu0
        %1302 = vmatprep.subr.bf16.mxu0 %v988
        %1303 = vmatpush1.bf16.msra.mxu0 %v987
        %1304 = vmatprep.subr.bf16.mxu0 %v1000
        %1305 = vmatpush1.bf16.msra.mxu0 %v999
        %1306 = vmatprep.subr.bf16.mxu0 %v1012
        %1307 = vmatpush1.bf16.msra.mxu0 %v1011
        %1308 = vmatprep.subr.bf16.mxu0 %v1024
        %1309 = vmatpush1.bf16.msra.mxu0 %v1023
        %1310 = vmatprep.subr.bf16.mxu0 %v1036
        %1311 = vmatpush1.bf16.msra.mxu0 %v1035
        %1312 = vmatprep.subr.bf16.mxu0 %v1048
        %1313 = vmatpush1.bf16.msra.mxu0 %v1047
        %1314 = vmatprep.subr.bf16.mxu0 %v1060
        %1315 = vmatpush1.bf16.msra.mxu0 %v1059
        %1316 = vmatprep.subr.bf16.mxu0 %v1072
        %1317 = vmatpush1.bf16.msra.mxu0 %v1071
        %1318 = vmatprep.subr.bf16.mxu0 0
        %1319 = vmatpush1.bf16.msra.mxu0 0
        %1320 = vmatprep.subr.bf16.mxu0 0
        %1321 = vmatpush1.bf16.msra.mxu0 0
        %1322 = vmatprep.subr.bf16.mxu0 0
        %1323 = vmatpush1.bf16.msra.mxu0 0
        %1324 = vmatprep.subr.bf16.mxu0 0
        %1325 = vmatpush1.bf16.msra.mxu0 0
        %1326 = vmatprep.subr.bf16.mxu0 0
        %1327 = vmatpush1.bf16.msra.mxu0 0
        %1328 = vmatprep.subr.bf16.mxu0 0
        %1329 = vmatpush1.bf16.msra.mxu0 0
        %1330 = vmatprep.subr.bf16.mxu0 0
        %1331 = vmatpush1.bf16.msra.mxu0 0
        %1332 = vmatprep.subr.bf16.mxu0 0
        %1333 = vmatpush1.bf16.msra.mxu0 0
        %1334 = vmatprep.mubr.bf16.mxu0 0
        %1335 = vmatmul.mubr.bf16.gmra.mrb[0].mxu0 %v532
        %v1336 = vpop.f32.mrb[0].mxu0
        %v1337 = vadd.f32 %v660, %v1336
        %v1338 = vpop.f32.mrb[0].mxu0
        %v1339 = vadd.f32 %v664, %v1338
        %v1340 = vpop.f32.mrb[0].mxu0
        %v1341 = vadd.f32 %v660, %v1340
        %v1342 = vpop.f32.mrb[0].mxu0
        %v1343 = vadd.f32 %v664, %v1342
        %1344 = vdwg.mxu0
        %1345 = vmatprep.subr.bf16.mxu0 %v990
        %1346 = vmatpush1.bf16.msra.mxu0 %v989
        %1347 = vmatprep.subr.bf16.mxu0 %v1002
        %1348 = vmatpush1.bf16.msra.mxu0 %v1001
        %1349 = vmatprep.subr.bf16.mxu0 %v1014
        %1350 = vmatpush1.bf16.msra.mxu0 %v1013
        %1351 = vmatprep.subr.bf16.mxu0 %v1026
        %1352 = vmatpush1.bf16.msra.mxu0 %v1025
        %1353 = vmatprep.subr.bf16.mxu0 %v1038
        %1354 = vmatpush1.bf16.msra.mxu0 %v1037
        %1355 = vmatprep.subr.bf16.mxu0 %v1050
        %1356 = vmatpush1.bf16.msra.mxu0 %v1049
        %1357 = vmatprep.subr.bf16.mxu0 %v1062
        %1358 = vmatpush1.bf16.msra.mxu0 %v1061
        %1359 = vmatprep.subr.bf16.mxu0 %v1074
        %1360 = vmatpush1.bf16.msra.mxu0 %v1073
        %1361 = vmatprep.subr.bf16.mxu0 0
        %1362 = vmatpush1.bf16.msra.mxu0 0
        %1363 = vmatprep.subr.bf16.mxu0 0
        %1364 = vmatpush1.bf16.msra.mxu0 0
        %1365 = vmatprep.subr.bf16.mxu0 0
        %1366 = vmatpush1.bf16.msra.mxu0 0
        %1367 = vmatprep.subr.bf16.mxu0 0
        %1368 = vmatpush1.bf16.msra.mxu0 0
        %1369 = vmatprep.subr.bf16.mxu0 0
        %1370 = vmatpush1.bf16.msra.mxu0 0
        %1371 = vmatprep.subr.bf16.mxu0 0
        %1372 = vmatpush1.bf16.msra.mxu0 0
        %1373 = vmatprep.subr.bf16.mxu0 0
        %1374 = vmatpush1.bf16.msra.mxu0 0
        %1375 = vmatprep.subr.bf16.mxu0 0
        %1376 = vmatpush1.bf16.msra.mxu0 0
        %1377 = vmatprep.mubr.bf16.mxu0 0
        %1378 = vmatmul.mubr.bf16.gmra.mrb[0].mxu0 %v532
        %v1379 = vpop.f32.mrb[0].mxu0
        %v1380 = vadd.f32 %v668, %v1379
        %v1381 = vpop.f32.mrb[0].mxu0
        %v1382 = vadd.f32 %v672, %v1381
        %v1383 = vpop.f32.mrb[0].mxu0
        %v1384 = vadd.f32 %v668, %v1383
        %v1385 = vpop.f32.mrb[0].mxu0
        %v1386 = vadd.f32 %v672, %v1385
        %1387 = vdwg.mxu0
        %1388 = vmatprep.subr.bf16.mxu0 %v992
        %1389 = vmatpush1.bf16.msra.mxu0 %v991
        %1390 = vmatprep.subr.bf16.mxu0 %v1004
        %1391 = vmatpush1.bf16.msra.mxu0 %v1003
        %1392 = vmatprep.subr.bf16.mxu0 %v1016
        %1393 = vmatpush1.bf16.msra.mxu0 %v1015
        %1394 = vmatprep.subr.bf16.mxu0 %v1028
        %1395 = vmatpush1.bf16.msra.mxu0 %v1027
        %1396 = vmatprep.subr.bf16.mxu0 %v1040
        %1397 = vmatpush1.bf16.msra.mxu0 %v1039
        %1398 = vmatprep.subr.bf16.mxu0 %v1052
        %1399 = vmatpush1.bf16.msra.mxu0 %v1051
        %1400 = vmatprep.subr.bf16.mxu0 %v1064
        %1401 = vmatpush1.bf16.msra.mxu0 %v1063
        %1402 = vmatprep.subr.bf16.mxu0 %v1076
        %1403 = vmatpush1.bf16.msra.mxu0 %v1075
        %1404 = vmatprep.subr.bf16.mxu0 0
        %1405 = vmatpush1.bf16.msra.mxu0 0
        %1406 = vmatprep.subr.bf16.mxu0 0
        %1407 = vmatpush1.bf16.msra.mxu0 0
        %1408 = vmatprep.subr.bf16.mxu0 0
        %1409 = vmatpush1.bf16.msra.mxu0 0
        %1410 = vmatprep.subr.bf16.mxu0 0
        %1411 = vmatpush1.bf16.msra.mxu0 0
        %1412 = vmatprep.subr.bf16.mxu0 0
        %1413 = vmatpush1.bf16.msra.mxu0 0
        %1414 = vmatprep.subr.bf16.mxu0 0
        %1415 = vmatpush1.bf16.msra.mxu0 0
        %1416 = vmatprep.subr.bf16.mxu0 0
        %1417 = vmatpush1.bf16.msra.mxu0 0
        %1418 = vmatprep.subr.bf16.mxu0 0
        %1419 = vmatpush1.bf16.msra.mxu0 0
        %1420 = vmatprep.mubr.bf16.mxu0 0
        %1421 = vmatmul.mubr.bf16.gmra.mrb[0].mxu0 %v532
        %v1422 = vpop.f32.mrb[0].mxu0
        %v1423 = vadd.f32 %v676, %v1422
        %v1424 = vpop.f32.mrb[0].mxu0
        %v1425 = vadd.f32 %v680, %v1424
        %v1426 = vpop.f32.mrb[0].mxu0
        %v1427 = vadd.f32 %v676, %v1426
        %v1428 = vpop.f32.mrb[0].mxu0
        %v1429 = vadd.f32 %v680, %v1428
        %1430 = vdwg.mxu0
        %v1431 = vmul.f32 %v1208, 0.17677669
        %v1432 = vmul.f32 %v1212, 0.17677669
        %v1433 = vpack.c.bf16 %v1432, %v1431
        %v1434 = vpack.c.bf16 %v1298, %v1294
        %1435 = vmatprep.subr.bf16.mxu0 0
        %1436 = vmatpush1.bf16.xpose.msra.mxu0 %v1434
        %1437 = vmatprep.subr.bf16.mxu0 0
        %1438 = vmatpush1.bf16.xpose.msra.mxu0 0
        %1439 = vmatprep.subr.bf16.mxu0 0
        %1440 = vmatpush1.bf16.xpose.msra.mxu0 0
        %1441 = vmatprep.subr.bf16.mxu0 0
        %1442 = vmatpush1.bf16.xpose.msra.mxu0 0
        %1443 = vmatprep.subr.bf16.mxu0 0
        %1444 = vmatpush1.bf16.xpose.msra.mxu0 0
        %1445 = vmatprep.subr.bf16.mxu0 0
        %1446 = vmatpush1.bf16.xpose.msra.mxu0 0
        %1447 = vmatprep.subr.bf16.mxu0 0
        %1448 = vmatpush1.bf16.xpose.msra.mxu0 0
        %1449 = vmatprep.subr.bf16.mxu0 0
        %1450 = vmatpush1.bf16.xpose.msra.mxu0 0
        %1451 = vmatprep.subr.bf16.mxu0 0
        %1452 = vmatpush1.bf16.xpose.msra.mxu0 0
        %1453 = vmatprep.subr.bf16.mxu0 0
        %1454 = vmatpush1.bf16.xpose.msra.mxu0 0
        %1455 = vmatprep.subr.bf16.mxu0 0
        %1456 = vmatpush1.bf16.xpose.msra.mxu0 0
        %1457 = vmatprep.subr.bf16.mxu0 0
        %1458 = vmatpush1.bf16.xpose.msra.mxu0 0
        %1459 = vmatprep.subr.bf16.mxu0 0
        %1460 = vmatpush1.bf16.xpose.msra.mxu0 0
        %1461 = vmatprep.subr.bf16.mxu0 0
        %1462 = vmatpush1.bf16.xpose.msra.mxu0 0
        %1463 = vmatprep.subr.bf16.mxu0 0
        %1464 = vmatpush1.bf16.xpose.msra.mxu0 0
        %1465 = vmatprep.subr.bf16.mxu0 0
        %1466 = vmatpush1.bf16.xpose.msra.mxu0 0
        %1467 = vmatprep.mubr.bf16.mxu0 0
        %1468 = vmatmul.mubr.bf16.gmra.mrb[0].mxu0 %v1433
        %v1469 = vpop.f32.mrb[0].mxu0
        %v1470 = vadd.f32 0.0, %v1469
        %v1471 = vpop.f32.mrb[0].mxu0
        %v1472 = vpop.f32.mrb[0].mxu0
        %v1473 = vadd.f32 0.0, %v1472
        %v1474 = vpop.f32.mrb[0].mxu0
        %1475 = vdwg.mxu0
        %vm1476 = vcmask 130048
        %v1477 = vsel %vm1476, %v1470, -inf
        %1478 = vmax.xlane.f32.xlu0 %v1477
        %v1479 = vpop.xlane.xlu0 %1478
        %v1480 = vsel %vm1476, %v1473, -inf
        %1481 = vmax.xlane.f32.xlu0 %v1480
        %v1482 = vpop.xlane.xlu0 %1481
        %v1483 = vsub.f32 %v1470, %v1479
        %v1484 = vsub.f32 %v1473, %v1482
        %v1485 = vmul.f32 %v1483, 1.442695
        %v1486 = vpow.pop %v1485
        %v1487 = vmul.f32 %v1484, 1.442695
        %v1488 = vpow.pop %v1487
        %v1489 = vsel %vm1476, %v1486, 0.0
        %1490 = vadd.xlane.f32.xlu0 %v1489
        %v1491 = vpop.xlane.xlu0 %1490
        %v1492 = vsel %vm1476, %v1488, 0.0
        %1493 = vadd.xlane.f32.xlu0 %v1492
        %v1494 = vpop.xlane.xlu0 %1493
        %v1495 = vpack.c.bf16 %v1488, %v1486
        %v1496 = vpack.c.bf16 %v1384, %v1380
        %v1498 = vsel %vm1476, %v1495, 0
        %1500 = vmatprep.subr.bf16.mxu0 0
        %1501 = vmatpush1.bf16.msra.mxu0 %v1496
        %1502 = vmatprep.subr.bf16.mxu0 0
        %1503 = vmatpush1.bf16.msra.mxu0 0
        %1504 = vmatprep.subr.bf16.mxu0 0
        %1505 = vmatpush1.bf16.msra.mxu0 0
        %1506 = vmatprep.subr.bf16.mxu0 0
        %1507 = vmatpush1.bf16.msra.mxu0 0
        %1508 = vmatprep.subr.bf16.mxu0 0
        %1509 = vmatpush1.bf16.msra.mxu0 0
        %1510 = vmatprep.subr.bf16.mxu0 0
        %1511 = vmatpush1.bf16.msra.mxu0 0
        %1512 = vmatprep.subr.bf16.mxu0 0
        %1513 = vmatpush1.bf16.msra.mxu0 0
        %1514 = vmatprep.subr.bf16.mxu0 0
        %1515 = vmatpush1.bf16.msra.mxu0 0
        %1516 = vmatprep.subr.bf16.mxu0 0
        %1517 = vmatpush1.bf16.msra.mxu0 0
        %1518 = vmatprep.subr.bf16.mxu0 0
        %1519 = vmatpush1.bf16.msra.mxu0 0
        %1520 = vmatprep.subr.bf16.mxu0 0
        %1521 = vmatpush1.bf16.msra.mxu0 0
        %1522 = vmatprep.subr.bf16.mxu0 0
        %1523 = vmatpush1.bf16.msra.mxu0 0
        %1524 = vmatprep.subr.bf16.mxu0 0
        %1525 = vmatpush1.bf16.msra.mxu0 0
        %1526 = vmatprep.subr.bf16.mxu0 0
        %1527 = vmatpush1.bf16.msra.mxu0 0
        %1528 = vmatprep.subr.bf16.mxu0 0
        %1529 = vmatpush1.bf16.msra.mxu0 0
        %1530 = vmatprep.subr.bf16.mxu0 0
        %1531 = vmatpush1.bf16.msra.mxu0 0
        %1532 = vmatprep.mubr.bf16.mxu0 0
        %1533 = vmatmul.mubr.bf16.gmra.mrb[0].mxu0 %v1498
        %v1534 = vpop.f32.mrb[0].mxu0
        %v1535 = vadd.f32 0.0, %v1534
        %v1536 = vpop.f32.mrb[0].mxu0
        %v1537 = vpop.f32.mrb[0].mxu0
        %v1538 = vadd.f32 0.0, %v1537
        %v1539 = vpop.f32.mrb[0].mxu0
        %1540 = vdwg.mxu0
        %v1541 = vrcp.pop %v1491
        %v1542 = vrcp.pop %v1494
        %v1543 = vmul.f32 %v1535, %v1541
        %v1544 = vmul.f32 %v1538, %v1542
        %v1545 = vmul.f32 %v1210, 0.17677669
        %v1546 = vmul.f32 %v1214, 0.17677669
        %v1547 = vpack.c.bf16 %v1546, %v1545
        %v1548 = vpack.c.bf16 %v1300, %v1296
        %1549 = vmatprep.subr.bf16.mxu0 0
        %1550 = vmatpush1.bf16.xpose.msra.mxu0 %v1548
        %1551 = vmatprep.subr.bf16.mxu0 0
        %1552 = vmatpush1.bf16.xpose.msra.mxu0 0
        %1553 = vmatprep.subr.bf16.mxu0 0
        %1554 = vmatpush1.bf16.xpose.msra.mxu0 0
        %1555 = vmatprep.subr.bf16.mxu0 0
        %1556 = vmatpush1.bf16.xpose.msra.mxu0 0
        %1557 = vmatprep.subr.bf16.mxu0 0
        %1558 = vmatpush1.bf16.xpose.msra.mxu0 0
        %1559 = vmatprep.subr.bf16.mxu0 0
        %1560 = vmatpush1.bf16.xpose.msra.mxu0 0
        %1561 = vmatprep.subr.bf16.mxu0 0
        %1562 = vmatpush1.bf16.xpose.msra.mxu0 0
        %1563 = vmatprep.subr.bf16.mxu0 0
        %1564 = vmatpush1.bf16.xpose.msra.mxu0 0
        %1565 = vmatprep.subr.bf16.mxu0 0
        %1566 = vmatpush1.bf16.xpose.msra.mxu0 0
        %1567 = vmatprep.subr.bf16.mxu0 0
        %1568 = vmatpush1.bf16.xpose.msra.mxu0 0
        %1569 = vmatprep.subr.bf16.mxu0 0
        %1570 = vmatpush1.bf16.xpose.msra.mxu0 0
        %1571 = vmatprep.subr.bf16.mxu0 0
        %1572 = vmatpush1.bf16.xpose.msra.mxu0 0
        %1573 = vmatprep.subr.bf16.mxu0 0
        %1574 = vmatpush1.bf16.xpose.msra.mxu0 0
        %1575 = vmatprep.subr.bf16.mxu0 0
        %1576 = vmatpush1.bf16.xpose.msra.mxu0 0
        %1577 = vmatprep.subr.bf16.mxu0 0
        %1578 = vmatpush1.bf16.xpose.msra.mxu0 0
        %1579 = vmatprep.subr.bf16.mxu0 0
        %1580 = vmatpush1.bf16.xpose.msra.mxu0 0
        %1581 = vmatprep.mubr.bf16.mxu0 0
        %1582 = vmatmul.mubr.bf16.gmra.mrb[0].mxu0 %v1547
        %v1583 = vpop.f32.mrb[0].mxu0
        %v1584 = vadd.f32 0.0, %v1583
        %v1585 = vpop.f32.mrb[0].mxu0
        %v1586 = vpop.f32.mrb[0].mxu0
        %v1587 = vadd.f32 0.0, %v1586
        %v1588 = vpop.f32.mrb[0].mxu0
        %1589 = vdwg.mxu0
        %v1590 = vsel %vm1476, %v1584, -inf
        %1591 = vmax.xlane.f32.xlu0 %v1590
        %v1592 = vpop.xlane.xlu0 %1591
        %v1593 = vsel %vm1476, %v1587, -inf
        %1594 = vmax.xlane.f32.xlu0 %v1593
        %v1595 = vpop.xlane.xlu0 %1594
        %v1596 = vsub.f32 %v1584, %v1592
        %v1597 = vsub.f32 %v1587, %v1595
        %v1598 = vmul.f32 %v1596, 1.442695
        %v1599 = vpow.pop %v1598
        %v1600 = vmul.f32 %v1597, 1.442695
        %v1601 = vpow.pop %v1600
        %v1602 = vsel %vm1476, %v1599, 0.0
        %1603 = vadd.xlane.f32.xlu0 %v1602
        %v1604 = vpop.xlane.xlu0 %1603
        %v1605 = vsel %vm1476, %v1601, 0.0
        %1606 = vadd.xlane.f32.xlu0 %v1605
        %v1607 = vpop.xlane.xlu0 %1606
        %v1608 = vpack.c.bf16 %v1601, %v1599
        %v1609 = vpack.c.bf16 %v1386, %v1382
        %v1611 = vsel %vm1476, %v1608, 0
        %1613 = vmatprep.subr.bf16.mxu0 0
        %1614 = vmatpush1.bf16.msra.mxu0 %v1609
        %1615 = vmatprep.subr.bf16.mxu0 0
        %1616 = vmatpush1.bf16.msra.mxu0 0
        %1617 = vmatprep.subr.bf16.mxu0 0
        %1618 = vmatpush1.bf16.msra.mxu0 0
        %1619 = vmatprep.subr.bf16.mxu0 0
        %1620 = vmatpush1.bf16.msra.mxu0 0
        %1621 = vmatprep.subr.bf16.mxu0 0
        %1622 = vmatpush1.bf16.msra.mxu0 0
        %1623 = vmatprep.subr.bf16.mxu0 0
        %1624 = vmatpush1.bf16.msra.mxu0 0
        %1625 = vmatprep.subr.bf16.mxu0 0
        %1626 = vmatpush1.bf16.msra.mxu0 0
        %1627 = vmatprep.subr.bf16.mxu0 0
        %1628 = vmatpush1.bf16.msra.mxu0 0
        %1629 = vmatprep.subr.bf16.mxu0 0
        %1630 = vmatpush1.bf16.msra.mxu0 0
        %1631 = vmatprep.subr.bf16.mxu0 0
        %1632 = vmatpush1.bf16.msra.mxu0 0
        %1633 = vmatprep.subr.bf16.mxu0 0
        %1634 = vmatpush1.bf16.msra.mxu0 0
        %1635 = vmatprep.subr.bf16.mxu0 0
        %1636 = vmatpush1.bf16.msra.mxu0 0
        %1637 = vmatprep.subr.bf16.mxu0 0
        %1638 = vmatpush1.bf16.msra.mxu0 0
        %1639 = vmatprep.subr.bf16.mxu0 0
        %1640 = vmatpush1.bf16.msra.mxu0 0
        %1641 = vmatprep.subr.bf16.mxu0 0
        %1642 = vmatpush1.bf16.msra.mxu0 0
        %1643 = vmatprep.subr.bf16.mxu0 0
        %1644 = vmatpush1.bf16.msra.mxu0 0
        %1645 = vmatprep.mubr.bf16.mxu0 0
        %1646 = vmatmul.mubr.bf16.gmra.mrb[0].mxu0 %v1611
        %v1647 = vpop.f32.mrb[0].mxu0
        %v1648 = vadd.f32 0.0, %v1647
        %v1649 = vpop.f32.mrb[0].mxu0
        %v1650 = vpop.f32.mrb[0].mxu0
        %v1651 = vadd.f32 0.0, %v1650
        %v1652 = vpop.f32.mrb[0].mxu0
        %1653 = vdwg.mxu0
        %v1654 = vrcp.pop %v1604
        %v1655 = vrcp.pop %v1607
        %v1656 = vmul.f32 %v1648, %v1654
        %v1657 = vmul.f32 %v1651, %v1655
        %v1658 = vmul.f32 %v1251, 0.17677669
        %v1659 = vmul.f32 %v1255, 0.17677669
        %v1660 = vpack.c.bf16 %v1659, %v1658
        %v1661 = vpack.c.bf16 %v1341, %v1337
        %1662 = vmatprep.subr.bf16.mxu0 0
        %1663 = vmatpush1.bf16.xpose.msra.mxu0 %v1661
        %1664 = vmatprep.subr.bf16.mxu0 0
        %1665 = vmatpush1.bf16.xpose.msra.mxu0 0
        %1666 = vmatprep.subr.bf16.mxu0 0
        %1667 = vmatpush1.bf16.xpose.msra.mxu0 0
        %1668 = vmatprep.subr.bf16.mxu0 0
        %1669 = vmatpush1.bf16.xpose.msra.mxu0 0
        %1670 = vmatprep.subr.bf16.mxu0 0
        %1671 = vmatpush1.bf16.xpose.msra.mxu0 0
        %1672 = vmatprep.subr.bf16.mxu0 0
        %1673 = vmatpush1.bf16.xpose.msra.mxu0 0
        %1674 = vmatprep.subr.bf16.mxu0 0
        %1675 = vmatpush1.bf16.xpose.msra.mxu0 0
        %1676 = vmatprep.subr.bf16.mxu0 0
        %1677 = vmatpush1.bf16.xpose.msra.mxu0 0
        %1678 = vmatprep.subr.bf16.mxu0 0
        %1679 = vmatpush1.bf16.xpose.msra.mxu0 0
        %1680 = vmatprep.subr.bf16.mxu0 0
        %1681 = vmatpush1.bf16.xpose.msra.mxu0 0
        %1682 = vmatprep.subr.bf16.mxu0 0
        %1683 = vmatpush1.bf16.xpose.msra.mxu0 0
        %1684 = vmatprep.subr.bf16.mxu0 0
        %1685 = vmatpush1.bf16.xpose.msra.mxu0 0
        %1686 = vmatprep.subr.bf16.mxu0 0
        %1687 = vmatpush1.bf16.xpose.msra.mxu0 0
        %1688 = vmatprep.subr.bf16.mxu0 0
        %1689 = vmatpush1.bf16.xpose.msra.mxu0 0
        %1690 = vmatprep.subr.bf16.mxu0 0
        %1691 = vmatpush1.bf16.xpose.msra.mxu0 0
        %1692 = vmatprep.subr.bf16.mxu0 0
        %1693 = vmatpush1.bf16.xpose.msra.mxu0 0
        %1694 = vmatprep.mubr.bf16.mxu0 0
        %1695 = vmatmul.mubr.bf16.gmra.mrb[0].mxu0 %v1660
        %v1696 = vpop.f32.mrb[0].mxu0
        %v1697 = vadd.f32 0.0, %v1696
        %v1698 = vpop.f32.mrb[0].mxu0
        %v1699 = vpop.f32.mrb[0].mxu0
        %v1700 = vadd.f32 0.0, %v1699
        %v1701 = vpop.f32.mrb[0].mxu0
        %1702 = vdwg.mxu0
        %v1703 = vsel %vm1476, %v1697, -inf
        %1704 = vmax.xlane.f32.xlu0 %v1703
        %v1705 = vpop.xlane.xlu0 %1704
        %v1706 = vsel %vm1476, %v1700, -inf
        %1707 = vmax.xlane.f32.xlu0 %v1706
        %v1708 = vpop.xlane.xlu0 %1707
        %v1709 = vsub.f32 %v1697, %v1705
        %v1710 = vsub.f32 %v1700, %v1708
        %v1711 = vmul.f32 %v1709, 1.442695
        %v1712 = vpow.pop %v1711
        %v1713 = vmul.f32 %v1710, 1.442695
        %v1714 = vpow.pop %v1713
        %v1715 = vsel %vm1476, %v1712, 0.0
        %1716 = vadd.xlane.f32.xlu0 %v1715
        %v1717 = vpop.xlane.xlu0 %1716
        %v1718 = vsel %vm1476, %v1714, 0.0
        %1719 = vadd.xlane.f32.xlu0 %v1718
        %v1720 = vpop.xlane.xlu0 %1719
        %v1721 = vpack.c.bf16 %v1714, %v1712
        %v1722 = vpack.c.bf16 %v1427, %v1423
        %v1724 = vsel %vm1476, %v1721, 0
        %1726 = vmatprep.subr.bf16.mxu0 0
        %1727 = vmatpush1.bf16.msra.mxu0 %v1722
        %1728 = vmatprep.subr.bf16.mxu0 0
        %1729 = vmatpush1.bf16.msra.mxu0 0
        %1730 = vmatprep.subr.bf16.mxu0 0
        %1731 = vmatpush1.bf16.msra.mxu0 0
        %1732 = vmatprep.subr.bf16.mxu0 0
        %1733 = vmatpush1.bf16.msra.mxu0 0
        %1734 = vmatprep.subr.bf16.mxu0 0
        %1735 = vmatpush1.bf16.msra.mxu0 0
        %1736 = vmatprep.subr.bf16.mxu0 0
        %1737 = vmatpush1.bf16.msra.mxu0 0
        %1738 = vmatprep.subr.bf16.mxu0 0
        %1739 = vmatpush1.bf16.msra.mxu0 0
        %1740 = vmatprep.subr.bf16.mxu0 0
        %1741 = vmatpush1.bf16.msra.mxu0 0
        %1742 = vmatprep.subr.bf16.mxu0 0
        %1743 = vmatpush1.bf16.msra.mxu0 0
        %1744 = vmatprep.subr.bf16.mxu0 0
        %1745 = vmatpush1.bf16.msra.mxu0 0
        %1746 = vmatprep.subr.bf16.mxu0 0
        %1747 = vmatpush1.bf16.msra.mxu0 0
        %1748 = vmatprep.subr.bf16.mxu0 0
        %1749 = vmatpush1.bf16.msra.mxu0 0
        %1750 = vmatprep.subr.bf16.mxu0 0
        %1751 = vmatpush1.bf16.msra.mxu0 0
        %1752 = vmatprep.subr.bf16.mxu0 0
        %1753 = vmatpush1.bf16.msra.mxu0 0
        %1754 = vmatprep.subr.bf16.mxu0 0
        %1755 = vmatpush1.bf16.msra.mxu0 0
        %1756 = vmatprep.subr.bf16.mxu0 0
        %1757 = vmatpush1.bf16.msra.mxu0 0
        %1758 = vmatprep.mubr.bf16.mxu0 0
        %1759 = vmatmul.mubr.bf16.gmra.mrb[0].mxu0 %v1724
        %v1760 = vpop.f32.mrb[0].mxu0
        %v1761 = vadd.f32 0.0, %v1760
        %v1762 = vpop.f32.mrb[0].mxu0
        %v1763 = vpop.f32.mrb[0].mxu0
        %v1764 = vadd.f32 0.0, %v1763
        %v1765 = vpop.f32.mrb[0].mxu0
        %1766 = vdwg.mxu0
        %v1767 = vrcp.pop %v1717
        %v1768 = vrcp.pop %v1720
        %v1769 = vmul.f32 %v1761, %v1767
        %v1770 = vmul.f32 %v1764, %v1768
        %v1771 = vmul.f32 %v1253, 0.17677669
        %v1772 = vmul.f32 %v1257, 0.17677669
        %v1773 = vpack.c.bf16 %v1772, %v1771
        %v1774 = vpack.c.bf16 %v1343, %v1339
        %1775 = vmatprep.subr.bf16.mxu0 0
        %1776 = vmatpush1.bf16.xpose.msra.mxu0 %v1774
        %1777 = vmatprep.subr.bf16.mxu0 0
        %1778 = vmatpush1.bf16.xpose.msra.mxu0 0
        %1779 = vmatprep.subr.bf16.mxu0 0
        %1780 = vmatpush1.bf16.xpose.msra.mxu0 0
        %1781 = vmatprep.subr.bf16.mxu0 0
        %1782 = vmatpush1.bf16.xpose.msra.mxu0 0
        %1783 = vmatprep.subr.bf16.mxu0 0
        %1784 = vmatpush1.bf16.xpose.msra.mxu0 0
        %1785 = vmatprep.subr.bf16.mxu0 0
        %1786 = vmatpush1.bf16.xpose.msra.mxu0 0
        %1787 = vmatprep.subr.bf16.mxu0 0
        %1788 = vmatpush1.bf16.xpose.msra.mxu0 0
        %1789 = vmatprep.subr.bf16.mxu0 0
        %1790 = vmatpush1.bf16.xpose.msra.mxu0 0
        %1791 = vmatprep.subr.bf16.mxu0 0
        %1792 = vmatpush1.bf16.xpose.msra.mxu0 0
        %1793 = vmatprep.subr.bf16.mxu0 0
        %1794 = vmatpush1.bf16.xpose.msra.mxu0 0
        %1795 = vmatprep.subr.bf16.mxu0 0
        %1796 = vmatpush1.bf16.xpose.msra.mxu0 0
        %1797 = vmatprep.subr.bf16.mxu0 0
        %1798 = vmatpush1.bf16.xpose.msra.mxu0 0
        %1799 = vmatprep.subr.bf16.mxu0 0
        %1800 = vmatpush1.bf16.xpose.msra.mxu0 0
        %1801 = vmatprep.subr.bf16.mxu0 0
        %1802 = vmatpush1.bf16.xpose.msra.mxu0 0
        %1803 = vmatprep.subr.bf16.mxu0 0
        %1804 = vmatpush1.bf16.xpose.msra.mxu0 0
        %1805 = vmatprep.subr.bf16.mxu0 0
        %1806 = vmatpush1.bf16.xpose.msra.mxu0 0
        %1807 = vmatprep.mubr.bf16.mxu0 0
        %1808 = vmatmul.mubr.bf16.gmra.mrb[0].mxu0 %v1773
        %v1809 = vpop.f32.mrb[0].mxu0
        %v1810 = vadd.f32 0.0, %v1809
        %v1811 = vpop.f32.mrb[0].mxu0
        %v1812 = vpop.f32.mrb[0].mxu0
        %v1813 = vadd.f32 0.0, %v1812
        %v1814 = vpop.f32.mrb[0].mxu0
        %1815 = vdwg.mxu0
        %v1816 = vsel %vm1476, %v1810, -inf
        %1817 = vmax.xlane.f32.xlu0 %v1816
        %v1818 = vpop.xlane.xlu0 %1817
        %v1819 = vsel %vm1476, %v1813, -inf
        %1820 = vmax.xlane.f32.xlu0 %v1819
        %v1821 = vpop.xlane.xlu0 %1820
        %v1822 = vsub.f32 %v1810, %v1818
        %v1823 = vsub.f32 %v1813, %v1821
        %v1824 = vmul.f32 %v1822, 1.442695
        %v1825 = vpow.pop %v1824
        %v1826 = vmul.f32 %v1823, 1.442695
        %v1827 = vpow.pop %v1826
        %v1828 = vsel %vm1476, %v1825, 0.0
        %1829 = vadd.xlane.f32.xlu0 %v1828
        %v1830 = vpop.xlane.xlu0 %1829
        %v1831 = vsel %vm1476, %v1827, 0.0
        %1832 = vadd.xlane.f32.xlu0 %v1831
        %v1833 = vpop.xlane.xlu0 %1832
        %v1834 = vpack.c.bf16 %v1827, %v1825
        %v1835 = vpack.c.bf16 %v1429, %v1425
        %v1837 = vsel %vm1476, %v1834, 0
        %1839 = vmatprep.subr.bf16.mxu0 0
        %1840 = vmatpush1.bf16.msra.mxu0 %v1835
        %1841 = vmatprep.subr.bf16.mxu0 0
        %1842 = vmatpush1.bf16.msra.mxu0 0
        %1843 = vmatprep.subr.bf16.mxu0 0
        %1844 = vmatpush1.bf16.msra.mxu0 0
        %1845 = vmatprep.subr.bf16.mxu0 0
        %1846 = vmatpush1.bf16.msra.mxu0 0
        %1847 = vmatprep.subr.bf16.mxu0 0
        %1848 = vmatpush1.bf16.msra.mxu0 0
        %1849 = vmatprep.subr.bf16.mxu0 0
        %1850 = vmatpush1.bf16.msra.mxu0 0
        %1851 = vmatprep.subr.bf16.mxu0 0
        %1852 = vmatpush1.bf16.msra.mxu0 0
        %1853 = vmatprep.subr.bf16.mxu0 0
        %1854 = vmatpush1.bf16.msra.mxu0 0
        %1855 = vmatprep.subr.bf16.mxu0 0
        %1856 = vmatpush1.bf16.msra.mxu0 0
        %1857 = vmatprep.subr.bf16.mxu0 0
        %1858 = vmatpush1.bf16.msra.mxu0 0
        %1859 = vmatprep.subr.bf16.mxu0 0
        %1860 = vmatpush1.bf16.msra.mxu0 0
        %1861 = vmatprep.subr.bf16.mxu0 0
        %1862 = vmatpush1.bf16.msra.mxu0 0
        %1863 = vmatprep.subr.bf16.mxu0 0
        %1864 = vmatpush1.bf16.msra.mxu0 0
        %1865 = vmatprep.subr.bf16.mxu0 0
        %1866 = vmatpush1.bf16.msra.mxu0 0
        %1867 = vmatprep.subr.bf16.mxu0 0
        %1868 = vmatpush1.bf16.msra.mxu0 0
        %1869 = vmatprep.subr.bf16.mxu0 0
        %1870 = vmatpush1.bf16.msra.mxu0 0
        %1871 = vmatprep.mubr.bf16.mxu0 0
        %1872 = vmatmul.mubr.bf16.gmra.mrb[0].mxu0 %v1837
        %v1873 = vpop.f32.mrb[0].mxu0
        %v1874 = vadd.f32 0.0, %v1873
        %v1875 = vpop.f32.mrb[0].mxu0
        %v1876 = vpop.f32.mrb[0].mxu0
        %v1877 = vadd.f32 0.0, %v1876
        %v1878 = vpop.f32.mrb[0].mxu0
        %1879 = vdwg.mxu0
        %v1880 = vrcp.pop %v1830
        %v1881 = vrcp.pop %v1833
        %v1882 = vmul.f32 %v1874, %v1880
        %v1883 = vmul.f32 %v1877, %v1881
        %v1884 = vpack.c.bf16 %v1544, %v1543
        %v1885 = vpack.c.bf16 %v1657, %v1656
        %v1886 = vpack.c.bf16 %v1770, %v1769
        %v1887 = vpack.c.bf16 %v1883, %v1882
        %v1888 = vld [vmem:[#allocation8] sm:$0xf]
        %v1889 = vld [vmem:[#allocation8 + $0x4] sm:$0xf]
        %v1890 = vld [vmem:[#allocation8 + $0x8] sm:$0xf]
        %v1891 = vld [vmem:[#allocation8 + $0xc] sm:$0xf]
        %v1892 = vld [vmem:[#allocation8 + $0x10] sm:$0xf]
        %v1893 = vld [vmem:[#allocation8 + $0x14] sm:$0xf]
        %v1894 = vld [vmem:[#allocation8 + $0x18] sm:$0xf]
        %v1895 = vld [vmem:[#allocation8 + $0x1c] sm:$0xf]
        %v1896 = vld [vmem:[#allocation8 + $0x20] sm:$0xf]
        %v1897 = vld [vmem:[#allocation8 + $0x24] sm:$0xf]
        %v1898 = vld [vmem:[#allocation8 + $0x28] sm:$0xf]
        %v1899 = vld [vmem:[#allocation8 + $0x2c] sm:$0xf]
        %v1900 = vld [vmem:[#allocation8 + $0x30] sm:$0xf]
        %v1901 = vld [vmem:[#allocation8 + $0x34] sm:$0xf]
        %v1902 = vld [vmem:[#allocation8 + $0x38] sm:$0xf]
        %v1903 = vld [vmem:[#allocation8 + $0x3c] sm:$0xf]
        %v1904 = vld [vmem:[#allocation8 + $0x40] sm:$0xf]
        %v1905 = vld [vmem:[#allocation8 + $0x44] sm:$0xf]
        %v1906 = vld [vmem:[#allocation8 + $0x48] sm:$0xf]
        %v1907 = vld [vmem:[#allocation8 + $0x4c] sm:$0xf]
        %v1908 = vld [vmem:[#allocation8 + $0x50] sm:$0xf]
        %v1909 = vld [vmem:[#allocation8 + $0x54] sm:$0xf]
        %v1910 = vld [vmem:[#allocation8 + $0x58] sm:$0xf]
        %v1911 = vld [vmem:[#allocation8 + $0x5c] sm:$0xf]
        %v1912 = vld [vmem:[#allocation8 + $0x60] sm:$0xf]
        %v1913 = vld [vmem:[#allocation8 + $0x64] sm:$0xf]
        %v1914 = vld [vmem:[#allocation8 + $0x68] sm:$0xf]
        %v1915 = vld [vmem:[#allocation8 + $0x6c] sm:$0xf]
        %v1916 = vld [vmem:[#allocation8 + $0x70] sm:$0xf]
        %v1917 = vld [vmem:[#allocation8 + $0x74] sm:$0xf]
        %v1918 = vld [vmem:[#allocation8 + $0x78] sm:$0xf]
        %v1919 = vld [vmem:[#allocation8 + $0x7c] sm:$0xf]
        %v1920 = vld [vmem:[#allocation8 + $0x80] sm:$0xf]
        %v1921 = vld [vmem:[#allocation8 + $0x84] sm:$0xf]
        %v1922 = vld [vmem:[#allocation8 + $0x88] sm:$0xf]
        %v1923 = vld [vmem:[#allocation8 + $0x8c] sm:$0xf]
        %v1924 = vld [vmem:[#allocation8 + $0x90] sm:$0xf]
        %v1925 = vld [vmem:[#allocation8 + $0x94] sm:$0xf]
        %v1926 = vld [vmem:[#allocation8 + $0x98] sm:$0xf]
        %v1927 = vld [vmem:[#allocation8 + $0x9c] sm:$0xf]
        %v1928 = vld [vmem:[#allocation8 + $0xa0] sm:$0xf]
        %v1929 = vld [vmem:[#allocation8 + $0xa4] sm:$0xf]
        %v1930 = vld [vmem:[#allocation8 + $0xa8] sm:$0xf]
        %v1931 = vld [vmem:[#allocation8 + $0xac] sm:$0xf]
        %v1932 = vld [vmem:[#allocation8 + $0xb0] sm:$0xf]
        %v1933 = vld [vmem:[#allocation8 + $0xb4] sm:$0xf]
        %v1934 = vld [vmem:[#allocation8 + $0xb8] sm:$0xf]
        %v1935 = vld [vmem:[#allocation8 + $0xbc] sm:$0xf]
        %v1936 = vld [vmem:[#allocation8 + $0xc0] sm:$0xf]
        %v1937 = vld [vmem:[#allocation8 + $0xc4] sm:$0xf]
        %v1938 = vld [vmem:[#allocation8 + $0xc8] sm:$0xf]
        %v1939 = vld [vmem:[#allocation8 + $0xcc] sm:$0xf]
        %v1940 = vld [vmem:[#allocation8 + $0xd0] sm:$0xf]
        %v1941 = vld [vmem:[#allocation8 + $0xd4] sm:$0xf]
        %v1942 = vld [vmem:[#allocation8 + $0xd8] sm:$0xf]
        %v1943 = vld [vmem:[#allocation8 + $0xdc] sm:$0xf]
        %v1944 = vld [vmem:[#allocation8 + $0xe0] sm:$0xf]
        %v1945 = vld [vmem:[#allocation8 + $0xe4] sm:$0xf]
        %v1946 = vld [vmem:[#allocation8 + $0xe8] sm:$0xf]
        %v1947 = vld [vmem:[#allocation8 + $0xec] sm:$0xf]
        %v1948 = vld [vmem:[#allocation8 + $0xf0] sm:$0xf]
        %v1949 = vld [vmem:[#allocation8 + $0xf4] sm:$0xf]
        %v1950 = vld [vmem:[#allocation8 + $0xf8] sm:$0xf]
        %v1951 = vld [vmem:[#allocation8 + $0xfc] sm:$0xf]
        %v1952 = vld [vmem:[%s4] sm:$0x1]
        %v1954 = vlaneseq
        %v1955 = vshrl.u32 %v1954, 7
        %v1956 = vsub.s32 0, %v1955
        %v1957 = vrot.slane %v1952, %v1956
        %v2023 = vunpack.c.l.b16 %v1888
        %v2024 = vunpack.c.l.b16 %v1889
        %v2025 = vunpack.c.l.b16 %v1890
        %v2026 = vunpack.c.l.b16 %v1891
        %v2027 = vunpack.c.l.b16 %v1892
        %v2028 = vunpack.c.l.b16 %v1893
        %v2029 = vunpack.c.l.b16 %v1894
        %v2030 = vunpack.c.l.b16 %v1895
        %v2031 = vunpack.c.l.b16 %v1896
        %v2032 = vunpack.c.l.b16 %v1897
        %v2033 = vunpack.c.l.b16 %v1898
        %v2034 = vunpack.c.l.b16 %v1899
        %v2035 = vunpack.c.l.b16 %v1900
        %v2036 = vunpack.c.l.b16 %v1901
        %v2037 = vunpack.c.l.b16 %v1902
        %v2038 = vunpack.c.l.b16 %v1903
        %v2039 = vunpack.c.l.b16 %v1904
        %v2040 = vunpack.c.l.b16 %v1905
        %v2041 = vunpack.c.l.b16 %v1906
        %v2042 = vunpack.c.l.b16 %v1907
        %v2043 = vunpack.c.l.b16 %v1908
        %v2044 = vunpack.c.l.b16 %v1909
        %v2045 = vunpack.c.l.b16 %v1910
        %v2046 = vunpack.c.l.b16 %v1911
        %v2047 = vunpack.c.l.b16 %v1912
        %v2048 = vunpack.c.l.b16 %v1913
        %v2049 = vunpack.c.l.b16 %v1914
        %v2050 = vunpack.c.l.b16 %v1915
        %v2051 = vunpack.c.l.b16 %v1916
        %v2052 = vunpack.c.l.b16 %v1917
        %v2053 = vunpack.c.l.b16 %v1918
        %v2054 = vunpack.c.l.b16 %v1919
        %v2055 = vunpack.c.l.b16 %v1920
        %v2056 = vunpack.c.l.b16 %v1921
        %v2057 = vunpack.c.l.b16 %v1922
        %v2058 = vunpack.c.l.b16 %v1923
        %v2059 = vunpack.c.l.b16 %v1924
        %v2060 = vunpack.c.l.b16 %v1925
        %v2061 = vunpack.c.l.b16 %v1926
        %v2062 = vunpack.c.l.b16 %v1927
        %v2063 = vunpack.c.l.b16 %v1928
        %v2064 = vunpack.c.l.b16 %v1929
        %v2065 = vunpack.c.l.b16 %v1930
        %v2066 = vunpack.c.l.b16 %v1931
        %v2067 = vunpack.c.l.b16 %v1932
        %v2068 = vunpack.c.l.b16 %v1933
        %v2069 = vunpack.c.l.b16 %v1934
        %v2070 = vunpack.c.l.b16 %v1935
        %v2071 = vunpack.c.l.b16 %v1936
        %v2072 = vunpack.c.l.b16 %v1937
        %v2073 = vunpack.c.l.b16 %v1938
        %v2074 = vunpack.c.l.b16 %v1939
        %v2075 = vunpack.c.l.b16 %v1940
        %v2076 = vunpack.c.l.b16 %v1941
        %v2077 = vunpack.c.l.b16 %v1942
        %v2078 = vunpack.c.l.b16 %v1943
        %v2079 = vunpack.c.l.b16 %v1944
        %v2080 = vunpack.c.l.b16 %v1945
        %v2081 = vunpack.c.l.b16 %v1946
        %v2082 = vunpack.c.l.b16 %v1947
        %v2083 = vunpack.c.l.b16 %v1948
        %v2084 = vunpack.c.l.b16 %v1949
        %v2085 = vunpack.c.l.b16 %v1950
        %v2086 = vunpack.c.l.b16 %v1951
        %v2087 = vpack.c.b16 %v2024, %v2023
        %v2088 = vpack.c.b16 %v2026, %v2025
        %v2089 = vpack.c.b16 %v2028, %v2027
        %v2090 = vpack.c.b16 %v2030, %v2029
        %v2091 = vpack.c.b16 %v2032, %v2031
        %v2092 = vpack.c.b16 %v2034, %v2033
        %v2093 = vpack.c.b16 %v2036, %v2035
        %v2094 = vpack.c.b16 %v2038, %v2037
        %v2095 = vpack.c.b16 %v2040, %v2039
        %v2096 = vpack.c.b16 %v2042, %v2041
        %v2097 = vpack.c.b16 %v2044, %v2043
        %v2098 = vpack.c.b16 %v2046, %v2045
        %v2099 = vpack.c.b16 %v2048, %v2047
        %v2100 = vpack.c.b16 %v2050, %v2049
        %v2101 = vpack.c.b16 %v2052, %v2051
        %v2102 = vpack.c.b16 %v2054, %v2053
        %v2103 = vpack.c.b16 %v2056, %v2055
        %v2104 = vpack.c.b16 %v2058, %v2057
        %v2105 = vpack.c.b16 %v2060, %v2059
        %v2106 = vpack.c.b16 %v2062, %v2061
        %v2107 = vpack.c.b16 %v2064, %v2063
        %v2108 = vpack.c.b16 %v2066, %v2065
        %v2109 = vpack.c.b16 %v2068, %v2067
        %v2110 = vpack.c.b16 %v2070, %v2069
        %v2111 = vpack.c.b16 %v2072, %v2071
        %v2112 = vpack.c.b16 %v2074, %v2073
        %v2113 = vpack.c.b16 %v2076, %v2075
        %v2114 = vpack.c.b16 %v2078, %v2077
        %v2115 = vpack.c.b16 %v2080, %v2079
        %v2116 = vpack.c.b16 %v2082, %v2081
        %v2117 = vpack.c.b16 %v2084, %v2083
        %v2118 = vpack.c.b16 %v2086, %v2085
        %2151 = vmatprep.subr.bf16.mxu0 0
        %2152 = vmatpush1.bf16.msra.mxu0 %v2087
        %2153 = vmatprep.subr.bf16.mxu0 0
        %2154 = vmatpush1.bf16.msra.mxu0 %v2088
        %2155 = vmatprep.subr.bf16.mxu0 0
        %2156 = vmatpush1.bf16.msra.mxu0 %v2089
        %2157 = vmatprep.subr.bf16.mxu0 0
        %2158 = vmatpush1.bf16.msra.mxu0 %v2090
        %2159 = vmatprep.subr.bf16.mxu0 0
        %2160 = vmatpush1.bf16.msra.mxu0 %v2091
        %2161 = vmatprep.subr.bf16.mxu0 0
        %2162 = vmatpush1.bf16.msra.mxu0 %v2092
        %2163 = vmatprep.subr.bf16.mxu0 0
        %2164 = vmatpush1.bf16.msra.mxu0 %v2093
        %2165 = vmatprep.subr.bf16.mxu0 0
        %2166 = vmatpush1.bf16.msra.mxu0 %v2094
        %2167 = vmatprep.subr.bf16.mxu0 0
        %2168 = vmatpush1.bf16.msra.mxu0 %v2095
        %2169 = vmatprep.subr.bf16.mxu0 0
        %2170 = vmatpush1.bf16.msra.mxu0 %v2096
        %2171 = vmatprep.subr.bf16.mxu0 0
        %2172 = vmatpush1.bf16.msra.mxu0 %v2097
        %2173 = vmatprep.subr.bf16.mxu0 0
        %2174 = vmatpush1.bf16.msra.mxu0 %v2098
        %2175 = vmatprep.subr.bf16.mxu0 0
        %2176 = vmatpush1.bf16.msra.mxu0 %v2099
        %2177 = vmatprep.subr.bf16.mxu0 0
        %2178 = vmatpush1.bf16.msra.mxu0 %v2100
        %2179 = vmatprep.subr.bf16.mxu0 0
        %2180 = vmatpush1.bf16.msra.mxu0 %v2101
        %2181 = vmatprep.subr.bf16.mxu0 0
        %2182 = vmatpush1.bf16.msra.mxu0 %v2102
        %2183 = vmatprep.mubr.bf16.mxu0 %v1885
        %2184 = vmatmul.mubr.bf16.gmra.mrb[0].mxu0 %v1884
        %v2185 = vpop.f32.mrb[0].mxu0
        %v2186 = vadd.f32 %v1957, %v2185
        %v2187 = vpop.f32.mrb[0].mxu0
        %v2188 = vpop.f32.mrb[0].mxu0
        %v2189 = vadd.f32 %v1957, %v2188
        %v2190 = vpop.f32.mrb[0].mxu0
        %2191 = vdwg.mxu0
        %2192 = vmatprep.subr.bf16.mxu0 0
        %2193 = vmatpush1.bf16.msra.mxu0 %v2103
        %2194 = vmatprep.subr.bf16.mxu0 0
        %2195 = vmatpush1.bf16.msra.mxu0 %v2104
        %2196 = vmatprep.subr.bf16.mxu0 0
        %2197 = vmatpush1.bf16.msra.mxu0 %v2105
        %2198 = vmatprep.subr.bf16.mxu0 0
        %2199 = vmatpush1.bf16.msra.mxu0 %v2106
        %2200 = vmatprep.subr.bf16.mxu0 0
        %2201 = vmatpush1.bf16.msra.mxu0 %v2107
        %2202 = vmatprep.subr.bf16.mxu0 0
        %2203 = vmatpush1.bf16.msra.mxu0 %v2108
        %2204 = vmatprep.subr.bf16.mxu0 0
        %2205 = vmatpush1.bf16.msra.mxu0 %v2109
        %2206 = vmatprep.subr.bf16.mxu0 0
        %2207 = vmatpush1.bf16.msra.mxu0 %v2110
        %2208 = vmatprep.subr.bf16.mxu0 0
        %2209 = vmatpush1.bf16.msra.mxu0 %v2111
        %2210 = vmatprep.subr.bf16.mxu0 0
        %2211 = vmatpush1.bf16.msra.mxu0 %v2112
        %2212 = vmatprep.subr.bf16.mxu0 0
        %2213 = vmatpush1.bf16.msra.mxu0 %v2113
        %2214 = vmatprep.subr.bf16.mxu0 0
        %2215 = vmatpush1.bf16.msra.mxu0 %v2114
        %2216 = vmatprep.subr.bf16.mxu0 0
        %2217 = vmatpush1.bf16.msra.mxu0 %v2115
        %2218 = vmatprep.subr.bf16.mxu0 0
        %2219 = vmatpush1.bf16.msra.mxu0 %v2116
        %2220 = vmatprep.subr.bf16.mxu0 0
        %2221 = vmatpush1.bf16.msra.mxu0 %v2117
        %2222 = vmatprep.subr.bf16.mxu0 0
        %2223 = vmatpush1.bf16.msra.mxu0 %v2118
        %2224 = vmatprep.mubr.bf16.mxu0 %v1887
        %2225 = vmatmul.mubr.bf16.gmra.mrb[0].mxu0 %v1886
        %v2226 = vpop.f32.mrb[0].mxu0
        %v2227 = vadd.f32 %v2186, %v2226
        %v2228 = vpop.f32.mrb[0].mxu0
        %v2229 = vpop.f32.mrb[0].mxu0
        %v2230 = vadd.f32 %v2189, %v2229
        %v2231 = vpop.f32.mrb[0].mxu0
        %2232 = vdwg.mxu0
        %v2233 = vadd.f32 %v530, %v2227
        %v2234 = vadd.f32 %v531, %v2230
        %v2235 = vld [vmem:[%s9] sm:$0x1]
        %v2236 = vld [vmem:[%s10] sm:$0x1]
        %2237 = vadd.xlane.f32.xlu0 %v2233
        %v2238 = vpop.xlane.xlu0 %2237
        %2239 = vadd.xlane.f32.xlu0 %v2234
        %v2240 = vpop.xlane.xlu0 %2239
        %v2241 = vrcp.pop 128.0
        %v2242 = vmul.f32 %v2238, %v2241
        %v2243 = vmul.f32 %v2240, %v2241
        %v2244 = vsub.f32 %v2233, %v2242
        %v2245 = vsub.f32 %v2234, %v2243
        %v2246 = vmul.f32 %v2244, %v2244
        %v2247 = vmul.f32 %v2245, %v2245
        %2248 = vadd.xlane.f32.xlu0 %v2246
        %v2249 = vpop.xlane.xlu0 %2248
        %2250 = vadd.xlane.f32.xlu0 %v2247
        %v2251 = vpop.xlane.xlu0 %2250
        %v2252 = vmul.f32 %v2249, %v2241
        %v2253 = vmul.f32 %v2251, %v2241
        %v2254 = vadd.f32 %v2252, 1e-05
        %v2255 = vadd.f32 %v2253, 1e-05
        %v2256 = vrsqrt.pop %v2254
        %v2257 = vrsqrt.pop %v2255
        %v2258 = vmul.f32 %v2244, %v2256
        %v2259 = vmul.f32 %v2245, %v2257
        %v2261 = vlaneseq
        %v2262 = vshrl.u32 %v2261, 7
        %v2263 = vsub.s32 0, %v2262
        %v2264 = vrot.slane %v2235, %v2263
        %v2266 = vmul.f32 %v2258, %v2264
        %v2267 = vmul.f32 %v2259, %v2264
        %v2269 = vlaneseq
        %v2270 = vshrl.u32 %v2269, 7
        %v2271 = vsub.s32 0, %v2270
        %v2272 = vrot.slane %v2236, %v2271
        %v2274 = vadd.f32 %v2266, %v2272
        %v2275 = vadd.f32 %v2267, %v2272
        %v2276 = vpack.c.bf16 %v2275, %v2274
        %v2277 = vld [vmem:[#allocation10] sm:$0xff]
        %v2278 = vld [vmem:[#allocation10 + $0x8] sm:$0xff]
        %v2279 = vld [vmem:[#allocation10 + $0x10] sm:$0xff]
        %v2280 = vld [vmem:[#allocation10 + $0x18] sm:$0xff]
        %v2281 = vld [vmem:[#allocation10 + $0x20] sm:$0xff]
        %v2282 = vld [vmem:[#allocation10 + $0x28] sm:$0xff]
        %v2283 = vld [vmem:[#allocation10 + $0x30] sm:$0xff]
        %v2284 = vld [vmem:[#allocation10 + $0x38] sm:$0xff]
        %v2285 = vld [vmem:[#allocation10 + $0x40] sm:$0xff]
        %v2286 = vld [vmem:[#allocation10 + $0x48] sm:$0xff]
        %v2287 = vld [vmem:[#allocation10 + $0x50] sm:$0xff]
        %v2288 = vld [vmem:[#allocation10 + $0x58] sm:$0xff]
        %v2289 = vld [vmem:[#allocation10 + $0x60] sm:$0xff]
        %v2290 = vld [vmem:[#allocation10 + $0x68] sm:$0xff]
        %v2291 = vld [vmem:[#allocation10 + $0x70] sm:$0xff]
        %v2292 = vld [vmem:[#allocation10 + $0x78] sm:$0xff]
        %v2293 = vld [vmem:[%s6] sm:$0x3]
        %v2295 = vlaneseq
        %v2296 = vshrl.u32 %v2295, 7
        %v2297 = vsub.s32 0, %v2296
        %v2298 = vrot.slane %v2293, %v2297
        %v2299 = vlaneseq
        %v2300 = vshrl.u32 %v2299, 7
        %v2301 = vsub.s32 1, %v2300
        %v2302 = vrot.slane %v2293, %v2301
        %v2321 = vunpack.c.l.b16 %v2277
        %v2322 = vunpack.c.h.b16 %v2277
        %v2323 = vunpack.c.l.b16 %v2278
        %v2324 = vunpack.c.h.b16 %v2278
        %v2325 = vunpack.c.l.b16 %v2279
        %v2326 = vunpack.c.h.b16 %v2279
        %v2327 = vunpack.c.l.b16 %v2280
        %v2328 = vunpack.c.h.b16 %v2280
        %v2329 = vunpack.c.l.b16 %v2281
        %v2330 = vunpack.c.h.b16 %v2281
        %v2331 = vunpack.c.l.b16 %v2282
        %v2332 = vunpack.c.h.b16 %v2282
        %v2333 = vunpack.c.l.b16 %v2283
        %v2334 = vunpack.c.h.b16 %v2283
        %v2335 = vunpack.c.l.b16 %v2284
        %v2336 = vunpack.c.h.b16 %v2284
        %v2337 = vunpack.c.l.b16 %v2285
        %v2338 = vunpack.c.h.b16 %v2285
        %v2339 = vunpack.c.l.b16 %v2286
        %v2340 = vunpack.c.h.b16 %v2286
        %v2341 = vunpack.c.l.b16 %v2287
        %v2342 = vunpack.c.h.b16 %v2287
        %v2343 = vunpack.c.l.b16 %v2288
        %v2344 = vunpack.c.h.b16 %v2288
        %v2345 = vunpack.c.l.b16 %v2289
        %v2346 = vunpack.c.h.b16 %v2289
        %v2347 = vunpack.c.l.b16 %v2290
        %v2348 = vunpack.c.h.b16 %v2290
        %v2349 = vunpack.c.l.b16 %v2291
        %v2350 = vunpack.c.h.b16 %v2291
        %v2351 = vunpack.c.l.b16 %v2292
        %v2352 = vunpack.c.h.b16 %v2292
        %v2353 = vpack.c.b16 %v2323, %v2321
        %v2354 = vpack.c.b16 %v2324, %v2322
        %v2355 = vpack.c.b16 %v2327, %v2325
        %v2356 = vpack.c.b16 %v2328, %v2326
        %v2357 = vpack.c.b16 %v2331, %v2329
        %v2358 = vpack.c.b16 %v2332, %v2330
        %v2359 = vpack.c.b16 %v2335, %v2333
        %v2360 = vpack.c.b16 %v2336, %v2334
        %v2361 = vpack.c.b16 %v2339, %v2337
        %v2362 = vpack.c.b16 %v2340, %v2338
        %v2363 = vpack.c.b16 %v2343, %v2341
        %v2364 = vpack.c.b16 %v2344, %v2342
        %v2365 = vpack.c.b16 %v2347, %v2345
        %v2366 = vpack.c.b16 %v2348, %v2346
        %v2367 = vpack.c.b16 %v2351, %v2349
        %v2368 = vpack.c.b16 %v2352, %v2350
        %2385 = vmatprep.subr.bf16.mxu0 %v2354
        %2386 = vmatpush1.bf16.msra.mxu0 %v2353
        %2387 = vmatprep.subr.bf16.mxu0 %v2356
        %2388 = vmatpush1.bf16.msra.mxu0 %v2355
        %2389 = vmatprep.subr.bf16.mxu0 %v2358
        %2390 = vmatpush1.bf16.msra.mxu0 %v2357
        %2391 = vmatprep.subr.bf16.mxu0 %v2360
        %2392 = vmatpush1.bf16.msra.mxu0 %v2359
        %2393 = vmatprep.subr.bf16.mxu0 %v2362
        %2394 = vmatpush1.bf16.msra.mxu0 %v2361
        %2395 = vmatprep.subr.bf16.mxu0 %v2364
        %2396 = vmatpush1.bf16.msra.mxu0 %v2363
        %2397 = vmatprep.subr.bf16.mxu0 %v2366
        %2398 = vmatpush1.bf16.msra.mxu0 %v2365
        %2399 = vmatprep.subr.bf16.mxu0 %v2368
        %2400 = vmatpush1.bf16.msra.mxu0 %v2367
        %2401 = vmatprep.subr.bf16.mxu0 0
        %2402 = vmatpush1.bf16.msra.mxu0 0
        %2403 = vmatprep.subr.bf16.mxu0 0
        %2404 = vmatpush1.bf16.msra.mxu0 0
        %2405 = vmatprep.subr.bf16.mxu0 0
        %2406 = vmatpush1.bf16.msra.mxu0 0
        %2407 = vmatprep.subr.bf16.mxu0 0
        %2408 = vmatpush1.bf16.msra.mxu0 0
        %2409 = vmatprep.subr.bf16.mxu0 0
        %2410 = vmatpush1.bf16.msra.mxu0 0
        %2411 = vmatprep.subr.bf16.mxu0 0
        %2412 = vmatpush1.bf16.msra.mxu0 0
        %2413 = vmatprep.subr.bf16.mxu0 0
        %2414 = vmatpush1.bf16.msra.mxu0 0
        %2415 = vmatprep.subr.bf16.mxu0 0
        %2416 = vmatpush1.bf16.msra.mxu0 0
        %2417 = vmatprep.mubr.bf16.mxu0 0
        %2418 = vmatmul.mubr.bf16.gmra.mrb[0].mxu0 %v2276
        %v2419 = vpop.f32.mrb[0].mxu0
        %v2420 = vadd.f32 %v2298, %v2419
        %v2421 = vpop.f32.mrb[0].mxu0
        %v2422 = vadd.f32 %v2302, %v2421
        %v2423 = vpop.f32.mrb[0].mxu0
        %v2424 = vadd.f32 %v2298, %v2423
        %v2425 = vpop.f32.mrb[0].mxu0
        %v2426 = vadd.f32 %v2302, %v2425
        %2427 = vdwg.mxu0
        %v2428 = vmax.f32 %v2420, 0.0
        %v2429 = vmax.f32 %v2422, 0.0
        %v2430 = vmax.f32 %v2424, 0.0
        %v2431 = vmax.f32 %v2426, 0.0
        %v2432 = vpack.c.bf16 %v2430, %v2428
        %v2433 = vpack.c.bf16 %v2431, %v2429
        %v2434 = vld [vmem:[#allocation11] sm:$0xf]
        %v2435 = vld [vmem:[#allocation11 + $0x4] sm:$0xf]
        %v2436 = vld [vmem:[#allocation11 + $0x8] sm:$0xf]
        %v2437 = vld [vmem:[#allocation11 + $0xc] sm:$0xf]
        %v2438 = vld [vmem:[#allocation11 + $0x10] sm:$0xf]
        %v2439 = vld [vmem:[#allocation11 + $0x14] sm:$0xf]
        %v2440 = vld [vmem:[#allocation11 + $0x18] sm:$0xf]
        %v2441 = vld [vmem:[#allocation11 + $0x1c] sm:$0xf]
        %v2442 = vld [vmem:[#allocation11 + $0x20] sm:$0xf]
        %v2443 = vld [vmem:[#allocation11 + $0x24] sm:$0xf]
        %v2444 = vld [vmem:[#allocation11 + $0x28] sm:$0xf]
        %v2445 = vld [vmem:[#allocation11 + $0x2c] sm:$0xf]
        %v2446 = vld [vmem:[#allocation11 + $0x30] sm:$0xf]
        %v2447 = vld [vmem:[#allocation11 + $0x34] sm:$0xf]
        %v2448 = vld [vmem:[#allocation11 + $0x38] sm:$0xf]
        %v2449 = vld [vmem:[#allocation11 + $0x3c] sm:$0xf]
        %v2450 = vld [vmem:[#allocation11 + $0x40] sm:$0xf]
        %v2451 = vld [vmem:[#allocation11 + $0x44] sm:$0xf]
        %v2452 = vld [vmem:[#allocation11 + $0x48] sm:$0xf]
        %v2453 = vld [vmem:[#allocation11 + $0x4c] sm:$0xf]
        %v2454 = vld [vmem:[#allocation11 + $0x50] sm:$0xf]
        %v2455 = vld [vmem:[#allocation11 + $0x54] sm:$0xf]
        %v2456 = vld [vmem:[#allocation11 + $0x58] sm:$0xf]
        %v2457 = vld [vmem:[#allocation11 + $0x5c] sm:$0xf]
        %v2458 = vld [vmem:[#allocation11 + $0x60] sm:$0xf]
        %v2459 = vld [vmem:[#allocation11 + $0x64] sm:$0xf]
        %v2460 = vld [vmem:[#allocation11 + $0x68] sm:$0xf]
        %v2461 = vld [vmem:[#allocation11 + $0x6c] sm:$0xf]
        %v2462 = vld [vmem:[#allocation11 + $0x70] sm:$0xf]
        %v2463 = vld [vmem:[#allocation11 + $0x74] sm:$0xf]
        %v2464 = vld [vmem:[#allocation11 + $0x78] sm:$0xf]
        %v2465 = vld [vmem:[#allocation11 + $0x7c] sm:$0xf]
        %v2466 = vld [vmem:[%s8] sm:$0x1]
        %v2468 = vlaneseq
        %v2469 = vshrl.u32 %v2468, 7
        %v2470 = vsub.s32 0, %v2469
        %v2471 = vrot.slane %v2466, %v2470
        %v2505 = vunpack.c.l.b16 %v2434
        %v2506 = vunpack.c.l.b16 %v2435
        %v2507 = vunpack.c.l.b16 %v2436
        %v2508 = vunpack.c.l.b16 %v2437
        %v2509 = vunpack.c.l.b16 %v2438
        %v2510 = vunpack.c.l.b16 %v2439
        %v2511 = vunpack.c.l.b16 %v2440
        %v2512 = vunpack.c.l.b16 %v2441
        %v2513 = vunpack.c.l.b16 %v2442
        %v2514 = vunpack.c.l.b16 %v2443
        %v2515 = vunpack.c.l.b16 %v2444
        %v2516 = vunpack.c.l.b16 %v2445
        %v2517 = vunpack.c.l.b16 %v2446
        %v2518 = vunpack.c.l.b16 %v2447
        %v2519 = vunpack.c.l.b16 %v2448
        %v2520 = vunpack.c.l.b16 %v2449
        %v2521 = vunpack.c.l.b16 %v2450
        %v2522 = vunpack.c.l.b16 %v2451
        %v2523 = vunpack.c.l.b16 %v2452
        %v2524 = vunpack.c.l.b16 %v2453
        %v2525 = vunpack.c.l.b16 %v2454
        %v2526 = vunpack.c.l.b16 %v2455
        %v2527 = vunpack.c.l.b16 %v2456
        %v2528 = vunpack.c.l.b16 %v2457
        %v2529 = vunpack.c.l.b16 %v2458
        %v2530 = vunpack.c.l.b16 %v2459
        %v2531 = vunpack.c.l.b16 %v2460
        %v2532 = vunpack.c.l.b16 %v2461
        %v2533 = vunpack.c.l.b16 %v2462
        %v2534 = vunpack.c.l.b16 %v2463
        %v2535 = vunpack.c.l.b16 %v2464
        %v2536 = vunpack.c.l.b16 %v2465
        %v2537 = vpack.c.b16 %v2506, %v2505
        %v2538 = vpack.c.b16 %v2508, %v2507
        %v2539 = vpack.c.b16 %v2510, %v2509
        %v2540 = vpack.c.b16 %v2512, %v2511
        %v2541 = vpack.c.b16 %v2514, %v2513
        %v2542 = vpack.c.b16 %v2516, %v2515
        %v2543 = vpack.c.b16 %v2518, %v2517
        %v2544 = vpack.c.b16 %v2520, %v2519
        %v2545 = vpack.c.b16 %v2522, %v2521
        %v2546 = vpack.c.b16 %v2524, %v2523
        %v2547 = vpack.c.b16 %v2526, %v2525
        %v2548 = vpack.c.b16 %v2528, %v2527
        %v2549 = vpack.c.b16 %v2530, %v2529
        %v2550 = vpack.c.b16 %v2532, %v2531
        %v2551 = vpack.c.b16 %v2534, %v2533
        %v2552 = vpack.c.b16 %v2536, %v2535
        %2569 = vmatprep.subr.bf16.mxu0 0
        %2570 = vmatpush1.bf16.msra.mxu0 %v2537
        %2571 = vmatprep.subr.bf16.mxu0 0
        %2572 = vmatpush1.bf16.msra.mxu0 %v2538
        %2573 = vmatprep.subr.bf16.mxu0 0
        %2574 = vmatpush1.bf16.msra.mxu0 %v2539
        %2575 = vmatprep.subr.bf16.mxu0 0
        %2576 = vmatpush1.bf16.msra.mxu0 %v2540
        %2577 = vmatprep.subr.bf16.mxu0 0
        %2578 = vmatpush1.bf16.msra.mxu0 %v2541
        %2579 = vmatprep.subr.bf16.mxu0 0
        %2580 = vmatpush1.bf16.msra.mxu0 %v2542
        %2581 = vmatprep.subr.bf16.mxu0 0
        %2582 = vmatpush1.bf16.msra.mxu0 %v2543
        %2583 = vmatprep.subr.bf16.mxu0 0
        %2584 = vmatpush1.bf16.msra.mxu0 %v2544
        %2585 = vmatprep.subr.bf16.mxu0 0
        %2586 = vmatpush1.bf16.msra.mxu0 %v2545
        %2587 = vmatprep.subr.bf16.mxu0 0
        %2588 = vmatpush1.bf16.msra.mxu0 %v2546
        %2589 = vmatprep.subr.bf16.mxu0 0
        %2590 = vmatpush1.bf16.msra.mxu0 %v2547
        %2591 = vmatprep.subr.bf16.mxu0 0
        %2592 = vmatpush1.bf16.msra.mxu0 %v2548
        %2593 = vmatprep.subr.bf16.mxu0 0
        %2594 = vmatpush1.bf16.msra.mxu0 %v2549
        %2595 = vmatprep.subr.bf16.mxu0 0
        %2596 = vmatpush1.bf16.msra.mxu0 %v2550
        %2597 = vmatprep.subr.bf16.mxu0 0
        %2598 = vmatpush1.bf16.msra.mxu0 %v2551
        %2599 = vmatprep.subr.bf16.mxu0 0
        %2600 = vmatpush1.bf16.msra.mxu0 %v2552
        %2601 = vmatprep.mubr.bf16.mxu0 %v2433
        %2602 = vmatmul.mubr.bf16.gmra.mrb[0].mxu0 %v2432
        %v2603 = vpop.f32.mrb[0].mxu0
        %v2604 = vadd.f32 %v2471, %v2603
        %v2605 = vpop.f32.mrb[0].mxu0
        %v2606 = vpop.f32.mrb[0].mxu0
        %v2607 = vadd.f32 %v2471, %v2606
        %v2608 = vpop.f32.mrb[0].mxu0
        %2609 = vdwg.mxu0
        %v2610 = vadd.f32 %v2274, %v2604
        %v2611 = vadd.f32 %v2275, %v2607
        %v2612 = vld [vmem:[%s11] sm:$0x1]
        %v2613 = vld [vmem:[%s12] sm:$0x1]
        %2614 = vadd.xlane.f32.xlu0 %v2610
        %v2615 = vpop.xlane.xlu0 %2614
        %2616 = vadd.xlane.f32.xlu0 %v2611
        %v2617 = vpop.xlane.xlu0 %2616
        %v2618 = vmul.f32 %v2615, %v2241
        %v2619 = vmul.f32 %v2617, %v2241
        %v2620 = vsub.f32 %v2610, %v2618
        %v2621 = vsub.f32 %v2611, %v2619
        %v2622 = vmul.f32 %v2620, %v2620
        %v2623 = vmul.f32 %v2621, %v2621
        %2624 = vadd.xlane.f32.xlu0 %v2622
        %v2625 = vpop.xlane.xlu0 %2624
        %2626 = vadd.xlane.f32.xlu0 %v2623
        %v2627 = vpop.xlane.xlu0 %2626
        %v2628 = vmul.f32 %v2625, %v2241
        %v2629 = vmul.f32 %v2627, %v2241
        %v2630 = vadd.f32 %v2628, 1e-05
        %v2631 = vadd.f32 %v2629, 1e-05
        %v2632 = vrsqrt.pop %v2630
        %v2633 = vrsqrt.pop %v2631
        %v2634 = vmul.f32 %v2620, %v2632
        %v2635 = vmul.f32 %v2621, %v2633
        %v2637 = vlaneseq
        %v2638 = vshrl.u32 %v2637, 7
        %v2639 = vsub.s32 0, %v2638
        %v2640 = vrot.slane %v2612, %v2639
        %v2642 = vmul.f32 %v2634, %v2640
        %v2643 = vmul.f32 %v2635, %v2640
        %v2645 = vlaneseq
        %v2646 = vshrl.u32 %v2645, 7
        %v2647 = vsub.s32 0, %v2646
        %v2648 = vrot.slane %v2613, %v2647
        %v2650 = vadd.f32 %v2642, %v2648
        %v2651 = vadd.f32 %v2643, %v2648
        %2652 = vst [vmem:[%s528] sm:$0xff] %v2650
        %2653 = vst [vmem:[%s528 + $0x8] sm:$0xff] %v2651
        %s2654 = sand.u32 %s319, 1
        %s2655 = scalar_lea.sflag [#allocation4], %s2654
        %s2656 = sand.u32 %s319, 1
        %s2657 = smul.addr %s2656, 16
        %s2658 = scalar_lea.vmem [#allocation13], %s2657
        // Predicated region
        $region97: #{tpu_custom_call.1} parent=71 // pred_check
          %p2659 = pneg %p329
        $region98: #{tpu_custom_call.1} parent=71 // pred_check_branch
          %2661 = sbr.rel (%p2659) target = $region100
        $region99: #{tpu_custom_call.1} parent=71 // pred_region
          %s2663 = ssub.s32 256, 256
          %2664 = vsyncadd %s2655, %s2663
          %s2665 = smul.addr %s33, 128
          %s2666 = scalar_lea.hbm %s13, %s2665
          %s2667 = sshll.u32 %s2658, 4
          %s2668 = int_to_ptr.vmem [resolvable:$true] %s2667
          %2673 = dma.vmem_to_hbm [thread:$0]  %s2668, 256, %s2666, %s2655, 128, 256, 8
        $region100: #{tpu_custom_call.1} parent=71 // pred_fallthru
          _
      $region72: #{tpu_custom_call.1} parent=5 // pred_fallthru
        _
      %p2674 = scmp.le.s32.totalorder 2, %s28
      // Predicated region
      $region101: #{tpu_custom_call.1} parent=5 // pred_check
        %p2675 = pneg %p2674
      $region102: #{tpu_custom_call.1} parent=5 // pred_check_branch
        %2677 = sbr.rel (%p2675) target = $region104
      $region103: #{tpu_custom_call.1} parent=5 // pred_region
        %s2678 = ssub.s32 %s28, 2
        // Predicated region
        $region105: #{tpu_custom_call.1} parent=103 // pred_check
          %p2679 = pneg %p335
        $region106: #{tpu_custom_call.1} parent=103 // pred_check_branch
          %2681 = sbr.rel (%p2679) target = $region108
        $region107: #{tpu_custom_call.1} parent=103 // pred_region
          %s2682 = sand.u32 %s320, 1
          %s2683 = scalar_lea.sflag [#allocation4], %s2682
          %s2684 = sand.u32 %s320, 1
          %s2685 = smul.addr %s2684, 16
          %s2686 = scalar_lea.vmem [#allocation13], %s2685
          %2687 = dma.done %s2683, 256
        $region108: #{tpu_custom_call.1} parent=103 // pred_fallthru
          _
      $region104: #{tpu_custom_call.1} parent=5 // pred_fallthru
        _
    $region6: #{tpu_custom_call.1} parent=1 // loop_footer
      %s32 = sadd.s32 1, %s28
    $region7: #{tpu_custom_call.1} parent=1 // loop_footer_branch
      %27 = sbr.rel target = $region3
    $region8: #{tpu_custom_call.1} parent=1 // loop_exit
      _
    %2688 = vsyncpa [#allocation3], 1
    %s2689 = scalar_lea.sflag [#allocation3], 1
    %2690 = vsyncpa %s2689, 1
    %2691 = vsyncpa [#allocation6], 1
    %2692 = vsyncpa [#allocation9], 1
    %2693 = vsyncpa [#allocation12], 1
    %2694 = vsyncpa [#allocation4], 1
    %s2695 = scalar_lea.sflag [#allocation4], 1
    %2696 = vsyncpa %s2695, 1

</llo_original>
